<compile_context>
chip_gen: v6e
topology: v6e:2x2x1
jax: 0.10.0
libtpu: 0.0.40
codegen_flags: <defaults>
</compile_context>

<pallas_src>
import math
import functools

import jax
import jax.numpy as jnp
from jax import lax
from jax.experimental import pallas as pl
from jax.experimental.pallas import tpu as pltpu


def _mhca_kernel(*refs, num_heads, head_dim, seq_len, seq_pad, batch_block,
                 has_mask, compute_dtype):
    if has_mask:
        (mask_ref, x_ref, y_ref, wkv_ref, bkv_ref, wq_ref, bq_ref,
         wo_ref, bo_ref, out_ref, kv_scr, q_scr, o_scr) = refs
    else:
        (x_ref, y_ref, wkv_ref, bkv_ref, wq_ref, bq_ref,
         wo_ref, bo_ref, out_ref, kv_scr, q_scr, o_scr) = refs
        mask_ref = None

    hd = head_dim
    D = num_heads * hd
    BT = batch_block
    Sp = seq_pad

    # ---- loop-invariant operands: load once per grid step ----
    wkv_t = wkv_ref[...]                     # (D, 2D) compute_dtype, head-major cols
    wq_t = wq_ref[...]                       # (D, D)  compute_dtype, scale folded in
    wo_t = wo_ref[...]                       # (D, D)  compute_dtype
    bkv = bkv_ref[...]                       # (1, 2D) fp32 (head-major)
    bq = bq_ref[...]                         # (1, D)  fp32 (scaled)
    bo = bo_ref[...]                         # (1, D)  fp32
    mask = mask_ref[...] if has_mask else None   # (Sp, Sp) fp32

    # ---- hoisted projections: one kv matmul + one q matmul per grid step ----
    x2d = x_ref[...].reshape(BT * Sp, D)     # layout-free: Sp is a multiple of 128
    y2d = y_ref[...].reshape(BT * Sp, D)
    kv = jnp.dot(x2d, wkv_t, preferred_element_type=jnp.float32) + bkv   # (BT*Sp, 2D)
    q = jnp.dot(y2d, wq_t, preferred_element_type=jnp.float32) + bq      # (BT*Sp, D)
    kv_scr[...] = kv.astype(compute_dtype)
    q_scr[...] = q.astype(compute_dtype)

    # Contract head_dim of q with head_dim of k  ==  q @ k.T, no transpose op.
    qk_dims = (((1,), (1,)), ((), ()))

    # TODO(synk): for S in the 1-2K range, switch to flash-style K/V tiling with
    # an online softmax instead of materializing the full (Sp, Sp) fp32 scores.
    def batch_body(b, carry):
        off = pl.multiple_of(b * Sp, Sp)
        q_b = q_scr[pl.ds(off, Sp), :]       # (Sp, D)   compute_dtype
        kv_b = kv_scr[pl.ds(off, Sp), :]     # (Sp, 2D)
        k_all = kv_b[:, :D]                  # head-major K block (lane boundary)
        v_all = kv_b[:, D:]                  # head-major V block
        for h in range(num_heads):           # static unroll: static lane slices
            q_h = q_b[:, h * hd:(h + 1) * hd]
            k_h = k_all[:, h * hd:(h + 1) * hd]
            v_h = v_all[:, h * hd:(h + 1) * hd]
            s = lax.dot_general(q_h, k_h, qk_dims,
                                preferred_element_type=jnp.float32)      # (Sp, Sp)
            if has_mask:
                s = s + mask
            # Numerically-stable softmax in fp32; reciprocal on the EUP slot.
            s = s - jnp.max(s, axis=-1, keepdims=True)
            p = jnp.exp(s)
            p = p * pl.reciprocal(jnp.sum(p, axis=-1, keepdims=True), approx=True)
            o_h = jnp.dot(p.astype(compute_dtype), v_h,
                          preferred_element_type=jnp.float32)            # (Sp, hd)
            # Place this head's output at lane offset h*hd -> one projection later.
            o_scr[pl.ds(off, Sp), h * hd:(h + 1) * hd] = o_h.astype(compute_dtype)
        return carry

    lax.fori_loop(0, BT, batch_body, 0)

    # ---- single K=D output projection for the whole grid step ----
    out2d = jnp.dot(o_scr[...], wo_t, preferred_element_type=jnp.float32) + bo
    out3d = out2d.reshape(BT, Sp, D)
    out_ref[...] = out3d[:, :seq_len, :].astype(out_ref.dtype)


def multi_head_cross_attention(x, y, params, *, num_heads, mask=None,
                               batch_block=None, compute_dtype=jnp.bfloat16):
    """Pallas implementation of MultiHeadCrossAttention.forward.

    params = (wkv, bkv, wq, bq, wo, bo) in PyTorch nn.Linear convention.
    compute_dtype: dtype of MXU matmul operands (default bf16; MXU-native on
        all TPU generations). Accumulation, softmax and bias math stay fp32.
    """
    B, S, D = x.shape
    assert y.shape == (B, S, D)
    hd = D // num_heads
    assert hd * num_heads == D, "d_model must be divisible by num_heads"
    wkv, bkv, wq, bq, wo, bo = params
    compute_dtype = jnp.dtype(compute_dtype)
    out_dtype = x.dtype

    S_pad = ((S + 127) // 128) * 128
    pad = S_pad - S
    scale = 1.0 / math.sqrt(hd)

    # ---- one-time host-side parameter preprocessing (outside the kernel) ----
    # Head-major column permutation for the fused KV projection:
    #   new cols [0:D) = K of heads 0..H-1, [D:2D) = V of heads 0..H-1.
    col = jnp.arange(2 * D).reshape(num_heads, 2, hd)
    perm = jnp.concatenate([col[:, 0, :].reshape(-1), col[:, 1, :].reshape(-1)])

    wkv_t = jnp.asarray(wkv, jnp.float32).T[:, perm].astype(compute_dtype)   # (D, 2D)
    bkv2 = jnp.asarray(bkv, jnp.float32)[perm].reshape(1, 2 * D)
    # Fold 1/sqrt(head_dim) into the q projection (q is only used for scores).
    wq_t = (jnp.asarray(wq, jnp.float32).T * scale).astype(compute_dtype)    # (D, D)
    bq2 = (jnp.asarray(bq, jnp.float32) * scale).reshape(1, D)
    wo_t = jnp.asarray(wo, jnp.float32).T.astype(compute_dtype)              # (D, D)
    bo2 = jnp.asarray(bo, jnp.float32).reshape(1, D)

    # Zero-pad the sequence axis to a multiple of 128 (lane-dense scores and
    # reductions). Padded key columns are masked below; padded query rows are
    # computed but sliced off before the store.
    xp = jnp.pad(x.astype(compute_dtype), ((0, 0), (0, pad), (0, 0)))
    yp = jnp.pad(y.astype(compute_dtype), ((0, 0), (0, pad), (0, 0)))

    has_mask = (mask is not None) or (pad > 0)
    if has_mask:
        mp = jnp.zeros((S_pad, S_pad), jnp.float32)
        if pad > 0:
            mp = mp.at[:, S:].set(-1e9)
        if mask is not None:
            mp = mp.at[:S, :S].add(jnp.asarray(mask, jnp.float32).reshape(S, S))

    # Batch elements per grid step. Keep it small so the parallel grid has
    # >= 2 pipelined steps per TensorCore even on v7x (2 TCs/chip).
    if batch_block is None:
        batch_block = 2 if B % 2 == 0 else 1
    BT = batch_block
    assert B % BT == 0

    operands = []
    if has_mask:
        operands.append(mp)
    operands += [xp, yp, wkv_t, bkv2, wq_t, bq2, wo_t, bo2]

    kernel = functools.partial(
        _mhca_kernel, num_heads=num_heads, head_dim=hd, seq_len=S,
        seq_pad=S_pad, batch_block=BT, has_mask=has_mask,
        compute_dtype=compute_dtype)

    # Advisory cost estimate for the XLA scheduler (padded shapes).
    flops = (2 * B * S_pad * D * (2 * D)          # kv projection
             + 2 * B * S_pad * D * D              # q projection
             + 4 * B * S_pad * S_pad * D          # q@k^T and p@v over all heads
             + 2 * B * S_pad * D * D)             # output projection
    transcendentals = B * num_heads * S_pad * S_pad
    bytes_accessed = (
        int(xp.size) * xp.dtype.itemsize + int(yp.size) * yp.dtype.itemsize
        + B * S * D * jnp.dtype(out_dtype).itemsize
        + sum(int(w.size) * w.dtype.itemsize for w in (wkv_t, wq_t, wo_t))
        + sum(int(v.size) * 4 for v in (bkv2, bq2, bo2))
        + (S_pad * S_pad * 4 if has_mask else 0))
    cost = pl.CostEstimate(flops=flops, transcendentals=transcendentals,
                           bytes_accessed=bytes_accessed)

    def _const2d(shape):
        return pl.BlockSpec(shape, lambda b: (0, 0))

    in_specs = []
    if has_mask:
        in_specs.append(_const2d((S_pad, S_pad)))
    in_specs += [
        pl.BlockSpec((BT, S_pad, D), lambda b: (b, 0, 0)),   # x (padded)
        pl.BlockSpec((BT, S_pad, D), lambda b: (b, 0, 0)),   # y (padded)
        _const2d((D, 2 * D)),                                 # W_kv^T (head-major)
        _const2d((1, 2 * D)),                                 # b_kv
        _const2d((D, D)),                                     # W_q^T (scaled)
        _const2d((1, D)),                                     # b_q (scaled)
        _const2d((D, D)),                                     # W_o^T
        _const2d((1, D)),                                     # b_o
    ]

    return pl.pallas_call(
        kernel,
        out_shape=jax.ShapeDtypeStruct((B, S, D), out_dtype),
        grid_spec=pltpu.PrefetchScalarGridSpec(
            num_scalar_prefetch=0,
            grid=(B // BT,),
            in_specs=in_specs,
            out_specs=pl.BlockSpec((BT, S, D), lambda b: (b, 0, 0)),
            scratch_shapes=[
                pltpu.VMEM((BT * S_pad, 2 * D), compute_dtype),   # kv
                pltpu.VMEM((BT * S_pad, D), compute_dtype),       # q
                pltpu.VMEM((BT * S_pad, D), compute_dtype),       # head outputs
            ]),
        compiler_params=pltpu.CompilerParams(
            dimension_semantics=("parallel",),
            # Modest explicit limit: above v5e's 16 MiB scoped default, below
            # v7x's 64 MiB physical VMEM. Actual usage here is well under it.
            vmem_limit_bytes=32 * 1024 * 1024),
        cost_estimate=cost,
    )(*operands)


def _reference(x, y, params, *, num_heads, mask=None):
    """Pure-JAX fp32 reference mirroring the PyTorch forward."""
    B, S, D = x.shape
    hd = D // num_heads
    wkv, bkv, wq, bq, wo, bo = params
    kv = x @ wkv.T + bkv                               # (B, S, 2D)
    q = y @ wq.T + bq                                  # (B, S, D)
    kv = kv.reshape(B, S, num_heads, 2 * hd).transpose(0, 2, 1, 3)
    q = q.reshape(B, S, num_heads, hd).transpose(0, 2, 1, 3)
    k, v = kv[..., :hd], kv[..., hd:]
    scaled = jnp.einsum("bhqd,bhkd->bhqk", q, k) / math.sqrt(hd)
    if mask is not None:
        scaled = scaled + mask
    attn = jax.nn.softmax(scaled, axis=-1)
    values = jnp.einsum("bhqk,bhkd->bhqd", attn, v)
    values = values.transpose(0, 2, 1, 3).reshape(B, S, D)
    return values @ wo.T + bo


if __name__ == "__main__":
    # Small config consistent with the module (d_model=128, seq=104).
    B, S, D = 8, 104, 128
    num_heads = 4

    key = jax.random.PRNGKey(0)
    kx, ky, k1, k2, k3, k4, k5, k6 = jax.random.split(key, 8)

    x = jax.random.normal(kx, (B, S, D), dtype=jnp.float32)
    y = jax.random.normal(ky, (B, S, D), dtype=jnp.float32)

    # Deterministic "Linear" params (PyTorch convention: W (out, in), b (out,)).
    s = 1.0 / math.sqrt(D)
    wkv = jax.random.uniform(k1, (2 * D, D), minval=-s, maxval=s, dtype=jnp.float32)
    bkv = jax.random.uniform(k2, (2 * D,), minval=-s, maxval=s, dtype=jnp.float32)
    wq = jax.random.uniform(k3, (D, D), minval=-s, maxval=s, dtype=jnp.float32)
    bq = jax.random.uniform(k4, (D,), minval=-s, maxval=s, dtype=jnp.float32)
    wo = jax.random.uniform(k5, (D, D), minval=-s, maxval=s, dtype=jnp.float32)
    bo = jax.random.uniform(k6, (D,), minval=-s, maxval=s, dtype=jnp.float32)
    params = (wkv, bkv, wq, bq, wo, bo)

    ref = _reference(x, y, params, num_heads=num_heads, mask=None)
    mask = jnp.triu(jnp.full((S, S), -1e9, dtype=jnp.float32), k=1)
    ref_m = _reference(x, y, params, num_heads=num_heads, mask=mask)

    # 1) Default path: bf16 MXU operands, fp32 softmax/accumulation, no user mask.
    out = jax.block_until_ready(
        multi_head_cross_attention(x, y, params, num_heads=num_heads))
    assert out.shape == (B, S, D)
    assert jnp.allclose(out, ref, rtol=1e-1, atol=1e-1), "mismatch (bf16, no mask)"

    # 2) fp32 compute path with a causal-style additive mask (tight tolerance).
    out_m32 = jax.block_until_ready(
        multi_head_cross_attention(x, y, params, num_heads=num_heads, mask=mask,
                                   compute_dtype=jnp.float32))
    assert jnp.allclose(out_m32, ref_m, rtol=5e-3, atol=5e-3), "mismatch (f32, mask)"

    # 3) Default bf16 path with the mask.
    out_m = jax.block_until_ready(
        multi_head_cross_attention(x, y, params, num_heads=num_heads, mask=mask))
    assert jnp.allclose(out_m, ref_m, rtol=1e-1, atol=1e-1), "mismatch (bf16, mask)"

    print("KERNEL_OK")
</pallas_src>

<mosaic_0001>
module attributes {stable_mosaic.version = 11 : i64} {
  func.func @_mhca_kernel(%arg0: i32, %arg1: memref<128x128xf32, #tpu.memory_space<vmem>>, %arg2: memref<2x128x128xbf16, #tpu.memory_space<vmem>>, %arg3: memref<2x128x128xbf16, #tpu.memory_space<vmem>>, %arg4: memref<128x256xbf16, #tpu.memory_space<vmem>>, %arg5: memref<1x256xf32, #tpu.memory_space<vmem>>, %arg6: memref<128x128xbf16, #tpu.memory_space<vmem>>, %arg7: memref<1x128xf32, #tpu.memory_space<vmem>>, %arg8: memref<128x128xbf16, #tpu.memory_space<vmem>>, %arg9: memref<1x128xf32, #tpu.memory_space<vmem>>, %arg10: memref<2x104x128xf32, #tpu.memory_space<vmem>>, %arg11: memref<256x256xbf16, #tpu.memory_space<vmem>>, %arg12: memref<256x128xbf16, #tpu.memory_space<vmem>>, %arg13: memref<256x128xbf16, #tpu.memory_space<vmem>>) attributes {dimension_semantics = [#tpu.dimension_semantics<parallel>], iteration_bounds = array<i64: 4>, scalar_prefetch = 0 : i64, scratch_operands = 3 : i64, tpu.core_type = #tpu.core_type<tc>, window_params = [{pipeline_mode = #tpu.pipeline_mode<synchronous>, transform_indices = @transform_0, window_bounds = array<i64: 128, 128>}, {transform_indices = @transform_1, window_bounds = array<i64: 2, 128, 128>}, {transform_indices = @transform_2, window_bounds = array<i64: 2, 128, 128>}, {pipeline_mode = #tpu.pipeline_mode<synchronous>, transform_indices = @transform_3, window_bounds = array<i64: 128, 256>}, {pipeline_mode = #tpu.pipeline_mode<synchronous>, transform_indices = @transform_4, window_bounds = array<i64: 1, 256>}, {pipeline_mode = #tpu.pipeline_mode<synchronous>, transform_indices = @transform_5, window_bounds = array<i64: 128, 128>}, {pipeline_mode = #tpu.pipeline_mode<synchronous>, transform_indices = @transform_6, window_bounds = array<i64: 1, 128>}, {pipeline_mode = #tpu.pipeline_mode<synchronous>, transform_indices = @transform_7, window_bounds = array<i64: 128, 128>}, {pipeline_mode = #tpu.pipeline_mode<synchronous>, transform_indices = @transform_8, window_bounds = array<i64: 1, 128>}, {transform_indices = @transform_9, window_bounds = array<i64: 2, 104, 128>}]} {
    %c0 = arith.constant 0 : index
    %c0_0 = arith.constant 0 : index
    %0 = vector.load %arg4[%c0, %c0_0] : memref<128x256xbf16, #tpu.memory_space<vmem>>, vector<128x256xbf16>
    %c0_1 = arith.constant 0 : index
    %c0_2 = arith.constant 0 : index
    %1 = vector.load %arg6[%c0_1, %c0_2] : memref<128x128xbf16, #tpu.memory_space<vmem>>, vector<128x128xbf16>
    %c0_3 = arith.constant 0 : index
    %c0_4 = arith.constant 0 : index
    %2 = vector.load %arg8[%c0_3, %c0_4] : memref<128x128xbf16, #tpu.memory_space<vmem>>, vector<128x128xbf16>
    %c0_5 = arith.constant 0 : index
    %c0_6 = arith.constant 0 : index
    %3 = vector.load %arg5[%c0_5, %c0_6] : memref<1x256xf32, #tpu.memory_space<vmem>>, vector<1x256xf32>
    %c0_7 = arith.constant 0 : index
    %c0_8 = arith.constant 0 : index
    %4 = vector.load %arg7[%c0_7, %c0_8] : memref<1x128xf32, #tpu.memory_space<vmem>>, vector<1x128xf32>
    %c0_9 = arith.constant 0 : index
    %c0_10 = arith.constant 0 : index
    %5 = vector.load %arg9[%c0_9, %c0_10] : memref<1x128xf32, #tpu.memory_space<vmem>>, vector<1x128xf32>
    %c0_11 = arith.constant 0 : index
    %c0_12 = arith.constant 0 : index
    %6 = vector.load %arg1[%c0_11, %c0_12] : memref<128x128xf32, #tpu.memory_space<vmem>>, vector<128x128xf32>
    %c0_13 = arith.constant 0 : index
    %c0_14 = arith.constant 0 : index
    %c0_15 = arith.constant 0 : index
    %7 = vector.load %arg2[%c0_13, %c0_14, %c0_15] : memref<2x128x128xbf16, #tpu.memory_space<vmem>>, vector<2x128x128xbf16>
    %8 = vector.shape_cast %7 : vector<2x128x128xbf16> to vector<256x128xbf16>
    %c0_16 = arith.constant 0 : index
    %c0_17 = arith.constant 0 : index
    %c0_18 = arith.constant 0 : index
    %9 = vector.load %arg3[%c0_16, %c0_17, %c0_18] : memref<2x128x128xbf16, #tpu.memory_space<vmem>>, vector<2x128x128xbf16>
    %10 = vector.shape_cast %9 : vector<2x128x128xbf16> to vector<256x128xbf16>
    %cst = arith.constant dense<0.000000e+00> : vector<256x256xf32>
    %11 = tpu.matmul %8, %0, %cst {dimension_numbers = #tpu.dot_dimension_numbers<[1], [0], [0], [1], [0, 0, 1, 1], [], []>} : vector<256x128xbf16>, vector<128x256xbf16>, vector<256x256xf32> -> vector<256x256xf32>
    %12 = vector.broadcast %3 : vector<1x256xf32> to vector<256x256xf32>
    %13 = arith.addf %11, %12 : vector<256x256xf32>
    %cst_19 = arith.constant dense<0.000000e+00> : vector<256x128xf32>
    %14 = tpu.matmul %10, %1, %cst_19 {dimension_numbers = #tpu.dot_dimension_numbers<[1], [0], [0], [1], [0, 0, 1, 1], [], []>} : vector<256x128xbf16>, vector<128x128xbf16>, vector<256x128xf32> -> vector<256x128xf32>
    %15 = vector.broadcast %4 : vector<1x128xf32> to vector<256x128xf32>
    %16 = arith.addf %14, %15 : vector<256x128xf32>
    %17 = arith.truncf %13 : vector<256x256xf32> to vector<256x256xbf16>
    %c0_20 = arith.constant 0 : index
    %c0_21 = arith.constant 0 : index
    %18 = vector.load %arg11[%c0_20, %c0_21] : memref<256x256xbf16, #tpu.memory_space<vmem>>, vector<256x256xbf16>
    tpu.vector_store %arg11[%c0_20, %c0_21], %17 {strides = array<i32>} : memref<256x256xbf16, #tpu.memory_space<vmem>>, vector<256x256xbf16>,
    %19 = arith.truncf %16 : vector<256x128xf32> to vector<256x128xbf16>
    %c0_22 = arith.constant 0 : index
    %c0_23 = arith.constant 0 : index
    %20 = vector.load %arg12[%c0_22, %c0_23] : memref<256x128xbf16, #tpu.memory_space<vmem>>, vector<256x128xbf16>
    tpu.vector_store %arg12[%c0_22, %c0_23], %19 {strides = array<i32>} : memref<256x128xbf16, #tpu.memory_space<vmem>>, vector<256x128xbf16>,
    %c0_i32 = arith.constant 0 : i32
    %c2_i32 = arith.constant 2 : i32
    %21 = arith.addi %c0_i32, %c2_i32 : i32
    %c1_i32 = arith.constant 1 : i32
    scf.for %arg14 = %c0_i32 to %21 step %c1_i32  : i32 {
      %c128_i32 = arith.constant 128 : i32
      %29 = arith.muli %arg14, %c128_i32 : i32
      %30 = tpu.assume_multiple %29, 128 : i32
      %31 = arith.index_cast %30 : i32 to index
      %c0_31 = arith.constant 0 : index
      %32 = vector.load %arg12[%31, %c0_31] : memref<256x128xbf16, #tpu.memory_space<vmem>>, vector<128x128xbf16>
      %33 = arith.index_cast %30 : i32 to index
      %c0_32 = arith.constant 0 : index
      %34 = vector.load %arg11[%33, %c0_32] : memref<256x256xbf16, #tpu.memory_space<vmem>>, vector<128x256xbf16>
      %35 = vector.extract_strided_slice %34 {offsets = [0, 0], sizes = [128, 128], strides = [1, 1]} : vector<128x256xbf16> to vector<128x128xbf16>
      %36 = vector.extract_strided_slice %34 {offsets = [0, 128], sizes = [128, 128], strides = [1, 1]} : vector<128x256xbf16> to vector<128x128xbf16>
      %37 = vector.extract_strided_slice %32 {offsets = [0, 0], sizes = [128, 32], strides = [1, 1]} : vector<128x128xbf16> to vector<128x32xbf16>
      %38 = vector.extract_strided_slice %35 {offsets = [0, 0], sizes = [128, 32], strides = [1, 1]} : vector<128x128xbf16> to vector<128x32xbf16>
      %39 = vector.extract_strided_slice %36 {offsets = [0, 0], sizes = [128, 32], strides = [1, 1]} : vector<128x128xbf16> to vector<128x32xbf16>
      %cst_33 = arith.constant dense<0.000000e+00> : vector<128x128xf32>
      %40 = tpu.matmul %37, %38, %cst_33 {dimension_numbers = #tpu.dot_dimension_numbers<[1], [1], [0], [0], [0, 0, 1, 0], [], []>} : vector<128x32xbf16>, vector<128x32xbf16>, vector<128x128xf32> -> vector<128x128xf32>
      %41 = arith.addf %40, %6 : vector<128x128xf32>
      %cst_34 = arith.constant dense<0xFF800000> : vector<128xf32>
      %42 = vector.multi_reduction <maximumf>, %41, %cst_34 [1] : vector<128x128xf32> to vector<128xf32>
      %43 = vector.shape_cast %42 : vector<128xf32> to vector<128x1xf32>
      %44 = vector.broadcast %43 : vector<128x1xf32> to vector<128x128xf32>
      %45 = arith.subf %41, %44 : vector<128x128xf32>
      %46 = math.exp %45 : vector<128x128xf32>
      %cst_35 = arith.constant dense<0.000000e+00> : vector<128xf32>
      %47 = vector.multi_reduction <add>, %46, %cst_35 [1] : vector<128x128xf32> to vector<128xf32>
      %48 = vector.shape_cast %47 : vector<128xf32> to vector<128x1xf32>
      %49 = tpu.reciprocal %48 {approx = true} : vector<128x1xf32> -> vector<128x1xf32>
      %50 = vector.broadcast %49 : vector<128x1xf32> to vector<128x128xf32>
      %51 = arith.mulf %46, %50 : vector<128x128xf32>
      %52 = arith.truncf %51 : vector<128x128xf32> to vector<128x128xbf16>
      %cst_36 = arith.constant dense<0.000000e+00> : vector<128x32xf32>
      %53 = tpu.matmul %52, %39, %cst_36 {dimension_numbers = #tpu.dot_dimension_numbers<[1], [0], [0], [1], [0, 0, 1, 1], [], []>} : vector<128x128xbf16>, vector<128x32xbf16>, vector<128x32xf32> -> vector<128x32xf32>
      %54 = arith.truncf %53 : vector<128x32xf32> to vector<128x32xbf16>
      %55 = arith.index_cast %30 : i32 to index
      %c0_37 = arith.constant 0 : index
      %56 = vector.load %arg13[%55, %c0_37] : memref<256x128xbf16, #tpu.memory_space<vmem>>, vector<128x32xbf16>
      tpu.vector_store %arg13[%55, %c0_37], %54 {strides = array<i32>} : memref<256x128xbf16, #tpu.memory_space<vmem>>, vector<128x32xbf16>,
      %57 = vector.extract_strided_slice %32 {offsets = [0, 32], sizes = [128, 32], strides = [1, 1]} : vector<128x128xbf16> to vector<128x32xbf16>
      %58 = vector.extract_strided_slice %35 {offsets = [0, 32], sizes = [128, 32], strides = [1, 1]} : vector<128x128xbf16> to vector<128x32xbf16>
      %59 = vector.extract_strided_slice %36 {offsets = [0, 32], sizes = [128, 32], strides = [1, 1]} : vector<128x128xbf16> to vector<128x32xbf16>
      %cst_38 = arith.constant dense<0.000000e+00> : vector<128x128xf32>
      %60 = tpu.matmul %57, %58, %cst_38 {dimension_numbers = #tpu.dot_dimension_numbers<[1], [1], [0], [0], [0, 0, 1, 0], [], []>} : vector<128x32xbf16>, vector<128x32xbf16>, vector<128x128xf32> -> vector<128x128xf32>
      %61 = arith.addf %60, %6 : vector<128x128xf32>
      %cst_39 = arith.constant dense<0xFF800000> : vector<128xf32>
      %62 = vector.multi_reduction <maximumf>, %61, %cst_39 [1] : vector<128x128xf32> to vector<128xf32>
      %63 = vector.shape_cast %62 : vector<128xf32> to vector<128x1xf32>
      %64 = vector.broadcast %63 : vector<128x1xf32> to vector<128x128xf32>
      %65 = arith.subf %61, %64 : vector<128x128xf32>
      %66 = math.exp %65 : vector<128x128xf32>
      %cst_40 = arith.constant dense<0.000000e+00> : vector<128xf32>
      %67 = vector.multi_reduction <add>, %66, %cst_40 [1] : vector<128x128xf32> to vector<128xf32>
      %68 = vector.shape_cast %67 : vector<128xf32> to vector<128x1xf32>
      %69 = tpu.reciprocal %68 {approx = true} : vector<128x1xf32> -> vector<128x1xf32>
      %70 = vector.broadcast %69 : vector<128x1xf32> to vector<128x128xf32>
      %71 = arith.mulf %66, %70 : vector<128x128xf32>
      %72 = arith.truncf %71 : vector<128x128xf32> to vector<128x128xbf16>
      %cst_41 = arith.constant dense<0.000000e+00> : vector<128x32xf32>
      %73 = tpu.matmul %72, %59, %cst_41 {dimension_numbers = #tpu.dot_dimension_numbers<[1], [0], [0], [1], [0, 0, 1, 1], [], []>} : vector<128x128xbf16>, vector<128x32xbf16>, vector<128x32xf32> -> vector<128x32xf32>
      %74 = arith.truncf %73 : vector<128x32xf32> to vector<128x32xbf16>
      %75 = arith.index_cast %30 : i32 to index
      %c32 = arith.constant 32 : index
      %76 = vector.load %arg13[%75, %c32] : memref<256x128xbf16, #tpu.memory_space<vmem>>, vector<128x32xbf16>
      tpu.vector_store %arg13[%75, %c32], %74 {strides = array<i32>} : memref<256x128xbf16, #tpu.memory_space<vmem>>, vector<128x32xbf16>,
      %77 = vector.extract_strided_slice %32 {offsets = [0, 64], sizes = [128, 32], strides = [1, 1]} : vector<128x128xbf16> to vector<128x32xbf16>
      %78 = vector.extract_strided_slice %35 {offsets = [0, 64], sizes = [128, 32], strides = [1, 1]} : vector<128x128xbf16> to vector<128x32xbf16>
      %79 = vector.extract_strided_slice %36 {offsets = [0, 64], sizes = [128, 32], strides = [1, 1]} : vector<128x128xbf16> to vector<128x32xbf16>
      %cst_42 = arith.constant dense<0.000000e+00> : vector<128x128xf32>
      %80 = tpu.matmul %77, %78, %cst_42 {dimension_numbers = #tpu.dot_dimension_numbers<[1], [1], [0], [0], [0, 0, 1, 0], [], []>} : vector<128x32xbf16>, vector<128x32xbf16>, vector<128x128xf32> -> vector<128x128xf32>
      %81 = arith.addf %80, %6 : vector<128x128xf32>
      %cst_43 = arith.constant dense<0xFF800000> : vector<128xf32>
      %82 = vector.multi_reduction <maximumf>, %81, %cst_43 [1] : vector<128x128xf32> to vector<128xf32>
      %83 = vector.shape_cast %82 : vector<128xf32> to vector<128x1xf32>
      %84 = vector.broadcast %83 : vector<128x1xf32> to vector<128x128xf32>
      %85 = arith.subf %81, %84 : vector<128x128xf32>
      %86 = math.exp %85 : vector<128x128xf32>
      %cst_44 = arith.constant dense<0.000000e+00> : vector<128xf32>
      %87 = vector.multi_reduction <add>, %86, %cst_44 [1] : vector<128x128xf32> to vector<128xf32>
      %88 = vector.shape_cast %87 : vector<128xf32> to vector<128x1xf32>
      %89 = tpu.reciprocal %88 {approx = true} : vector<128x1xf32> -> vector<128x1xf32>
      %90 = vector.broadcast %89 : vector<128x1xf32> to vector<128x128xf32>
      %91 = arith.mulf %86, %90 : vector<128x128xf32>
      %92 = arith.truncf %91 : vector<128x128xf32> to vector<128x128xbf16>
      %cst_45 = arith.constant dense<0.000000e+00> : vector<128x32xf32>
      %93 = tpu.matmul %92, %79, %cst_45 {dimension_numbers = #tpu.dot_dimension_numbers<[1], [0], [0], [1], [0, 0, 1, 1], [], []>} : vector<128x128xbf16>, vector<128x32xbf16>, vector<128x32xf32> -> vector<128x32xf32>
      %94 = arith.truncf %93 : vector<128x32xf32> to vector<128x32xbf16>
      %95 = arith.index_cast %30 : i32 to index
      %c64 = arith.constant 64 : index
      %96 = vector.load %arg13[%95, %c64] : memref<256x128xbf16, #tpu.memory_space<vmem>>, vector<128x32xbf16>
      tpu.vector_store %arg13[%95, %c64], %94 {strides = array<i32>} : memref<256x128xbf16, #tpu.memory_space<vmem>>, vector<128x32xbf16>,
      %97 = vector.extract_strided_slice %32 {offsets = [0, 96], sizes = [128, 32], strides = [1, 1]} : vector<128x128xbf16> to vector<128x32xbf16>
      %98 = vector.extract_strided_slice %35 {offsets = [0, 96], sizes = [128, 32], strides = [1, 1]} : vector<128x128xbf16> to vector<128x32xbf16>
      %99 = vector.extract_strided_slice %36 {offsets = [0, 96], sizes = [128, 32], strides = [1, 1]} : vector<128x128xbf16> to vector<128x32xbf16>
      %cst_46 = arith.constant dense<0.000000e+00> : vector<128x128xf32>
      %100 = tpu.matmul %97, %98, %cst_46 {dimension_numbers = #tpu.dot_dimension_numbers<[1], [1], [0], [0], [0, 0, 1, 0], [], []>} : vector<128x32xbf16>, vector<128x32xbf16>, vector<128x128xf32> -> vector<128x128xf32>
      %101 = arith.addf %100, %6 : vector<128x128xf32>
      %cst_47 = arith.constant dense<0xFF800000> : vector<128xf32>
      %102 = vector.multi_reduction <maximumf>, %101, %cst_47 [1] : vector<128x128xf32> to vector<128xf32>
      %103 = vector.shape_cast %102 : vector<128xf32> to vector<128x1xf32>
      %104 = vector.broadcast %103 : vector<128x1xf32> to vector<128x128xf32>
      %105 = arith.subf %101, %104 : vector<128x128xf32>
      %106 = math.exp %105 : vector<128x128xf32>
      %cst_48 = arith.constant dense<0.000000e+00> : vector<128xf32>
      %107 = vector.multi_reduction <add>, %106, %cst_48 [1] : vector<128x128xf32> to vector<128xf32>
      %108 = vector.shape_cast %107 : vector<128xf32> to vector<128x1xf32>
      %109 = tpu.reciprocal %108 {approx = true} : vector<128x1xf32> -> vector<128x1xf32>
      %110 = vector.broadcast %109 : vector<128x1xf32> to vector<128x128xf32>
      %111 = arith.mulf %106, %110 : vector<128x128xf32>
      %112 = arith.truncf %111 : vector<128x128xf32> to vector<128x128xbf16>
      %cst_49 = arith.constant dense<0.000000e+00> : vector<128x32xf32>
      %113 = tpu.matmul %112, %99, %cst_49 {dimension_numbers = #tpu.dot_dimension_numbers<[1], [0], [0], [1], [0, 0, 1, 1], [], []>} : vector<128x128xbf16>, vector<128x32xbf16>, vector<128x32xf32> -> vector<128x32xf32>
      %114 = arith.truncf %113 : vector<128x32xf32> to vector<128x32xbf16>
      %115 = arith.index_cast %30 : i32 to index
      %c96 = arith.constant 96 : index
      %116 = vector.load %arg13[%115, %c96] : memref<256x128xbf16, #tpu.memory_space<vmem>>, vector<128x32xbf16>
      tpu.vector_store %arg13[%115, %c96], %114 {strides = array<i32>} : memref<256x128xbf16, #tpu.memory_space<vmem>>, vector<128x32xbf16>,
    }
    %c2_i32_24 = arith.constant 2 : i32
    %c0_25 = arith.constant 0 : index
    %c0_26 = arith.constant 0 : index
    %22 = vector.load %arg13[%c0_25, %c0_26] : memref<256x128xbf16, #tpu.memory_space<vmem>>, vector<256x128xbf16>
    %cst_27 = arith.constant dense<0.000000e+00> : vector<256x128xf32>
    %23 = tpu.matmul %22, %2, %cst_27 {dimension_numbers = #tpu.dot_dimension_numbers<[1], [0], [0], [1], [0, 0, 1, 1], [], []>} : vector<256x128xbf16>, vector<128x128xbf16>, vector<256x128xf32> -> vector<256x128xf32>
    %24 = vector.broadcast %5 : vector<1x128xf32> to vector<256x128xf32>
    %25 = arith.addf %23, %24 : vector<256x128xf32>
    %26 = vector.shape_cast %25 : vector<256x128xf32> to vector<2x128x128xf32>
    %27 = vector.extract_strided_slice %26 {offsets = [0, 0, 0], sizes = [2, 104, 128], strides = [1, 1, 1]} : vector<2x128x128xf32> to vector<2x104x128xf32>
    %c0_28 = arith.constant 0 : index
    %c0_29 = arith.constant 0 : index
    %c0_30 = arith.constant 0 : index
    %28 = vector.load %arg10[%c0_28, %c0_29, %c0_30] : memref<2x104x128xf32, #tpu.memory_space<vmem>>, vector<2x104x128xf32>
    tpu.vector_store %arg10[%c0_28, %c0_29, %c0_30], %27 {strides = array<i32>} : memref<2x104x128xf32, #tpu.memory_space<vmem>>, vector<2x104x128xf32>,
    return
  }
  func.func @transform_0(%arg0: i32) -> (i32, i32) {
    %c0_i32 = arith.constant 0 : i32
    %c0_i32_0 = arith.constant 0 : i32
    %c0_i32_1 = arith.constant 0 : i32
    return %c0_i32, %c0_i32_0 : i32, i32
  }
  func.func @transform_1(%arg0: i32) -> (i32, i32, i32) {
    %c0_i32 = arith.constant 0 : i32
    %c0_i32_0 = arith.constant 0 : i32
    %c0_i32_1 = arith.constant 0 : i32
    return %arg0, %c0_i32, %c0_i32_0 : i32, i32, i32
  }
  func.func @transform_2(%arg0: i32) -> (i32, i32, i32) {
    %c0_i32 = arith.constant 0 : i32
    %c0_i32_0 = arith.constant 0 : i32
    %c0_i32_1 = arith.constant 0 : i32
    return %arg0, %c0_i32, %c0_i32_0 : i32, i32, i32
  }
  func.func @transform_3(%arg0: i32) -> (i32, i32) {
    %c0_i32 = arith.constant 0 : i32
    %c0_i32_0 = arith.constant 0 : i32
    %c0_i32_1 = arith.constant 0 : i32
    return %c0_i32, %c0_i32_0 : i32, i32
  }
  func.func @transform_4(%arg0: i32) -> (i32, i32) {
    %c0_i32 = arith.constant 0 : i32
    %c0_i32_0 = arith.constant 0 : i32
    %c0_i32_1 = arith.constant 0 : i32
    return %c0_i32, %c0_i32_0 : i32, i32
  }
  func.func @transform_5(%arg0: i32) -> (i32, i32) {
    %c0_i32 = arith.constant 0 : i32
    %c0_i32_0 = arith.constant 0 : i32
    %c0_i32_1 = arith.constant 0 : i32
    return %c0_i32, %c0_i32_0 : i32, i32
  }
  func.func @transform_6(%arg0: i32) -> (i32, i32) {
    %c0_i32 = arith.constant 0 : i32
    %c0_i32_0 = arith.constant 0 : i32
    %c0_i32_1 = arith.constant 0 : i32
    return %c0_i32, %c0_i32_0 : i32, i32
  }
  func.func @transform_7(%arg0: i32) -> (i32, i32) {
    %c0_i32 = arith.constant 0 : i32
    %c0_i32_0 = arith.constant 0 : i32
    %c0_i32_1 = arith.constant 0 : i32
    return %c0_i32, %c0_i32_0 : i32, i32
  }
  func.func @transform_8(%arg0: i32) -> (i32, i32) {
    %c0_i32 = arith.constant 0 : i32
    %c0_i32_0 = arith.constant 0 : i32
    %c0_i32_1 = arith.constant 0 : i32
    return %c0_i32, %c0_i32_0 : i32, i32
  }
  func.func @transform_9(%arg0: i32) -> (i32, i32, i32) {
    %c0_i32 = arith.constant 0 : i32
    %c0_i32_0 = arith.constant 0 : i32
    %c0_i32_1 = arith.constant 0 : i32
    return %arg0, %c0_i32, %c0_i32_0 : i32, i32, i32
  }
}

</mosaic_0001>

<llo_original>
// kernel: tpu_custom_call.1
$region0: #{tpu_custom_call.1}
  #allocation0 [shape = 'u32[]', space=smem, size = 0x4, offset = 0x4, fixed_abs, tag = 'smem constant byte address 0x4 - core index']
  #allocation1 [shape = 'u32[144,128]{1,0:T(1,128)}', space=vmem, size = 0x12000, scoped, tag = 'internal scratch']
  #allocation2 [shape = 'bf16[256,256]{1,0:T(8,128)(2,1)}', space=vmem, size = 0x20000, scoped, tag = 'scratch operand']
  #allocation3 [shape = 'bf16[256,128]{1,0:T(8,128)(2,1)}', space=vmem, size = 0x10000, scoped, tag = 'scratch operand']
  #allocation4 [shape = 'bf16[256,128]{1,0:T(8,128)(2,1)}', space=vmem, size = 0x10000, scoped, tag = 'scratch operand']
  %s0 = inlined_call_operand.hbm [shape: f32[128,128], index: 0, kind: input, shape index: {}]
  %s1 = inlined_call_operand.hbm [shape: bf16[8,128,128], index: 1, kind: input, shape index: {}]
  %s2 = inlined_call_operand.hbm [shape: bf16[8,128,128], index: 2, kind: input, shape index: {}]
  %s3 = inlined_call_operand.hbm [shape: bf16[128,256], index: 3, kind: input, shape index: {}]
  %s4 = inlined_call_operand.vmem [shape: f32[1,256], index: 4, kind: input, shape index: {}]
  %s5 = inlined_call_operand.hbm [shape: bf16[128,128], index: 5, kind: input, shape index: {}]
  %s6 = inlined_call_operand.vmem [shape: f32[1,128], index: 6, kind: input, shape index: {}]
  %s7 = inlined_call_operand.hbm [shape: bf16[128,128], index: 7, kind: input, shape index: {}]
  %s8 = inlined_call_operand.vmem [shape: f32[1,128], index: 8, kind: input, shape index: {}]
  %s9 = inlined_call_operand.hbm [shape: f32[8,104,128], index: 9, kind: output, shape index: {}]
  %s10 = sld [smem:[#allocation0]]
  $region100: #{tpu_custom_call.1} parent=0
    _
  %s12 = ssub.s32 1, %s10
  %s13 = scalar_select 0, %s12, %s10
  $region1: #{tpu_custom_call.1} parent=0
    #allocation5 [shape = 'u8[65536]{0}', space=vmem, size = 0x10000, scoped, tag = 'input window, operand 0, single buffered']
    #allocation6 [shape = 's32[2]{0}', space=sflag, size = 0x8, scoped, tag = 'scoped memory for tpu_custom_call.1']
    #allocation7 [shape = 's32[2]{0}', space=sflag, size = 0x8, scoped, tag = 'scoped memory for tpu_custom_call.1']
    #allocation8 [shape = 'u8[131072]{0}', space=vmem, size = 0x20000, scoped, tag = 'input window, operand 1']
    #allocation9 [shape = 's32[2]{0}', space=sflag, size = 0x8, scoped, tag = 'scoped memory for tpu_custom_call.1']
    #allocation10 [shape = 'u8[131072]{0}', space=vmem, size = 0x20000, scoped, tag = 'input window, operand 2']
    #allocation11 [shape = 'u8[65536]{0}', space=vmem, size = 0x10000, scoped, tag = 'input window, operand 3, single buffered']
    #allocation12 [shape = 's32[1]{0}', space=sflag, size = 0x4, scoped, tag = 'scoped memory for tpu_custom_call.1']
    #allocation13 [shape = 'u8[32768]{0}', space=vmem, size = 0x8000, scoped, tag = 'input window, operand 5, single buffered']
    #allocation14 [shape = 'u8[32768]{0}', space=vmem, size = 0x8000, scoped, tag = 'input window, operand 7, single buffered']
    #allocation15 [shape = 's32[1]{0}', space=sflag, size = 0x4, scoped, tag = 'scoped memory for tpu_custom_call.1']
    #allocation16 [shape = 'u8[212992]{0}', space=vmem, size = 0x34000, scoped, tag = 'output window, operand 0']
    %14 = vsyncpa [#allocation6], 0
    %15 = vsyncpa [#allocation9], 0
    %s16 = scalar_lea.sflag [#allocation9], 1
    %17 = vsyncpa %s16, 0
    %18 = vsyncpa [#allocation12], 0
    %19 = vsyncpa [#allocation15], 0
    %20 = vsyncpa [#allocation7], 0
    %s21 = scalar_lea.sflag [#allocation7], 1
    %22 = vsyncpa %s21, 0
    loop: start=0, step=1, limit=6
    $region2: #{tpu_custom_call.1} parent=1 // loop_pre_header
      _
    $region3: #{tpu_custom_call.1} parent=1 // loop_header
      %s24 = sphi 0, %s28
      %p25 = scmp.ge.s32.totalorder %s24, 6
      %s32 = sphi 0, %s32
      %s34 = sphi 0, %s32
      %s35 = sphi 0, %s34
      %s49 = sphi 0, %s35
      %s55 = sphi 0, %s57
      %s58 = sphi 0, %s55
      %s59 = sphi 0, %s58
      %s75 = sphi 0, %s59
      %s81 = sphi 0, %s83
      %s84 = sphi 0, %s81
      %s85 = sphi 0, %s84
      %s101 = sphi 0, %s85
      %s105 = sphi 0, %s105
      %s107 = sphi 0, %s105
      %s108 = sphi 0, %s107
      %s122 = sphi 0, %s108
      %s126 = sphi 0, %s126
      %s128 = sphi 0, %s126
      %s129 = sphi 0, %s128
      %s143 = sphi 0, %s129
      %s147 = sphi 0, %s147
      %s149 = sphi 0, %s147
      %s150 = sphi 0, %s149
      %s164 = sphi 0, %s150
      %s168 = sphi 0, %s168
      %s170 = sphi 0, %s168
      %s171 = sphi 0, %s170
      %s185 = sphi 0, %s171
      %s189 = sphi 0, %s189
      %s191 = sphi 0, %s189
      %s192 = sphi 0, %s191
      %s206 = sphi 0, %s192
      %s210 = sphi 0, %s210
      %s212 = sphi 0, %s210
      %s213 = sphi 0, %s212
      %s227 = sphi 0, %s213
      %s233 = sphi 0, %s235
      %s236 = sphi 0, %s233
      %s237 = sphi 0, %s236
      %s253 = sphi 0, %s237
    $region4: #{tpu_custom_call.1} parent=1 // loop_header_branch
      %27 = sbr.rel (%p25) target = $region8
    $region5: #{tpu_custom_call.1} parent=1 // loop_body
      %s29 = ssub.s32 %s24, 1
      %s30 = ssub.s32 %s24, 2
      %s31 = sadd.s32 %s24, 1
      %s33 = sadd.s32 %s32, 1
      %p36 = scmp.eq.s32.totalorder %s24, 3
      %p37 = scmp.ne.s32.totalorder %s32, %s34
      %p38 = scmp.eq.s32.totalorder %s24, 0
      %p39 = por %p37, %p38
      %p40 = scmp.ne.s32.totalorder %s32, %s34
      %p41 = scmp.eq.s32.totalorder %s29, 3
      %p42 = por %p40, %p41
      %p43 = scmp.ne.s32.totalorder %s34, %s35
      %p44 = scmp.eq.s32.totalorder %s29, 0
      %p45 = por %p43, %p44
      %p46 = scmp.ne.s32.totalorder %s34, %s35
      %p47 = scmp.eq.s32.totalorder %s30, 3
      %p48 = por %p46, %p47
      %p50 = scmp.ne.s32.totalorder %s35, %s49
      %p51 = scmp.eq.s32.totalorder %s30, 0
      %p52 = por %p50, %p51
      %s53 = ssub.s32 %s24, %s31
      %p54 = scmp.eq.s32.totalorder %s53, 0
      %s56 = sadd.s32 %s55, 1
      %s57 = scalar_select %p54, %s55, %s56
      %p60 = pneg %p54
      %p61 = scmp.eq.s32.totalorder %s24, 3
      %p62 = por %p60, %p61
      %p63 = scmp.ne.s32.totalorder %s55, %s58
      %p64 = scmp.eq.s32.totalorder %s24, 0
      %p65 = por %p63, %p64
      %p66 = scmp.ne.s32.totalorder %s55, %s58
      %p67 = scmp.eq.s32.totalorder %s29, 3
      %p68 = por %p66, %p67
      %p69 = scmp.ne.s32.totalorder %s58, %s59
      %p70 = scmp.eq.s32.totalorder %s29, 0
      %p71 = por %p69, %p70
      %p72 = scmp.ne.s32.totalorder %s58, %s59
      %p73 = scmp.eq.s32.totalorder %s30, 3
      %p74 = por %p72, %p73
      %p76 = scmp.ne.s32.totalorder %s59, %s75
      %p77 = scmp.eq.s32.totalorder %s30, 0
      %p78 = por %p76, %p77
      %s79 = ssub.s32 %s24, %s31
      %p80 = scmp.eq.s32.totalorder %s79, 0
      %s82 = sadd.s32 %s81, 1
      %s83 = scalar_select %p80, %s81, %s82
      %p86 = pneg %p80
      %p87 = scmp.eq.s32.totalorder %s24, 3
      %p88 = por %p86, %p87
      %p89 = scmp.ne.s32.totalorder %s81, %s84
      %p90 = scmp.eq.s32.totalorder %s24, 0
      %p91 = por %p89, %p90
      %p92 = scmp.ne.s32.totalorder %s81, %s84
      %p93 = scmp.eq.s32.totalorder %s29, 3
      %p94 = por %p92, %p93
      %p95 = scmp.ne.s32.totalorder %s84, %s85
      %p96 = scmp.eq.s32.totalorder %s29, 0
      %p97 = por %p95, %p96
      %p98 = scmp.ne.s32.totalorder %s84, %s85
      %p99 = scmp.eq.s32.totalorder %s30, 3
      %p100 = por %p98, %p99
      %p102 = scmp.ne.s32.totalorder %s85, %s101
      %p103 = scmp.eq.s32.totalorder %s30, 0
      %p104 = por %p102, %p103
      %s106 = sadd.s32 %s105, 1
      %p109 = scmp.eq.s32.totalorder %s24, 3
      %p110 = scmp.ne.s32.totalorder %s105, %s107
      %p111 = scmp.eq.s32.totalorder %s24, 0
      %p112 = por %p110, %p111
      %p113 = scmp.ne.s32.totalorder %s105, %s107
      %p114 = scmp.eq.s32.totalorder %s29, 3
      %p115 = por %p113, %p114
      %p116 = scmp.ne.s32.totalorder %s107, %s108
      %p117 = scmp.eq.s32.totalorder %s29, 0
      %p118 = por %p116, %p117
      %p119 = scmp.ne.s32.totalorder %s107, %s108
      %p120 = scmp.eq.s32.totalorder %s30, 3
      %p121 = por %p119, %p120
      %p123 = scmp.ne.s32.totalorder %s108, %s122
      %p124 = scmp.eq.s32.totalorder %s30, 0
      %p125 = por %p123, %p124
      %s127 = sadd.s32 %s126, 1
      %p130 = scmp.eq.s32.totalorder %s24, 3
      %p131 = scmp.ne.s32.totalorder %s126, %s128
      %p132 = scmp.eq.s32.totalorder %s24, 0
      %p133 = por %p131, %p132
      %p134 = scmp.ne.s32.totalorder %s126, %s128
      %p135 = scmp.eq.s32.totalorder %s29, 3
      %p136 = por %p134, %p135
      %p137 = scmp.ne.s32.totalorder %s128, %s129
      %p138 = scmp.eq.s32.totalorder %s29, 0
      %p139 = por %p137, %p138
      %p140 = scmp.ne.s32.totalorder %s128, %s129
      %p141 = scmp.eq.s32.totalorder %s30, 3
      %p142 = por %p140, %p141
      %p144 = scmp.ne.s32.totalorder %s129, %s143
      %p145 = scmp.eq.s32.totalorder %s30, 0
      %p146 = por %p144, %p145
      %s148 = sadd.s32 %s147, 1
      %p151 = scmp.eq.s32.totalorder %s24, 3
      %p152 = scmp.ne.s32.totalorder %s147, %s149
      %p153 = scmp.eq.s32.totalorder %s24, 0
      %p154 = por %p152, %p153
      %p155 = scmp.ne.s32.totalorder %s147, %s149
      %p156 = scmp.eq.s32.totalorder %s29, 3
      %p157 = por %p155, %p156
      %p158 = scmp.ne.s32.totalorder %s149, %s150
      %p159 = scmp.eq.s32.totalorder %s29, 0
      %p160 = por %p158, %p159
      %p161 = scmp.ne.s32.totalorder %s149, %s150
      %p162 = scmp.eq.s32.totalorder %s30, 3
      %p163 = por %p161, %p162
      %p165 = scmp.ne.s32.totalorder %s150, %s164
      %p166 = scmp.eq.s32.totalorder %s30, 0
      %p167 = por %p165, %p166
      %s169 = sadd.s32 %s168, 1
      %p172 = scmp.eq.s32.totalorder %s24, 3
      %p173 = scmp.ne.s32.totalorder %s168, %s170
      %p174 = scmp.eq.s32.totalorder %s24, 0
      %p175 = por %p173, %p174
      %p176 = scmp.ne.s32.totalorder %s168, %s170
      %p177 = scmp.eq.s32.totalorder %s29, 3
      %p178 = por %p176, %p177
      %p179 = scmp.ne.s32.totalorder %s170, %s171
      %p180 = scmp.eq.s32.totalorder %s29, 0
      %p181 = por %p179, %p180
      %p182 = scmp.ne.s32.totalorder %s170, %s171
      %p183 = scmp.eq.s32.totalorder %s30, 3
      %p184 = por %p182, %p183
      %p186 = scmp.ne.s32.totalorder %s171, %s185
      %p187 = scmp.eq.s32.totalorder %s30, 0
      %p188 = por %p186, %p187
      %s190 = sadd.s32 %s189, 1
      %p193 = scmp.eq.s32.totalorder %s24, 3
      %p194 = scmp.ne.s32.totalorder %s189, %s191
      %p195 = scmp.eq.s32.totalorder %s24, 0
      %p196 = por %p194, %p195
      %p197 = scmp.ne.s32.totalorder %s189, %s191
      %p198 = scmp.eq.s32.totalorder %s29, 3
      %p199 = por %p197, %p198
      %p200 = scmp.ne.s32.totalorder %s191, %s192
      %p201 = scmp.eq.s32.totalorder %s29, 0
      %p202 = por %p200, %p201
      %p203 = scmp.ne.s32.totalorder %s191, %s192
      %p204 = scmp.eq.s32.totalorder %s30, 3
      %p205 = por %p203, %p204
      %p207 = scmp.ne.s32.totalorder %s192, %s206
      %p208 = scmp.eq.s32.totalorder %s30, 0
      %p209 = por %p207, %p208
      %s211 = sadd.s32 %s210, 1
      %p214 = scmp.eq.s32.totalorder %s24, 3
      %p215 = scmp.ne.s32.totalorder %s210, %s212
      %p216 = scmp.eq.s32.totalorder %s24, 0
      %p217 = por %p215, %p216
      %p218 = scmp.ne.s32.totalorder %s210, %s212
      %p219 = scmp.eq.s32.totalorder %s29, 3
      %p220 = por %p218, %p219
      %p221 = scmp.ne.s32.totalorder %s212, %s213
      %p222 = scmp.eq.s32.totalorder %s29, 0
      %p223 = por %p221, %p222
      %p224 = scmp.ne.s32.totalorder %s212, %s213
      %p225 = scmp.eq.s32.totalorder %s30, 3
      %p226 = por %p224, %p225
      %p228 = scmp.ne.s32.totalorder %s213, %s227
      %p229 = scmp.eq.s32.totalorder %s30, 0
      %p230 = por %p228, %p229
      %s231 = ssub.s32 %s24, %s31
      %p232 = scmp.eq.s32.totalorder %s231, 0
      %s234 = sadd.s32 %s233, 1
      %s235 = scalar_select %p232, %s233, %s234
      %p238 = pneg %p232
      %p239 = scmp.eq.s32.totalorder %s24, 3
      %p240 = por %p238, %p239
      %p241 = scmp.ne.s32.totalorder %s233, %s236
      %p242 = scmp.eq.s32.totalorder %s24, 0
      %p243 = por %p241, %p242
      %p244 = scmp.ne.s32.totalorder %s233, %s236
      %p245 = scmp.eq.s32.totalorder %s29, 3
      %p246 = por %p244, %p245
      %p247 = scmp.ne.s32.totalorder %s236, %s237
      %p248 = scmp.eq.s32.totalorder %s29, 0
      %p249 = por %p247, %p248
      %p250 = scmp.ne.s32.totalorder %s236, %s237
      %p251 = scmp.eq.s32.totalorder %s30, 3
      %p252 = por %p250, %p251
      %p254 = scmp.ne.s32.totalorder %s237, %s253
      %p255 = scmp.eq.s32.totalorder %s30, 0
      %p256 = por %p254, %p255
      %p257 = scmp.le.s32.totalorder 1, %s24
      %p258 = scmp.lt.s32.totalorder %s24, 5
      %p259 = pnand %p257, %p258
      %p260 = pneg %p259
      // Predicated region
      $region9: #{tpu_custom_call.1} parent=5 // pred_check
        _
      $region10: #{tpu_custom_call.1} parent=5 // pred_check_branch
        %262 = sbr.rel (%p259) target = $region12
      $region11: #{tpu_custom_call.1} parent=5 // pred_region
        %s263 = ssub.s32 %s24, 1
        // Predicated region
        $region13: #{tpu_custom_call.1} parent=11 // pred_check
          %p264 = pneg %p45
        $region14: #{tpu_custom_call.1} parent=11 // pred_check_branch
          %266 = sbr.rel (%p264) target = $region16
        $region15: #{tpu_custom_call.1} parent=11 // pred_region
          %s268 = ssub.s32 2048, 2048
          %269 = vsyncadd [#allocation6], %s268
          %s270 = sshll.u32 [#allocation5], 4
          %s271 = int_to_ptr.vmem [resolvable:$true] %s270
          %276 = dma.hbm_to_vmem [thread:$0]  %s0, 2048, %s271, [#allocation6], 128, 128, 8
        $region16: #{tpu_custom_call.1} parent=11 // pred_fallthru
          _
        // Predicated region
        $region17: #{tpu_custom_call.1} parent=11 // pred_check
          %p277 = pneg %p118
        $region18: #{tpu_custom_call.1} parent=11 // pred_check_branch
          %279 = sbr.rel (%p277) target = $region20
        $region19: #{tpu_custom_call.1} parent=11 // pred_region
          %s281 = ssub.s32 2048, 2048
          %282 = vsyncadd [#allocation12], %s281
          %s283 = sshll.u32 [#allocation11], 4
          %s284 = int_to_ptr.vmem [resolvable:$true] %s283
          %289 = dma.hbm_to_vmem [thread:$0]  %s3, 2048, %s284, [#allocation12], 128, 128, 8
        $region20: #{tpu_custom_call.1} parent=11 // pred_fallthru
          _
        // Predicated region
        $region21: #{tpu_custom_call.1} parent=11 // pred_check
          %p290 = pneg %p139
        $region22: #{tpu_custom_call.1} parent=11 // pred_check_branch
          %292 = sbr.rel (%p290) target = $region24
        $region23: #{tpu_custom_call.1} parent=11 // pred_region
          _
        $region24: #{tpu_custom_call.1} parent=11 // pred_fallthru
          _
        // Predicated region
        $region25: #{tpu_custom_call.1} parent=11 // pred_check
          %p293 = pneg %p160
        $region26: #{tpu_custom_call.1} parent=11 // pred_check_branch
          %295 = sbr.rel (%p293) target = $region28
        $region27: #{tpu_custom_call.1} parent=11 // pred_region
          %s297 = ssub.s32 1024, 1024
          %298 = vsyncadd [#allocation12], %s297
          %s299 = sshll.u32 [#allocation13], 4
          %s300 = int_to_ptr.vmem [resolvable:$true] %s299
          %305 = dma.hbm_to_vmem [thread:$0]  %s5, 1024, %s300, [#allocation12], 64, 64, 4
        $region28: #{tpu_custom_call.1} parent=11 // pred_fallthru
          _
        // Predicated region
        $region29: #{tpu_custom_call.1} parent=11 // pred_check
          %p306 = pneg %p181
        $region30: #{tpu_custom_call.1} parent=11 // pred_check_branch
          %308 = sbr.rel (%p306) target = $region32
        $region31: #{tpu_custom_call.1} parent=11 // pred_region
          _
        $region32: #{tpu_custom_call.1} parent=11 // pred_fallthru
          _
        // Predicated region
        $region33: #{tpu_custom_call.1} parent=11 // pred_check
          %p309 = pneg %p202
        $region34: #{tpu_custom_call.1} parent=11 // pred_check_branch
          %311 = sbr.rel (%p309) target = $region36
        $region35: #{tpu_custom_call.1} parent=11 // pred_region
          %s313 = ssub.s32 1024, 1024
          %314 = vsyncadd [#allocation15], %s313
          %s315 = sshll.u32 [#allocation14], 4
          %s316 = int_to_ptr.vmem [resolvable:$true] %s315
          %321 = dma.hbm_to_vmem [thread:$0]  %s7, 1024, %s316, [#allocation15], 64, 64, 4
        $region36: #{tpu_custom_call.1} parent=11 // pred_fallthru
          _
        // Predicated region
        $region37: #{tpu_custom_call.1} parent=11 // pred_check
          %p322 = pneg %p223
        $region38: #{tpu_custom_call.1} parent=11 // pred_check_branch
          %324 = sbr.rel (%p322) target = $region40
        $region39: #{tpu_custom_call.1} parent=11 // pred_region
          _
        $region40: #{tpu_custom_call.1} parent=11 // pred_fallthru
          _
      $region12: #{tpu_custom_call.1} parent=5 // pred_fallthru
        _
      %p325 = scmp.lt.s32.totalorder %s24, 4
      // Predicated region
      $region41: #{tpu_custom_call.1} parent=5 // pred_check
        %p326 = pneg %p325
      $region42: #{tpu_custom_call.1} parent=5 // pred_check_branch
        %328 = sbr.rel (%p326) target = $region44
      $region43: #{tpu_custom_call.1} parent=5 // pred_region
        // Predicated region
        $region45: #{tpu_custom_call.1} parent=43 // pred_check
          %p329 = pneg %p65
        $region46: #{tpu_custom_call.1} parent=43 // pred_check_branch
          %331 = sbr.rel (%p329) target = $region48
        $region47: #{tpu_custom_call.1} parent=43 // pred_region
          %s332 = sand.u32 %s24, 1
          %s333 = scalar_lea.sflag [#allocation9], %s332
          %s334 = sand.u32 %s55, 1
          %s335 = smul.addr %s334, 128
          %s336 = scalar_lea.vmem [#allocation8], %s335
          %s337 = smul.u32 2, %s24
          %s339 = ssub.s32 2048, 2048
          %340 = vsyncadd %s333, %s339
          %s341 = smul.addr %s337, 16
          %s342 = smul.addr %s341, 64
          %s343 = scalar_lea.hbm %s1, %s342
          %s344 = sshll.u32 %s336, 4
          %s345 = int_to_ptr.vmem [resolvable:$true] %s344
          %350 = dma.hbm_to_vmem [thread:$0]  %s343, 2048, %s345, %s333, 64, 64, 4
        $region48: #{tpu_custom_call.1} parent=43 // pred_fallthru
          _
        // Predicated region
        $region49: #{tpu_custom_call.1} parent=43 // pred_check
          %p351 = pneg %p91
        $region50: #{tpu_custom_call.1} parent=43 // pred_check_branch
          %353 = sbr.rel (%p351) target = $region52
        $region51: #{tpu_custom_call.1} parent=43 // pred_region
          %s354 = sand.u32 %s24, 1
          %s355 = scalar_lea.sflag [#allocation9], %s354
          %s356 = sand.u32 %s81, 1
          %s357 = smul.addr %s356, 128
          %s358 = scalar_lea.vmem [#allocation10], %s357
          %s359 = smul.u32 2, %s24
          %s361 = ssub.s32 2048, 2048
          %362 = vsyncadd %s355, %s361
          %s363 = smul.addr %s359, 16
          %s364 = smul.addr %s363, 64
          %s365 = scalar_lea.hbm %s2, %s364
          %s366 = sshll.u32 %s358, 4
          %s367 = int_to_ptr.vmem [resolvable:$true] %s366
          %372 = dma.hbm_to_vmem [thread:$0]  %s365, 2048, %s367, %s355, 64, 64, 4
        $region52: #{tpu_custom_call.1} parent=43 // pred_fallthru
          _
      $region44: #{tpu_custom_call.1} parent=5 // pred_fallthru
        _
      %p373 = scmp.le.s32.totalorder 1, %s24
      %p374 = scmp.lt.s32.totalorder %s24, 5
      %p375 = pnand %p373, %p374
      %p376 = pneg %p375
      // Predicated region
      $region53: #{tpu_custom_call.1} parent=5 // pred_check
        _
      $region54: #{tpu_custom_call.1} parent=5 // pred_check_branch
        %378 = sbr.rel (%p375) target = $region56
      $region55: #{tpu_custom_call.1} parent=5 // pred_region
        %s379 = ssub.s32 %s24, 1
        // Predicated region
        $region57: #{tpu_custom_call.1} parent=55 // pred_check
          %p380 = pneg %p45
        $region58: #{tpu_custom_call.1} parent=55 // pred_check_branch
          %382 = sbr.rel (%p380) target = $region60
        $region59: #{tpu_custom_call.1} parent=55 // pred_region
          %383 = dma.done [#allocation6], 2048
        $region60: #{tpu_custom_call.1} parent=55 // pred_fallthru
          _
        %s384 = sand.u32 %s29, 1
        %s385 = scalar_lea.sflag [#allocation9], %s384
        %s386 = sand.u32 %s58, 1
        %s387 = smul.addr %s386, 128
        %s388 = scalar_lea.vmem [#allocation8], %s387
        // Predicated region
        $region61: #{tpu_custom_call.1} parent=55 // pred_check
          %p389 = pneg %p71
        $region62: #{tpu_custom_call.1} parent=55 // pred_check_branch
          %391 = sbr.rel (%p389) target = $region64
        $region63: #{tpu_custom_call.1} parent=55 // pred_region
          %392 = dma.done %s385, 2048
        $region64: #{tpu_custom_call.1} parent=55 // pred_fallthru
          _
        %s393 = sand.u32 %s29, 1
        %s394 = scalar_lea.sflag [#allocation9], %s393
        %s395 = sand.u32 %s84, 1
        %s396 = smul.addr %s395, 128
        %s397 = scalar_lea.vmem [#allocation10], %s396
        // Predicated region
        $region65: #{tpu_custom_call.1} parent=55 // pred_check
          %p398 = pneg %p97
        $region66: #{tpu_custom_call.1} parent=55 // pred_check_branch
          %400 = sbr.rel (%p398) target = $region68
        $region67: #{tpu_custom_call.1} parent=55 // pred_region
          %401 = dma.done %s394, 2048
        $region68: #{tpu_custom_call.1} parent=55 // pred_fallthru
          _
        // Predicated region
        $region69: #{tpu_custom_call.1} parent=55 // pred_check
          %p402 = pneg %p118
        $region70: #{tpu_custom_call.1} parent=55 // pred_check_branch
          %404 = sbr.rel (%p402) target = $region72
        $region71: #{tpu_custom_call.1} parent=55 // pred_region
          %405 = dma.done [#allocation12], 2048
        $region72: #{tpu_custom_call.1} parent=55 // pred_fallthru
          _
        // Predicated region
        $region73: #{tpu_custom_call.1} parent=55 // pred_check
          %p406 = pneg %p160
        $region74: #{tpu_custom_call.1} parent=55 // pred_check_branch
          %408 = sbr.rel (%p406) target = $region76
        $region75: #{tpu_custom_call.1} parent=55 // pred_region
          %409 = dma.done [#allocation12], 1024
        $region76: #{tpu_custom_call.1} parent=55 // pred_fallthru
          _
        // Predicated region
        $region77: #{tpu_custom_call.1} parent=55 // pred_check
          %p410 = pneg %p202
        $region78: #{tpu_custom_call.1} parent=55 // pred_check_branch
          %412 = sbr.rel (%p410) target = $region80
        $region79: #{tpu_custom_call.1} parent=55 // pred_region
          %413 = dma.done [#allocation15], 1024
        $region80: #{tpu_custom_call.1} parent=55 // pred_fallthru
          _
        %p414 = pneg %p45
        %p415 = pneg %p42
        %s416 = sand.u32 %s29, 1
        %s417 = scalar_lea.sflag [#allocation9], %s416
        %s418 = sand.u32 %s58, 1
        %s419 = smul.addr %s418, 128
        %s420 = scalar_lea.vmem [#allocation8], %s419
        %p421 = pneg %p71
        %p422 = pneg %p68
        %s423 = sand.u32 %s29, 1
        %s424 = scalar_lea.sflag [#allocation9], %s423
        %s425 = sand.u32 %s84, 1
        %s426 = smul.addr %s425, 128
        %s427 = scalar_lea.vmem [#allocation10], %s426
        %p428 = pneg %p97
        %p429 = pneg %p94
        %p430 = pneg %p118
        %p431 = pneg %p115
        %p432 = pneg %p139
        %p433 = pneg %p136
        %p434 = pneg %p160
        %p435 = pneg %p157
        %p436 = pneg %p181
        %p437 = pneg %p178
        %p438 = pneg %p202
        %p439 = pneg %p199
        %p440 = pneg %p223
        %p441 = pneg %p220
        %p442 = pneg %p249
        %p443 = pneg %p246
        %s444 = sand.u32 %s236, 1
        %s445 = scalar_lea.sflag [#allocation7], %s444
        %s446 = sand.u32 %s236, 1
        %s447 = smul.addr %s446, 208
        %s448 = scalar_lea.vmem [#allocation16], %s447
        %s449 = smul.u32 2, %s29
        %s450 = smul.u32 2, %s29
        %s451 = smul.u32 2, %s29
        %v453 = vld [vmem:[#allocation11] sm:$0xff]
        %v454 = vld [vmem:[#allocation11 + $0x8] sm:$0xff]
        %v455 = vld [vmem:[#allocation11 + $0x10] sm:$0xff]
        %v456 = vld [vmem:[#allocation11 + $0x18] sm:$0xff]
        %v457 = vld [vmem:[#allocation11 + $0x20] sm:$0xff]
        %v458 = vld [vmem:[#allocation11 + $0x28] sm:$0xff]
        %v459 = vld [vmem:[#allocation11 + $0x30] sm:$0xff]
        %v460 = vld [vmem:[#allocation11 + $0x38] sm:$0xff]
        %v461 = vld [vmem:[#allocation11 + $0x40] sm:$0xff]
        %v462 = vld [vmem:[#allocation11 + $0x48] sm:$0xff]
        %v463 = vld [vmem:[#allocation11 + $0x50] sm:$0xff]
        %v464 = vld [vmem:[#allocation11 + $0x58] sm:$0xff]
        %v465 = vld [vmem:[#allocation11 + $0x60] sm:$0xff]
        %v466 = vld [vmem:[#allocation11 + $0x68] sm:$0xff]
        %v467 = vld [vmem:[#allocation11 + $0x70] sm:$0xff]
        %v468 = vld [vmem:[#allocation11 + $0x78] sm:$0xff]
        %v469 = vld [vmem:[#allocation13] sm:$0xf]
        %v470 = vld [vmem:[#allocation13 + $0x4] sm:$0xf]
        %v471 = vld [vmem:[#allocation13 + $0x8] sm:$0xf]
        %v472 = vld [vmem:[#allocation13 + $0xc] sm:$0xf]
        %v473 = vld [vmem:[#allocation13 + $0x10] sm:$0xf]
        %v474 = vld [vmem:[#allocation13 + $0x14] sm:$0xf]
        %v475 = vld [vmem:[#allocation13 + $0x18] sm:$0xf]
        %v476 = vld [vmem:[#allocation13 + $0x1c] sm:$0xf]
        %v477 = vld [vmem:[#allocation13 + $0x20] sm:$0xf]
        %v478 = vld [vmem:[#allocation13 + $0x24] sm:$0xf]
        %v479 = vld [vmem:[#allocation13 + $0x28] sm:$0xf]
        %v480 = vld [vmem:[#allocation13 + $0x2c] sm:$0xf]
        %v481 = vld [vmem:[#allocation13 + $0x30] sm:$0xf]
        %v482 = vld [vmem:[#allocation13 + $0x34] sm:$0xf]
        %v483 = vld [vmem:[#allocation13 + $0x38] sm:$0xf]
        %v484 = vld [vmem:[#allocation13 + $0x3c] sm:$0xf]
        %v485 = vld [vmem:[#allocation14] sm:$0xf]
        %v486 = vld [vmem:[#allocation14 + $0x4] sm:$0xf]
        %v487 = vld [vmem:[#allocation14 + $0x8] sm:$0xf]
        %v488 = vld [vmem:[#allocation14 + $0xc] sm:$0xf]
        %v489 = vld [vmem:[#allocation14 + $0x10] sm:$0xf]
        %v490 = vld [vmem:[#allocation14 + $0x14] sm:$0xf]
        %v491 = vld [vmem:[#allocation14 + $0x18] sm:$0xf]
        %v492 = vld [vmem:[#allocation14 + $0x1c] sm:$0xf]
        %v493 = vld [vmem:[#allocation14 + $0x20] sm:$0xf]
        %v494 = vld [vmem:[#allocation14 + $0x24] sm:$0xf]
        %v495 = vld [vmem:[#allocation14 + $0x28] sm:$0xf]
        %v496 = vld [vmem:[#allocation14 + $0x2c] sm:$0xf]
        %v497 = vld [vmem:[#allocation14 + $0x30] sm:$0xf]
        %v498 = vld [vmem:[#allocation14 + $0x34] sm:$0xf]
        %v499 = vld [vmem:[#allocation14 + $0x38] sm:$0xf]
        %v500 = vld [vmem:[#allocation14 + $0x3c] sm:$0xf]
        %v501 = vld [vmem:[%s4] sm:$0x3]
        %v502 = vld [vmem:[%s6] sm:$0x1]
        %v503 = vld [vmem:[%s8] sm:$0x1]
        %v504 = vld [vmem:[#allocation5] sm:$0xff]
        %v505 = vld [vmem:[#allocation5 + $0x8] sm:$0xff]
        %v506 = vld [vmem:[#allocation5 + $0x10] sm:$0xff]
        %v507 = vld [vmem:[#allocation5 + $0x18] sm:$0xff]
        %v508 = vld [vmem:[#allocation5 + $0x20] sm:$0xff]
        %v509 = vld [vmem:[#allocation5 + $0x28] sm:$0xff]
        %v510 = vld [vmem:[#allocation5 + $0x30] sm:$0xff]
        %v511 = vld [vmem:[#allocation5 + $0x38] sm:$0xff]
        %v512 = vld [vmem:[#allocation5 + $0x40] sm:$0xff]
        %v513 = vld [vmem:[#allocation5 + $0x48] sm:$0xff]
        %v514 = vld [vmem:[#allocation5 + $0x50] sm:$0xff]
        %v515 = vld [vmem:[#allocation5 + $0x58] sm:$0xff]
        %v516 = vld [vmem:[#allocation5 + $0x60] sm:$0xff]
        %v517 = vld [vmem:[#allocation5 + $0x68] sm:$0xff]
        %v518 = vld [vmem:[#allocation5 + $0x70] sm:$0xff]
        %v519 = vld [vmem:[#allocation5 + $0x78] sm:$0xff]
        %v520 = vld [vmem:[%s388] sm:$0xf]
        %v521 = vld [vmem:[%s388 + $0x4] sm:$0xf]
        %v522 = vld [vmem:[%s388 + $0x8] sm:$0xf]
        %v523 = vld [vmem:[%s388 + $0xc] sm:$0xf]
        %v524 = vld [vmem:[%s388 + $0x10] sm:$0xf]
        %v525 = vld [vmem:[%s388 + $0x14] sm:$0xf]
        %v526 = vld [vmem:[%s388 + $0x18] sm:$0xf]
        %v527 = vld [vmem:[%s388 + $0x1c] sm:$0xf]
        %v528 = vld [vmem:[%s388 + $0x20] sm:$0xf]
        %v529 = vld [vmem:[%s388 + $0x24] sm:$0xf]
        %v530 = vld [vmem:[%s388 + $0x28] sm:$0xf]
        %v531 = vld [vmem:[%s388 + $0x2c] sm:$0xf]
        %v532 = vld [vmem:[%s388 + $0x30] sm:$0xf]
        %v533 = vld [vmem:[%s388 + $0x34] sm:$0xf]
        %v534 = vld [vmem:[%s388 + $0x38] sm:$0xf]
        %v535 = vld [vmem:[%s388 + $0x3c] sm:$0xf]
        %v536 = vld [vmem:[%s388 + $0x40] sm:$0xf]
        %v537 = vld [vmem:[%s388 + $0x44] sm:$0xf]
        %v538 = vld [vmem:[%s388 + $0x48] sm:$0xf]
        %v539 = vld [vmem:[%s388 + $0x4c] sm:$0xf]
        %v540 = vld [vmem:[%s388 + $0x50] sm:$0xf]
        %v541 = vld [vmem:[%s388 + $0x54] sm:$0xf]
        %v542 = vld [vmem:[%s388 + $0x58] sm:$0xf]
        %v543 = vld [vmem:[%s388 + $0x5c] sm:$0xf]
        %v544 = vld [vmem:[%s388 + $0x60] sm:$0xf]
        %v545 = vld [vmem:[%s388 + $0x64] sm:$0xf]
        %v546 = vld [vmem:[%s388 + $0x68] sm:$0xf]
        %v547 = vld [vmem:[%s388 + $0x6c] sm:$0xf]
        %v548 = vld [vmem:[%s388 + $0x70] sm:$0xf]
        %v549 = vld [vmem:[%s388 + $0x74] sm:$0xf]
        %v550 = vld [vmem:[%s388 + $0x78] sm:$0xf]
        %v551 = vld [vmem:[%s388 + $0x7c] sm:$0xf]
        %v552 = vld [vmem:[%s397] sm:$0xf]
        %v553 = vld [vmem:[%s397 + $0x4] sm:$0xf]
        %v554 = vld [vmem:[%s397 + $0x8] sm:$0xf]
        %v555 = vld [vmem:[%s397 + $0xc] sm:$0xf]
        %v556 = vld [vmem:[%s397 + $0x10] sm:$0xf]
        %v557 = vld [vmem:[%s397 + $0x14] sm:$0xf]
        %v558 = vld [vmem:[%s397 + $0x18] sm:$0xf]
        %v559 = vld [vmem:[%s397 + $0x1c] sm:$0xf]
        %v560 = vld [vmem:[%s397 + $0x20] sm:$0xf]
        %v561 = vld [vmem:[%s397 + $0x24] sm:$0xf]
        %v562 = vld [vmem:[%s397 + $0x28] sm:$0xf]
        %v563 = vld [vmem:[%s397 + $0x2c] sm:$0xf]
        %v564 = vld [vmem:[%s397 + $0x30] sm:$0xf]
        %v565 = vld [vmem:[%s397 + $0x34] sm:$0xf]
        %v566 = vld [vmem:[%s397 + $0x38] sm:$0xf]
        %v567 = vld [vmem:[%s397 + $0x3c] sm:$0xf]
        %v568 = vld [vmem:[%s397 + $0x40] sm:$0xf]
        %v569 = vld [vmem:[%s397 + $0x44] sm:$0xf]
        %v570 = vld [vmem:[%s397 + $0x48] sm:$0xf]
        %v571 = vld [vmem:[%s397 + $0x4c] sm:$0xf]
        %v572 = vld [vmem:[%s397 + $0x50] sm:$0xf]
        %v573 = vld [vmem:[%s397 + $0x54] sm:$0xf]
        %v574 = vld [vmem:[%s397 + $0x58] sm:$0xf]
        %v575 = vld [vmem:[%s397 + $0x5c] sm:$0xf]
        %v576 = vld [vmem:[%s397 + $0x60] sm:$0xf]
        %v577 = vld [vmem:[%s397 + $0x64] sm:$0xf]
        %v578 = vld [vmem:[%s397 + $0x68] sm:$0xf]
        %v579 = vld [vmem:[%s397 + $0x6c] sm:$0xf]
        %v580 = vld [vmem:[%s397 + $0x70] sm:$0xf]
        %v581 = vld [vmem:[%s397 + $0x74] sm:$0xf]
        %v582 = vld [vmem:[%s397 + $0x78] sm:$0xf]
        %v583 = vld [vmem:[%s397 + $0x7c] sm:$0xf]
        %v585 = vlaneseq
        %v586 = vshrl.u32 %v585, 7
        %v587 = vsub.s32 0, %v586
        %v588 = vrot.slane %v501, %v587
        %v589 = vlaneseq
        %v590 = vshrl.u32 %v589, 7
        %v591 = vsub.s32 1, %v590
        %v592 = vrot.slane %v501, %v591
        %v627 = vunpack.c.l.b16 %v520
        %v628 = vunpack.c.l.b16 %v521
        %v629 = vunpack.c.l.b16 %v522
        %v630 = vunpack.c.l.b16 %v523
        %v631 = vunpack.c.l.b16 %v524
        %v632 = vunpack.c.l.b16 %v525
        %v633 = vunpack.c.l.b16 %v526
        %v634 = vunpack.c.l.b16 %v527
        %v635 = vunpack.c.l.b16 %v528
        %v636 = vunpack.c.l.b16 %v529
        %v637 = vunpack.c.l.b16 %v530
        %v638 = vunpack.c.l.b16 %v531
        %v639 = vunpack.c.l.b16 %v532
        %v640 = vunpack.c.l.b16 %v533
        %v641 = vunpack.c.l.b16 %v534
        %v642 = vunpack.c.l.b16 %v535
        %v643 = vunpack.c.l.b16 %v536
        %v644 = vunpack.c.l.b16 %v537
        %v645 = vunpack.c.l.b16 %v538
        %v646 = vunpack.c.l.b16 %v539
        %v647 = vunpack.c.l.b16 %v540
        %v648 = vunpack.c.l.b16 %v541
        %v649 = vunpack.c.l.b16 %v542
        %v650 = vunpack.c.l.b16 %v543
        %v651 = vunpack.c.l.b16 %v544
        %v652 = vunpack.c.l.b16 %v545
        %v653 = vunpack.c.l.b16 %v546
        %v654 = vunpack.c.l.b16 %v547
        %v655 = vunpack.c.l.b16 %v548
        %v656 = vunpack.c.l.b16 %v549
        %v657 = vunpack.c.l.b16 %v550
        %v658 = vunpack.c.l.b16 %v551
        %v659 = vpack.c.b16 %v628, %v627
        %v660 = vpack.c.b16 %v630, %v629
        %v661 = vpack.c.b16 %v632, %v631
        %v662 = vpack.c.b16 %v634, %v633
        %v663 = vpack.c.b16 %v636, %v635
        %v664 = vpack.c.b16 %v638, %v637
        %v665 = vpack.c.b16 %v640, %v639
        %v666 = vpack.c.b16 %v642, %v641
        %v667 = vpack.c.b16 %v644, %v643
        %v668 = vpack.c.b16 %v646, %v645
        %v669 = vpack.c.b16 %v648, %v647
        %v670 = vpack.c.b16 %v650, %v649
        %v671 = vpack.c.b16 %v652, %v651
        %v672 = vpack.c.b16 %v654, %v653
        %v673 = vpack.c.b16 %v656, %v655
        %v674 = vpack.c.b16 %v658, %v657
        %v707 = vunpack.c.l.b16 %v453
        %v708 = vunpack.c.h.b16 %v453
        %v709 = vunpack.c.l.b16 %v454
        %v710 = vunpack.c.h.b16 %v454
        %v711 = vunpack.c.l.b16 %v455
        %v712 = vunpack.c.h.b16 %v455
        %v713 = vunpack.c.l.b16 %v456
        %v714 = vunpack.c.h.b16 %v456
        %v715 = vunpack.c.l.b16 %v457
        %v716 = vunpack.c.h.b16 %v457
        %v717 = vunpack.c.l.b16 %v458
        %v718 = vunpack.c.h.b16 %v458
        %v719 = vunpack.c.l.b16 %v459
        %v720 = vunpack.c.h.b16 %v459
        %v721 = vunpack.c.l.b16 %v460
        %v722 = vunpack.c.h.b16 %v460
        %v723 = vunpack.c.l.b16 %v461
        %v724 = vunpack.c.h.b16 %v461
        %v725 = vunpack.c.l.b16 %v462
        %v726 = vunpack.c.h.b16 %v462
        %v727 = vunpack.c.l.b16 %v463
        %v728 = vunpack.c.h.b16 %v463
        %v729 = vunpack.c.l.b16 %v464
        %v730 = vunpack.c.h.b16 %v464
        %v731 = vunpack.c.l.b16 %v465
        %v732 = vunpack.c.h.b16 %v465
        %v733 = vunpack.c.l.b16 %v466
        %v734 = vunpack.c.h.b16 %v466
        %v735 = vunpack.c.l.b16 %v467
        %v736 = vunpack.c.h.b16 %v467
        %v737 = vunpack.c.l.b16 %v468
        %v738 = vunpack.c.h.b16 %v468
        %v739 = vpack.c.b16 %v709, %v707
        %v740 = vpack.c.b16 %v710, %v708
        %v741 = vpack.c.b16 %v713, %v711
        %v742 = vpack.c.b16 %v714, %v712
        %v743 = vpack.c.b16 %v717, %v715
        %v744 = vpack.c.b16 %v718, %v716
        %v745 = vpack.c.b16 %v721, %v719
        %v746 = vpack.c.b16 %v722, %v720
        %v747 = vpack.c.b16 %v725, %v723
        %v748 = vpack.c.b16 %v726, %v724
        %v749 = vpack.c.b16 %v729, %v727
        %v750 = vpack.c.b16 %v730, %v728
        %v751 = vpack.c.b16 %v733, %v731
        %v752 = vpack.c.b16 %v734, %v732
        %v753 = vpack.c.b16 %v737, %v735
        %v754 = vpack.c.b16 %v738, %v736
        %771 = vmatprep.subr.bf16.mxu0 %v754
        %772 = vmatpush1.bf16.msra.mxu0 %v753
        %773 = vmatprep.subr.bf16.mxu0 %v752
        %774 = vmatpush1.bf16.msra.mxu0 %v751
        %775 = vmatprep.subr.bf16.mxu0 %v750
        %776 = vmatpush1.bf16.msra.mxu0 %v749
        %777 = vmatprep.subr.bf16.mxu0 %v748
        %778 = vmatpush1.bf16.msra.mxu0 %v747
        %779 = vmatprep.subr.bf16.mxu0 %v746
        %780 = vmatpush1.bf16.msra.mxu0 %v745
        %781 = vmatprep.subr.bf16.mxu0 %v744
        %782 = vmatpush1.bf16.msra.mxu0 %v743
        %783 = vmatprep.subr.bf16.mxu0 %v742
        %784 = vmatpush1.bf16.msra.mxu0 %v741
        %785 = vmatprep.subr.bf16.mxu0 %v740
        %786 = vmatpush1.bf16.msra.mxu0 %v739
        %787 = vmatprep.subr.bf16.mxu0 0
        %788 = vmatpush2.bf16.msra.mxu0 0
        %789 = vmatprep.subr.bf16.mxu0 0
        %790 = vmatpush2.bf16.msra.mxu0 0
        %791 = vmatprep.subr.bf16.mxu0 0
        %792 = vmatpush2.bf16.msra.mxu0 0
        %793 = vmatprep.subr.bf16.mxu0 0
        %794 = vmatpush2.bf16.msra.mxu0 0
        %795 = vmatprep.subr.bf16.mxu0 0
        %796 = vmatpush2.bf16.msra.mxu0 0
        %797 = vmatprep.subr.bf16.mxu0 0
        %798 = vmatpush2.bf16.msra.mxu0 0
        %799 = vmatprep.subr.bf16.mxu0 0
        %800 = vmatpush2.bf16.msra.mxu0 0
        %801 = vmatprep.subr.bf16.mxu0 0
        %802 = vmatpush2.bf16.msra.mxu0 0
        %803 = vmatprep.mubr.bf16.mxu0 0
        %804 = vmatmul.mubr.bf16.gmra.mxu0 %v659
        %v805 = vpop.f32.mrf.mxu0
        %v806 = vadd.f32 %v588, %v805
        %v807 = vpop.f32.mrf.mxu0
        %v808 = vadd.f32 %v592, %v807
        %v809 = vpop.f32.mrf.mxu0
        %v810 = vadd.f32 %v588, %v809
        %v811 = vpop.f32.mrf.mxu0
        %v812 = vadd.f32 %v592, %v811
        %813 = vmatprep.mubr.bf16.mxu0 0
        %814 = vmatmul.mubr.bf16.gmra.mxu0 %v660
        %v815 = vpop.f32.mrf.mxu0
        %v816 = vadd.f32 %v588, %v815
        %v817 = vpop.f32.mrf.mxu0
        %v818 = vadd.f32 %v592, %v817
        %v819 = vpop.f32.mrf.mxu0
        %v820 = vadd.f32 %v588, %v819
        %v821 = vpop.f32.mrf.mxu0
        %v822 = vadd.f32 %v592, %v821
        %823 = vmatprep.mubr.bf16.mxu0 0
        %824 = vmatmul.mubr.bf16.gmra.mxu0 %v661
        %v825 = vpop.f32.mrf.mxu0
        %v826 = vadd.f32 %v588, %v825
        %v827 = vpop.f32.mrf.mxu0
        %v828 = vadd.f32 %v592, %v827
        %v829 = vpop.f32.mrf.mxu0
        %v830 = vadd.f32 %v588, %v829
        %v831 = vpop.f32.mrf.mxu0
        %v832 = vadd.f32 %v592, %v831
        %833 = vmatprep.mubr.bf16.mxu0 0
        %834 = vmatmul.mubr.bf16.gmra.mxu0 %v662
        %v835 = vpop.f32.mrf.mxu0
        %v836 = vadd.f32 %v588, %v835
        %v837 = vpop.f32.mrf.mxu0
        %v838 = vadd.f32 %v592, %v837
        %v839 = vpop.f32.mrf.mxu0
        %v840 = vadd.f32 %v588, %v839
        %v841 = vpop.f32.mrf.mxu0
        %v842 = vadd.f32 %v592, %v841
        %843 = vmatprep.mubr.bf16.mxu0 0
        %844 = vmatmul.mubr.bf16.gmra.mxu0 %v663
        %v845 = vpop.f32.mrf.mxu0
        %v846 = vadd.f32 %v588, %v845
        %v847 = vpop.f32.mrf.mxu0
        %v848 = vadd.f32 %v592, %v847
        %v849 = vpop.f32.mrf.mxu0
        %v850 = vadd.f32 %v588, %v849
        %v851 = vpop.f32.mrf.mxu0
        %v852 = vadd.f32 %v592, %v851
        %853 = vmatprep.mubr.bf16.mxu0 0
        %854 = vmatmul.mubr.bf16.gmra.mxu0 %v664
        %v855 = vpop.f32.mrf.mxu0
        %v856 = vadd.f32 %v588, %v855
        %v857 = vpop.f32.mrf.mxu0
        %v858 = vadd.f32 %v592, %v857
        %v859 = vpop.f32.mrf.mxu0
        %v860 = vadd.f32 %v588, %v859
        %v861 = vpop.f32.mrf.mxu0
        %v862 = vadd.f32 %v592, %v861
        %863 = vmatprep.mubr.bf16.mxu0 0
        %864 = vmatmul.mubr.bf16.gmra.mxu0 %v665
        %v865 = vpop.f32.mrf.mxu0
        %v866 = vadd.f32 %v588, %v865
        %v867 = vpop.f32.mrf.mxu0
        %v868 = vadd.f32 %v592, %v867
        %v869 = vpop.f32.mrf.mxu0
        %v870 = vadd.f32 %v588, %v869
        %v871 = vpop.f32.mrf.mxu0
        %v872 = vadd.f32 %v592, %v871
        %873 = vmatprep.mubr.bf16.mxu0 0
        %874 = vmatmul.mubr.bf16.gmra.mxu0 %v666
        %v875 = vpop.f32.mrf.mxu0
        %v876 = vadd.f32 %v588, %v875
        %v877 = vpop.f32.mrf.mxu0
        %v878 = vadd.f32 %v592, %v877
        %v879 = vpop.f32.mrf.mxu0
        %v880 = vadd.f32 %v588, %v879
        %v881 = vpop.f32.mrf.mxu0
        %v882 = vadd.f32 %v592, %v881
        %883 = vmatprep.mubr.bf16.mxu0 0
        %884 = vmatmul.mubr.bf16.gmra.mxu0 %v667
        %v885 = vpop.f32.mrf.mxu0
        %v886 = vadd.f32 %v588, %v885
        %v887 = vpop.f32.mrf.mxu0
        %v888 = vadd.f32 %v592, %v887
        %v889 = vpop.f32.mrf.mxu0
        %v890 = vadd.f32 %v588, %v889
        %v891 = vpop.f32.mrf.mxu0
        %v892 = vadd.f32 %v592, %v891
        %893 = vmatprep.mubr.bf16.mxu0 0
        %894 = vmatmul.mubr.bf16.gmra.mxu0 %v668
        %v895 = vpop.f32.mrf.mxu0
        %v896 = vadd.f32 %v588, %v895
        %v897 = vpop.f32.mrf.mxu0
        %v898 = vadd.f32 %v592, %v897
        %v899 = vpop.f32.mrf.mxu0
        %v900 = vadd.f32 %v588, %v899
        %v901 = vpop.f32.mrf.mxu0
        %v902 = vadd.f32 %v592, %v901
        %903 = vmatprep.mubr.bf16.mxu0 0
        %904 = vmatmul.mubr.bf16.gmra.mxu0 %v669
        %v905 = vpop.f32.mrf.mxu0
        %v906 = vadd.f32 %v588, %v905
        %v907 = vpop.f32.mrf.mxu0
        %v908 = vadd.f32 %v592, %v907
        %v909 = vpop.f32.mrf.mxu0
        %v910 = vadd.f32 %v588, %v909
        %v911 = vpop.f32.mrf.mxu0
        %v912 = vadd.f32 %v592, %v911
        %913 = vmatprep.mubr.bf16.mxu0 0
        %914 = vmatmul.mubr.bf16.gmra.mxu0 %v670
        %v915 = vpop.f32.mrf.mxu0
        %v916 = vadd.f32 %v588, %v915
        %v917 = vpop.f32.mrf.mxu0
        %v918 = vadd.f32 %v592, %v917
        %v919 = vpop.f32.mrf.mxu0
        %v920 = vadd.f32 %v588, %v919
        %v921 = vpop.f32.mrf.mxu0
        %v922 = vadd.f32 %v592, %v921
        %923 = vmatprep.mubr.bf16.mxu0 0
        %924 = vmatmul.mubr.bf16.gmra.mxu0 %v671
        %v925 = vpop.f32.mrf.mxu0
        %v926 = vadd.f32 %v588, %v925
        %v927 = vpop.f32.mrf.mxu0
        %v928 = vadd.f32 %v592, %v927
        %v929 = vpop.f32.mrf.mxu0
        %v930 = vadd.f32 %v588, %v929
        %v931 = vpop.f32.mrf.mxu0
        %v932 = vadd.f32 %v592, %v931
        %933 = vmatprep.mubr.bf16.mxu0 0
        %934 = vmatmul.mubr.bf16.gmra.mxu0 %v672
        %v935 = vpop.f32.mrf.mxu0
        %v936 = vadd.f32 %v588, %v935
        %v937 = vpop.f32.mrf.mxu0
        %v938 = vadd.f32 %v592, %v937
        %v939 = vpop.f32.mrf.mxu0
        %v940 = vadd.f32 %v588, %v939
        %v941 = vpop.f32.mrf.mxu0
        %v942 = vadd.f32 %v592, %v941
        %943 = vmatprep.mubr.bf16.mxu0 0
        %944 = vmatmul.mubr.bf16.gmra.mxu0 %v673
        %v945 = vpop.f32.mrf.mxu0
        %v946 = vadd.f32 %v588, %v945
        %v947 = vpop.f32.mrf.mxu0
        %v948 = vadd.f32 %v592, %v947
        %v949 = vpop.f32.mrf.mxu0
        %v950 = vadd.f32 %v588, %v949
        %v951 = vpop.f32.mrf.mxu0
        %v952 = vadd.f32 %v592, %v951
        %953 = vmatprep.mubr.bf16.mxu0 0
        %954 = vmatmul.mubr.bf16.gmra.mxu0 %v674
        %v955 = vpop.f32.mrf.mxu0
        %v956 = vadd.f32 %v588, %v955
        %v957 = vpop.f32.mrf.mxu0
        %v958 = vadd.f32 %v592, %v957
        %v959 = vpop.f32.mrf.mxu0
        %v960 = vadd.f32 %v588, %v959
        %v961 = vpop.f32.mrf.mxu0
        %v962 = vadd.f32 %v592, %v961
        %963 = vdwg.mxu0
        %v965 = vlaneseq
        %v966 = vshrl.u32 %v965, 7
        %v967 = vsub.s32 0, %v966
        %v968 = vrot.slane %v502, %v967
        %v1002 = vunpack.c.l.b16 %v552
        %v1003 = vunpack.c.l.b16 %v553
        %v1004 = vunpack.c.l.b16 %v554
        %v1005 = vunpack.c.l.b16 %v555
        %v1006 = vunpack.c.l.b16 %v556
        %v1007 = vunpack.c.l.b16 %v557
        %v1008 = vunpack.c.l.b16 %v558
        %v1009 = vunpack.c.l.b16 %v559
        %v1010 = vunpack.c.l.b16 %v560
        %v1011 = vunpack.c.l.b16 %v561
        %v1012 = vunpack.c.l.b16 %v562
        %v1013 = vunpack.c.l.b16 %v563
        %v1014 = vunpack.c.l.b16 %v564
        %v1015 = vunpack.c.l.b16 %v565
        %v1016 = vunpack.c.l.b16 %v566
        %v1017 = vunpack.c.l.b16 %v567
        %v1018 = vunpack.c.l.b16 %v568
        %v1019 = vunpack.c.l.b16 %v569
        %v1020 = vunpack.c.l.b16 %v570
        %v1021 = vunpack.c.l.b16 %v571
        %v1022 = vunpack.c.l.b16 %v572
        %v1023 = vunpack.c.l.b16 %v573
        %v1024 = vunpack.c.l.b16 %v574
        %v1025 = vunpack.c.l.b16 %v575
        %v1026 = vunpack.c.l.b16 %v576
        %v1027 = vunpack.c.l.b16 %v577
        %v1028 = vunpack.c.l.b16 %v578
        %v1029 = vunpack.c.l.b16 %v579
        %v1030 = vunpack.c.l.b16 %v580
        %v1031 = vunpack.c.l.b16 %v581
        %v1032 = vunpack.c.l.b16 %v582
        %v1033 = vunpack.c.l.b16 %v583
        %v1034 = vpack.c.b16 %v1003, %v1002
        %v1035 = vpack.c.b16 %v1005, %v1004
        %v1036 = vpack.c.b16 %v1007, %v1006
        %v1037 = vpack.c.b16 %v1009, %v1008
        %v1038 = vpack.c.b16 %v1011, %v1010
        %v1039 = vpack.c.b16 %v1013, %v1012
        %v1040 = vpack.c.b16 %v1015, %v1014
        %v1041 = vpack.c.b16 %v1017, %v1016
        %v1042 = vpack.c.b16 %v1019, %v1018
        %v1043 = vpack.c.b16 %v1021, %v1020
        %v1044 = vpack.c.b16 %v1023, %v1022
        %v1045 = vpack.c.b16 %v1025, %v1024
        %v1046 = vpack.c.b16 %v1027, %v1026
        %v1047 = vpack.c.b16 %v1029, %v1028
        %v1048 = vpack.c.b16 %v1031, %v1030
        %v1049 = vpack.c.b16 %v1033, %v1032
        %v1082 = vunpack.c.l.b16 %v469
        %v1083 = vunpack.c.l.b16 %v470
        %v1084 = vunpack.c.l.b16 %v471
        %v1085 = vunpack.c.l.b16 %v472
        %v1086 = vunpack.c.l.b16 %v473
        %v1087 = vunpack.c.l.b16 %v474
        %v1088 = vunpack.c.l.b16 %v475
        %v1089 = vunpack.c.l.b16 %v476
        %v1090 = vunpack.c.l.b16 %v477
        %v1091 = vunpack.c.l.b16 %v478
        %v1092 = vunpack.c.l.b16 %v479
        %v1093 = vunpack.c.l.b16 %v480
        %v1094 = vunpack.c.l.b16 %v481
        %v1095 = vunpack.c.l.b16 %v482
        %v1096 = vunpack.c.l.b16 %v483
        %v1097 = vunpack.c.l.b16 %v484
        %v1098 = vpack.c.b16 %v1083, %v1082
        %v1099 = vpack.c.b16 %v1085, %v1084
        %v1100 = vpack.c.b16 %v1087, %v1086
        %v1101 = vpack.c.b16 %v1089, %v1088
        %v1102 = vpack.c.b16 %v1091, %v1090
        %v1103 = vpack.c.b16 %v1093, %v1092
        %v1104 = vpack.c.b16 %v1095, %v1094
        %v1105 = vpack.c.b16 %v1097, %v1096
        %1114 = vmatprep.subr.bf16.mxu0 0
        %1115 = vmatpush1.bf16.msra.mxu0 %v1105
        %1116 = vmatprep.subr.bf16.mxu0 0
        %1117 = vmatpush1.bf16.msra.mxu0 %v1104
        %1118 = vmatprep.subr.bf16.mxu0 0
        %1119 = vmatpush1.bf16.msra.mxu0 %v1103
        %1120 = vmatprep.subr.bf16.mxu0 0
        %1121 = vmatpush1.bf16.msra.mxu0 %v1102
        %1122 = vmatprep.subr.bf16.mxu0 0
        %1123 = vmatpush1.bf16.msra.mxu0 %v1101
        %1124 = vmatprep.subr.bf16.mxu0 0
        %1125 = vmatpush1.bf16.msra.mxu0 %v1100
        %1126 = vmatprep.subr.bf16.mxu0 0
        %1127 = vmatpush1.bf16.msra.mxu0 %v1099
        %1128 = vmatprep.subr.bf16.mxu0 0
        %1129 = vmatpush1.bf16.msra.mxu0 %v1098
        %1130 = vmatprep.subr.bf16.mxu0 0
        %1131 = vmatpush2.bf16.msra.mxu0 0
        %1132 = vmatprep.subr.bf16.mxu0 0
        %1133 = vmatpush2.bf16.msra.mxu0 0
        %1134 = vmatprep.subr.bf16.mxu0 0
        %1135 = vmatpush2.bf16.msra.mxu0 0
        %1136 = vmatprep.subr.bf16.mxu0 0
        %1137 = vmatpush2.bf16.msra.mxu0 0
        %1138 = vmatprep.subr.bf16.mxu0 0
        %1139 = vmatpush2.bf16.msra.mxu0 0
        %1140 = vmatprep.subr.bf16.mxu0 0
        %1141 = vmatpush2.bf16.msra.mxu0 0
        %1142 = vmatprep.subr.bf16.mxu0 0
        %1143 = vmatpush2.bf16.msra.mxu0 0
        %1144 = vmatprep.subr.bf16.mxu0 0
        %1145 = vmatpush2.bf16.msra.mxu0 0
        %1146 = vmatprep.mubr.bf16.mxu0 0
        %1147 = vmatmul.mubr.bf16.gmra.mxu0 %v1034
        %v1148 = vpop.f32.mrf.mxu0
        %v1149 = vadd.f32 %v968, %v1148
        %v1150 = vpop.f32.mrf.mxu0
        %v1151 = vpop.f32.mrf.mxu0
        %v1152 = vadd.f32 %v968, %v1151
        %v1153 = vpop.f32.mrf.mxu0
        %1154 = vmatprep.mubr.bf16.mxu0 0
        %1155 = vmatmul.mubr.bf16.gmra.mxu0 %v1035
        %v1156 = vpop.f32.mrf.mxu0
        %v1157 = vadd.f32 %v968, %v1156
        %v1158 = vpop.f32.mrf.mxu0
        %v1159 = vpop.f32.mrf.mxu0
        %v1160 = vadd.f32 %v968, %v1159
        %v1161 = vpop.f32.mrf.mxu0
        %1162 = vmatprep.mubr.bf16.mxu0 0
        %1163 = vmatmul.mubr.bf16.gmra.mxu0 %v1036
        %v1164 = vpop.f32.mrf.mxu0
        %v1165 = vadd.f32 %v968, %v1164
        %v1166 = vpop.f32.mrf.mxu0
        %v1167 = vpop.f32.mrf.mxu0
        %v1168 = vadd.f32 %v968, %v1167
        %v1169 = vpop.f32.mrf.mxu0
        %1170 = vmatprep.mubr.bf16.mxu0 0
        %1171 = vmatmul.mubr.bf16.gmra.mxu0 %v1037
        %v1172 = vpop.f32.mrf.mxu0
        %v1173 = vadd.f32 %v968, %v1172
        %v1174 = vpop.f32.mrf.mxu0
        %v1175 = vpop.f32.mrf.mxu0
        %v1176 = vadd.f32 %v968, %v1175
        %v1177 = vpop.f32.mrf.mxu0
        %1178 = vmatprep.mubr.bf16.mxu0 0
        %1179 = vmatmul.mubr.bf16.gmra.mxu0 %v1038
        %v1180 = vpop.f32.mrf.mxu0
        %v1181 = vadd.f32 %v968, %v1180
        %v1182 = vpop.f32.mrf.mxu0
        %v1183 = vpop.f32.mrf.mxu0
        %v1184 = vadd.f32 %v968, %v1183
        %v1185 = vpop.f32.mrf.mxu0
        %1186 = vmatprep.mubr.bf16.mxu0 0
        %1187 = vmatmul.mubr.bf16.gmra.mxu0 %v1039
        %v1188 = vpop.f32.mrf.mxu0
        %v1189 = vadd.f32 %v968, %v1188
        %v1190 = vpop.f32.mrf.mxu0
        %v1191 = vpop.f32.mrf.mxu0
        %v1192 = vadd.f32 %v968, %v1191
        %v1193 = vpop.f32.mrf.mxu0
        %1194 = vmatprep.mubr.bf16.mxu0 0
        %1195 = vmatmul.mubr.bf16.gmra.mxu0 %v1040
        %v1196 = vpop.f32.mrf.mxu0
        %v1197 = vadd.f32 %v968, %v1196
        %v1198 = vpop.f32.mrf.mxu0
        %v1199 = vpop.f32.mrf.mxu0
        %v1200 = vadd.f32 %v968, %v1199
        %v1201 = vpop.f32.mrf.mxu0
        %1202 = vmatprep.mubr.bf16.mxu0 0
        %1203 = vmatmul.mubr.bf16.gmra.mxu0 %v1041
        %v1204 = vpop.f32.mrf.mxu0
        %v1205 = vadd.f32 %v968, %v1204
        %v1206 = vpop.f32.mrf.mxu0
        %v1207 = vpop.f32.mrf.mxu0
        %v1208 = vadd.f32 %v968, %v1207
        %v1209 = vpop.f32.mrf.mxu0
        %1210 = vmatprep.mubr.bf16.mxu0 0
        %1211 = vmatmul.mubr.bf16.gmra.mxu0 %v1042
        %v1212 = vpop.f32.mrf.mxu0
        %v1213 = vadd.f32 %v968, %v1212
        %v1214 = vpop.f32.mrf.mxu0
        %v1215 = vpop.f32.mrf.mxu0
        %v1216 = vadd.f32 %v968, %v1215
        %v1217 = vpop.f32.mrf.mxu0
        %1218 = vmatprep.mubr.bf16.mxu0 0
        %1219 = vmatmul.mubr.bf16.gmra.mxu0 %v1043
        %v1220 = vpop.f32.mrf.mxu0
        %v1221 = vadd.f32 %v968, %v1220
        %v1222 = vpop.f32.mrf.mxu0
        %v1223 = vpop.f32.mrf.mxu0
        %v1224 = vadd.f32 %v968, %v1223
        %v1225 = vpop.f32.mrf.mxu0
        %1226 = vmatprep.mubr.bf16.mxu0 0
        %1227 = vmatmul.mubr.bf16.gmra.mxu0 %v1044
        %v1228 = vpop.f32.mrf.mxu0
        %v1229 = vadd.f32 %v968, %v1228
        %v1230 = vpop.f32.mrf.mxu0
        %v1231 = vpop.f32.mrf.mxu0
        %v1232 = vadd.f32 %v968, %v1231
        %v1233 = vpop.f32.mrf.mxu0
        %1234 = vmatprep.mubr.bf16.mxu0 0
        %1235 = vmatmul.mubr.bf16.gmra.mxu0 %v1045
        %v1236 = vpop.f32.mrf.mxu0
        %v1237 = vadd.f32 %v968, %v1236
        %v1238 = vpop.f32.mrf.mxu0
        %v1239 = vpop.f32.mrf.mxu0
        %v1240 = vadd.f32 %v968, %v1239
        %v1241 = vpop.f32.mrf.mxu0
        %1242 = vmatprep.mubr.bf16.mxu0 0
        %1243 = vmatmul.mubr.bf16.gmra.mxu0 %v1046
        %v1244 = vpop.f32.mrf.mxu0
        %v1245 = vadd.f32 %v968, %v1244
        %v1246 = vpop.f32.mrf.mxu0
        %v1247 = vpop.f32.mrf.mxu0
        %v1248 = vadd.f32 %v968, %v1247
        %v1249 = vpop.f32.mrf.mxu0
        %1250 = vmatprep.mubr.bf16.mxu0 0
        %1251 = vmatmul.mubr.bf16.gmra.mxu0 %v1047
        %v1252 = vpop.f32.mrf.mxu0
        %v1253 = vadd.f32 %v968, %v1252
        %v1254 = vpop.f32.mrf.mxu0
        %v1255 = vpop.f32.mrf.mxu0
        %v1256 = vadd.f32 %v968, %v1255
        %v1257 = vpop.f32.mrf.mxu0
        %1258 = vmatprep.mubr.bf16.mxu0 0
        %1259 = vmatmul.mubr.bf16.gmra.mxu0 %v1048
        %v1260 = vpop.f32.mrf.mxu0
        %v1261 = vadd.f32 %v968, %v1260
        %v1262 = vpop.f32.mrf.mxu0
        %v1263 = vpop.f32.mrf.mxu0
        %v1264 = vadd.f32 %v968, %v1263
        %v1265 = vpop.f32.mrf.mxu0
        %1266 = vmatprep.mubr.bf16.mxu0 0
        %1267 = vmatmul.mubr.bf16.gmra.mxu0 %v1049
        %v1268 = vpop.f32.mrf.mxu0
        %v1269 = vadd.f32 %v968, %v1268
        %v1270 = vpop.f32.mrf.mxu0
        %v1271 = vpop.f32.mrf.mxu0
        %v1272 = vadd.f32 %v968, %v1271
        %v1273 = vpop.f32.mrf.mxu0
        %1274 = vdwg.mxu0
        %v1275 = vpack.c.bf16 %v810, %v806
        %v1276 = vpack.c.bf16 %v812, %v808
        %v1277 = vpack.c.bf16 %v820, %v816
        %v1278 = vpack.c.bf16 %v822, %v818
        %v1279 = vpack.c.bf16 %v830, %v826
        %v1280 = vpack.c.bf16 %v832, %v828
        %v1281 = vpack.c.bf16 %v840, %v836
        %v1282 = vpack.c.bf16 %v842, %v838
        %v1283 = vpack.c.bf16 %v850, %v846
        %v1284 = vpack.c.bf16 %v852, %v848
        %v1285 = vpack.c.bf16 %v860, %v856
        %v1286 = vpack.c.bf16 %v862, %v858
        %v1287 = vpack.c.bf16 %v870, %v866
        %v1288 = vpack.c.bf16 %v872, %v868
        %v1289 = vpack.c.bf16 %v880, %v876
        %v1290 = vpack.c.bf16 %v882, %v878
        %v1291 = vpack.c.bf16 %v890, %v886
        %v1292 = vpack.c.bf16 %v892, %v888
        %v1293 = vpack.c.bf16 %v900, %v896
        %v1294 = vpack.c.bf16 %v902, %v898
        %v1295 = vpack.c.bf16 %v910, %v906
        %v1296 = vpack.c.bf16 %v912, %v908
        %v1297 = vpack.c.bf16 %v920, %v916
        %v1298 = vpack.c.bf16 %v922, %v918
        %v1299 = vpack.c.bf16 %v930, %v926
        %v1300 = vpack.c.bf16 %v932, %v928
        %v1301 = vpack.c.bf16 %v940, %v936
        %v1302 = vpack.c.bf16 %v942, %v938
        %v1303 = vpack.c.bf16 %v950, %v946
        %v1304 = vpack.c.bf16 %v952, %v948
        %v1305 = vpack.c.bf16 %v960, %v956
        %v1306 = vpack.c.bf16 %v962, %v958
        %v1339 = vunpack.c.l.b16 %v1275
        %v1340 = vunpack.c.l.b16 %v1276
        %v1341 = vunpack.c.h.b16 %v1275
        %v1342 = vunpack.c.h.b16 %v1276
        %v1343 = vunpack.c.l.b16 %v1277
        %v1344 = vunpack.c.l.b16 %v1278
        %v1345 = vunpack.c.h.b16 %v1277
        %v1346 = vunpack.c.h.b16 %v1278
        %v1347 = vunpack.c.l.b16 %v1279
        %v1348 = vunpack.c.l.b16 %v1280
        %v1349 = vunpack.c.h.b16 %v1279
        %v1350 = vunpack.c.h.b16 %v1280
        %v1351 = vunpack.c.l.b16 %v1281
        %v1352 = vunpack.c.l.b16 %v1282
        %v1353 = vunpack.c.h.b16 %v1281
        %v1354 = vunpack.c.h.b16 %v1282
        %v1355 = vunpack.c.l.b16 %v1283
        %v1356 = vunpack.c.l.b16 %v1284
        %v1357 = vunpack.c.h.b16 %v1283
        %v1358 = vunpack.c.h.b16 %v1284
        %v1359 = vunpack.c.l.b16 %v1285
        %v1360 = vunpack.c.l.b16 %v1286
        %v1361 = vunpack.c.h.b16 %v1285
        %v1362 = vunpack.c.h.b16 %v1286
        %v1363 = vunpack.c.l.b16 %v1287
        %v1364 = vunpack.c.l.b16 %v1288
        %v1365 = vunpack.c.h.b16 %v1287
        %v1366 = vunpack.c.h.b16 %v1288
        %v1367 = vunpack.c.l.b16 %v1289
        %v1368 = vunpack.c.l.b16 %v1290
        %v1369 = vunpack.c.h.b16 %v1289
        %v1370 = vunpack.c.h.b16 %v1290
        %v1371 = vunpack.c.l.b16 %v1291
        %v1372 = vunpack.c.l.b16 %v1292
        %v1373 = vunpack.c.h.b16 %v1291
        %v1374 = vunpack.c.h.b16 %v1292
        %v1375 = vunpack.c.l.b16 %v1293
        %v1376 = vunpack.c.l.b16 %v1294
        %v1377 = vunpack.c.h.b16 %v1293
        %v1378 = vunpack.c.h.b16 %v1294
        %v1379 = vunpack.c.l.b16 %v1295
        %v1380 = vunpack.c.l.b16 %v1296
        %v1381 = vunpack.c.h.b16 %v1295
        %v1382 = vunpack.c.h.b16 %v1296
        %v1383 = vunpack.c.l.b16 %v1297
        %v1384 = vunpack.c.l.b16 %v1298
        %v1385 = vunpack.c.h.b16 %v1297
        %v1386 = vunpack.c.h.b16 %v1298
        %v1387 = vunpack.c.l.b16 %v1299
        %v1388 = vunpack.c.l.b16 %v1300
        %v1389 = vunpack.c.h.b16 %v1299
        %v1390 = vunpack.c.h.b16 %v1300
        %v1391 = vunpack.c.l.b16 %v1301
        %v1392 = vunpack.c.l.b16 %v1302
        %v1393 = vunpack.c.h.b16 %v1301
        %v1394 = vunpack.c.h.b16 %v1302
        %v1395 = vunpack.c.l.b16 %v1303
        %v1396 = vunpack.c.l.b16 %v1304
        %v1397 = vunpack.c.h.b16 %v1303
        %v1398 = vunpack.c.h.b16 %v1304
        %v1399 = vunpack.c.l.b16 %v1305
        %v1400 = vunpack.c.l.b16 %v1306
        %v1401 = vunpack.c.h.b16 %v1305
        %v1402 = vunpack.c.h.b16 %v1306
        %v1403 = vpack.c.b16 %v1340, %v1339
        %v1404 = vpack.c.b16 %v1342, %v1341
        %v1405 = vpack.c.b16 %v1344, %v1343
        %v1406 = vpack.c.b16 %v1346, %v1345
        %v1407 = vpack.c.b16 %v1348, %v1347
        %v1408 = vpack.c.b16 %v1350, %v1349
        %v1409 = vpack.c.b16 %v1352, %v1351
        %v1410 = vpack.c.b16 %v1354, %v1353
        %v1411 = vpack.c.b16 %v1356, %v1355
        %v1412 = vpack.c.b16 %v1358, %v1357
        %v1413 = vpack.c.b16 %v1360, %v1359
        %v1414 = vpack.c.b16 %v1362, %v1361
        %v1415 = vpack.c.b16 %v1364, %v1363
        %v1416 = vpack.c.b16 %v1366, %v1365
        %v1417 = vpack.c.b16 %v1368, %v1367
        %v1418 = vpack.c.b16 %v1370, %v1369
        %v1419 = vpack.c.b16 %v1372, %v1371
        %v1420 = vpack.c.b16 %v1374, %v1373
        %v1421 = vpack.c.b16 %v1376, %v1375
        %v1422 = vpack.c.b16 %v1378, %v1377
        %v1423 = vpack.c.b16 %v1380, %v1379
        %v1424 = vpack.c.b16 %v1382, %v1381
        %v1425 = vpack.c.b16 %v1384, %v1383
        %v1426 = vpack.c.b16 %v1386, %v1385
        %v1427 = vpack.c.b16 %v1388, %v1387
        %v1428 = vpack.c.b16 %v1390, %v1389
        %v1429 = vpack.c.b16 %v1392, %v1391
        %v1430 = vpack.c.b16 %v1394, %v1393
        %v1431 = vpack.c.b16 %v1396, %v1395
        %v1432 = vpack.c.b16 %v1398, %v1397
        %v1433 = vpack.c.b16 %v1400, %v1399
        %v1434 = vpack.c.b16 %v1402, %v1401
        %1467 = vst [vmem:[#allocation2] sm:$0xff] %v1403
        %1468 = vst [vmem:[#allocation2 + $0x8] sm:$0xff] %v1404
        %1469 = vst [vmem:[#allocation2 + $0x10] sm:$0xff] %v1405
        %1470 = vst [vmem:[#allocation2 + $0x18] sm:$0xff] %v1406
        %1471 = vst [vmem:[#allocation2 + $0x20] sm:$0xff] %v1407
        %1472 = vst [vmem:[#allocation2 + $0x28] sm:$0xff] %v1408
        %1473 = vst [vmem:[#allocation2 + $0x30] sm:$0xff] %v1409
        %1474 = vst [vmem:[#allocation2 + $0x38] sm:$0xff] %v1410
        %1475 = vst [vmem:[#allocation2 + $0x40] sm:$0xff] %v1411
        %1476 = vst [vmem:[#allocation2 + $0x48] sm:$0xff] %v1412
        %1477 = vst [vmem:[#allocation2 + $0x50] sm:$0xff] %v1413
        %1478 = vst [vmem:[#allocation2 + $0x58] sm:$0xff] %v1414
        %1479 = vst [vmem:[#allocation2 + $0x60] sm:$0xff] %v1415
        %1480 = vst [vmem:[#allocation2 + $0x68] sm:$0xff] %v1416
        %1481 = vst [vmem:[#allocation2 + $0x70] sm:$0xff] %v1417
        %1482 = vst [vmem:[#allocation2 + $0x78] sm:$0xff] %v1418
        %1483 = vst [vmem:[#allocation2 + $0x80] sm:$0xff] %v1419
        %1484 = vst [vmem:[#allocation2 + $0x88] sm:$0xff] %v1420
        %1485 = vst [vmem:[#allocation2 + $0x90] sm:$0xff] %v1421
        %1486 = vst [vmem:[#allocation2 + $0x98] sm:$0xff] %v1422
        %1487 = vst [vmem:[#allocation2 + $0xa0] sm:$0xff] %v1423
        %1488 = vst [vmem:[#allocation2 + $0xa8] sm:$0xff] %v1424
        %1489 = vst [vmem:[#allocation2 + $0xb0] sm:$0xff] %v1425
        %1490 = vst [vmem:[#allocation2 + $0xb8] sm:$0xff] %v1426
        %1491 = vst [vmem:[#allocation2 + $0xc0] sm:$0xff] %v1427
        %1492 = vst [vmem:[#allocation2 + $0xc8] sm:$0xff] %v1428
        %1493 = vst [vmem:[#allocation2 + $0xd0] sm:$0xff] %v1429
        %1494 = vst [vmem:[#allocation2 + $0xd8] sm:$0xff] %v1430
        %1495 = vst [vmem:[#allocation2 + $0xe0] sm:$0xff] %v1431
        %1496 = vst [vmem:[#allocation2 + $0xe8] sm:$0xff] %v1432
        %1497 = vst [vmem:[#allocation2 + $0xf0] sm:$0xff] %v1433
        %1498 = vst [vmem:[#allocation2 + $0xf8] sm:$0xff] %v1434
        %v1499 = vpack.c.bf16 %v1152, %v1149
        %v1500 = vpack.c.bf16 %v1160, %v1157
        %v1501 = vpack.c.bf16 %v1168, %v1165
        %v1502 = vpack.c.bf16 %v1176, %v1173
        %v1503 = vpack.c.bf16 %v1184, %v1181
        %v1504 = vpack.c.bf16 %v1192, %v1189
        %v1505 = vpack.c.bf16 %v1200, %v1197
        %v1506 = vpack.c.bf16 %v1208, %v1205
        %v1507 = vpack.c.bf16 %v1216, %v1213
        %v1508 = vpack.c.bf16 %v1224, %v1221
        %v1509 = vpack.c.bf16 %v1232, %v1229
        %v1510 = vpack.c.bf16 %v1240, %v1237
        %v1511 = vpack.c.bf16 %v1248, %v1245
        %v1512 = vpack.c.bf16 %v1256, %v1253
        %v1513 = vpack.c.bf16 %v1264, %v1261
        %v1514 = vpack.c.bf16 %v1272, %v1269
        %v1531 = vunpack.c.l.b16 %v1499
        %v1532 = vunpack.c.h.b16 %v1499
        %v1533 = vunpack.c.l.b16 %v1500
        %v1534 = vunpack.c.h.b16 %v1500
        %v1535 = vunpack.c.l.b16 %v1501
        %v1536 = vunpack.c.h.b16 %v1501
        %v1537 = vunpack.c.l.b16 %v1502
        %v1538 = vunpack.c.h.b16 %v1502
        %v1539 = vunpack.c.l.b16 %v1503
        %v1540 = vunpack.c.h.b16 %v1503
        %v1541 = vunpack.c.l.b16 %v1504
        %v1542 = vunpack.c.h.b16 %v1504
        %v1543 = vunpack.c.l.b16 %v1505
        %v1544 = vunpack.c.h.b16 %v1505
        %v1545 = vunpack.c.l.b16 %v1506
        %v1546 = vunpack.c.h.b16 %v1506
        %v1547 = vunpack.c.l.b16 %v1507
        %v1548 = vunpack.c.h.b16 %v1507
        %v1549 = vunpack.c.l.b16 %v1508
        %v1550 = vunpack.c.h.b16 %v1508
        %v1551 = vunpack.c.l.b16 %v1509
        %v1552 = vunpack.c.h.b16 %v1509
        %v1553 = vunpack.c.l.b16 %v1510
        %v1554 = vunpack.c.h.b16 %v1510
        %v1555 = vunpack.c.l.b16 %v1511
        %v1556 = vunpack.c.h.b16 %v1511
        %v1557 = vunpack.c.l.b16 %v1512
        %v1558 = vunpack.c.h.b16 %v1512
        %v1559 = vunpack.c.l.b16 %v1513
        %v1560 = vunpack.c.h.b16 %v1513
        %v1561 = vunpack.c.l.b16 %v1514
        %v1562 = vunpack.c.h.b16 %v1514
        %v1563 = vpack.c.b16 %v1531, %v1531
        %v1564 = vpack.c.b16 %v1532, %v1532
        %v1565 = vpack.c.b16 %v1533, %v1533
        %v1566 = vpack.c.b16 %v1534, %v1534
        %v1567 = vpack.c.b16 %v1535, %v1535
        %v1568 = vpack.c.b16 %v1536, %v1536
        %v1569 = vpack.c.b16 %v1537, %v1537
        %v1570 = vpack.c.b16 %v1538, %v1538
        %v1571 = vpack.c.b16 %v1539, %v1539
        %v1572 = vpack.c.b16 %v1540, %v1540
        %v1573 = vpack.c.b16 %v1541, %v1541
        %v1574 = vpack.c.b16 %v1542, %v1542
        %v1575 = vpack.c.b16 %v1543, %v1543
        %v1576 = vpack.c.b16 %v1544, %v1544
        %v1577 = vpack.c.b16 %v1545, %v1545
        %v1578 = vpack.c.b16 %v1546, %v1546
        %v1579 = vpack.c.b16 %v1547, %v1547
        %v1580 = vpack.c.b16 %v1548, %v1548
        %v1581 = vpack.c.b16 %v1549, %v1549
        %v1582 = vpack.c.b16 %v1550, %v1550
        %v1583 = vpack.c.b16 %v1551, %v1551
        %v1584 = vpack.c.b16 %v1552, %v1552
        %v1585 = vpack.c.b16 %v1553, %v1553
        %v1586 = vpack.c.b16 %v1554, %v1554
        %v1587 = vpack.c.b16 %v1555, %v1555
        %v1588 = vpack.c.b16 %v1556, %v1556
        %v1589 = vpack.c.b16 %v1557, %v1557
        %v1590 = vpack.c.b16 %v1558, %v1558
        %v1591 = vpack.c.b16 %v1559, %v1559
        %v1592 = vpack.c.b16 %v1560, %v1560
        %v1593 = vpack.c.b16 %v1561, %v1561
        %v1594 = vpack.c.b16 %v1562, %v1562
        %1627 = vst [vmem:[#allocation3] sm:$0xf] %v1563
        %1628 = vst [vmem:[#allocation3 + $0x4] sm:$0xf] %v1564
        %1629 = vst [vmem:[#allocation3 + $0x8] sm:$0xf] %v1565
        %1630 = vst [vmem:[#allocation3 + $0xc] sm:$0xf] %v1566
        %1631 = vst [vmem:[#allocation3 + $0x10] sm:$0xf] %v1567
        %1632 = vst [vmem:[#allocation3 + $0x14] sm:$0xf] %v1568
        %1633 = vst [vmem:[#allocation3 + $0x18] sm:$0xf] %v1569
        %1634 = vst [vmem:[#allocation3 + $0x1c] sm:$0xf] %v1570
        %1635 = vst [vmem:[#allocation3 + $0x20] sm:$0xf] %v1571
        %1636 = vst [vmem:[#allocation3 + $0x24] sm:$0xf] %v1572
        %1637 = vst [vmem:[#allocation3 + $0x28] sm:$0xf] %v1573
        %1638 = vst [vmem:[#allocation3 + $0x2c] sm:$0xf] %v1574
        %1639 = vst [vmem:[#allocation3 + $0x30] sm:$0xf] %v1575
        %1640 = vst [vmem:[#allocation3 + $0x34] sm:$0xf] %v1576
        %1641 = vst [vmem:[#allocation3 + $0x38] sm:$0xf] %v1577
        %1642 = vst [vmem:[#allocation3 + $0x3c] sm:$0xf] %v1578
        %1643 = vst [vmem:[#allocation3 + $0x40] sm:$0xf] %v1579
        %1644 = vst [vmem:[#allocation3 + $0x44] sm:$0xf] %v1580
        %1645 = vst [vmem:[#allocation3 + $0x48] sm:$0xf] %v1581
        %1646 = vst [vmem:[#allocation3 + $0x4c] sm:$0xf] %v1582
        %1647 = vst [vmem:[#allocation3 + $0x50] sm:$0xf] %v1583
        %1648 = vst [vmem:[#allocation3 + $0x54] sm:$0xf] %v1584
        %1649 = vst [vmem:[#allocation3 + $0x58] sm:$0xf] %v1585
        %1650 = vst [vmem:[#allocation3 + $0x5c] sm:$0xf] %v1586
        %1651 = vst [vmem:[#allocation3 + $0x60] sm:$0xf] %v1587
        %1652 = vst [vmem:[#allocation3 + $0x64] sm:$0xf] %v1588
        %1653 = vst [vmem:[#allocation3 + $0x68] sm:$0xf] %v1589
        %1654 = vst [vmem:[#allocation3 + $0x6c] sm:$0xf] %v1590
        %1655 = vst [vmem:[#allocation3 + $0x70] sm:$0xf] %v1591
        %1656 = vst [vmem:[#allocation3 + $0x74] sm:$0xf] %v1592
        %1657 = vst [vmem:[#allocation3 + $0x78] sm:$0xf] %v1593
        %1658 = vst [vmem:[#allocation3 + $0x7c] sm:$0xf] %v1594
        loop: start=0, step=1, limit=2
        $region81: #{tpu_custom_call.1} parent=55 // loop_pre_header
          _
        $region82: #{tpu_custom_call.1} parent=55 // loop_header
          %s1660 = sphi 0, %s1664
          %p1661 = scmp.ge.s32.totalorder %s1660, 2
        $region83: #{tpu_custom_call.1} parent=55 // loop_header_branch
          %1663 = sbr.rel (%p1661) target = $region87
        $region84: #{tpu_custom_call.1} parent=55 // loop_body
          %s1665 = smul.u32 %s1660, 128
          %s1666 = sshra.s32 %s1665, 3
          %s1667 = sand.u32 %s1665, 7
          %s1668 = smul.addr %s1666, 4
          %s1669 = scalar_lea.vmem [#allocation3], %s1668
          %v1670 = vld [vmem:[%s1669] sm:$0xf]
          %v1671 = vld [vmem:[%s1669 + $0x4] sm:$0xf]
          %v1672 = vld [vmem:[%s1669 + $0x8] sm:$0xf]
          %v1673 = vld [vmem:[%s1669 + $0xc] sm:$0xf]
          %v1674 = vld [vmem:[%s1669 + $0x10] sm:$0xf]
          %v1675 = vld [vmem:[%s1669 + $0x14] sm:$0xf]
          %v1676 = vld [vmem:[%s1669 + $0x18] sm:$0xf]
          %v1677 = vld [vmem:[%s1669 + $0x1c] sm:$0xf]
          %v1678 = vld [vmem:[%s1669 + $0x20] sm:$0xf]
          %v1679 = vld [vmem:[%s1669 + $0x24] sm:$0xf]
          %v1680 = vld [vmem:[%s1669 + $0x28] sm:$0xf]
          %v1681 = vld [vmem:[%s1669 + $0x2c] sm:$0xf]
          %v1682 = vld [vmem:[%s1669 + $0x30] sm:$0xf]
          %v1683 = vld [vmem:[%s1669 + $0x34] sm:$0xf]
          %v1684 = vld [vmem:[%s1669 + $0x38] sm:$0xf]
          %v1685 = vld [vmem:[%s1669 + $0x3c] sm:$0xf]
          %s1686 = smul.u32 %s1666, 2
          %s1687 = smul.addr %s1686, 4
          %s1688 = scalar_lea.vmem [#allocation2], %s1687
          %v1689 = vld [vmem:[%s1688] sm:$0xff]
          %v1690 = vld [vmem:[%s1688 + $0x8] sm:$0xff]
          %v1691 = vld [vmem:[%s1688 + $0x10] sm:$0xff]
          %v1692 = vld [vmem:[%s1688 + $0x18] sm:$0xff]
          %v1693 = vld [vmem:[%s1688 + $0x20] sm:$0xff]
          %v1694 = vld [vmem:[%s1688 + $0x28] sm:$0xff]
          %v1695 = vld [vmem:[%s1688 + $0x30] sm:$0xff]
          %v1696 = vld [vmem:[%s1688 + $0x38] sm:$0xff]
          %v1697 = vld [vmem:[%s1688 + $0x40] sm:$0xff]
          %v1698 = vld [vmem:[%s1688 + $0x48] sm:$0xff]
          %v1699 = vld [vmem:[%s1688 + $0x50] sm:$0xff]
          %v1700 = vld [vmem:[%s1688 + $0x58] sm:$0xff]
          %v1701 = vld [vmem:[%s1688 + $0x60] sm:$0xff]
          %v1702 = vld [vmem:[%s1688 + $0x68] sm:$0xff]
          %v1703 = vld [vmem:[%s1688 + $0x70] sm:$0xff]
          %v1704 = vld [vmem:[%s1688 + $0x78] sm:$0xff]
          %v1721 = vunpack.c.l.b16 %v1670
          %v1722 = vunpack.c.l.b16 %v1671
          %v1723 = vunpack.c.l.b16 %v1672
          %v1724 = vunpack.c.l.b16 %v1673
          %v1725 = vunpack.c.l.b16 %v1674
          %v1726 = vunpack.c.l.b16 %v1675
          %v1727 = vunpack.c.l.b16 %v1676
          %v1728 = vunpack.c.l.b16 %v1677
          %v1729 = vunpack.c.l.b16 %v1678
          %v1730 = vunpack.c.l.b16 %v1679
          %v1731 = vunpack.c.l.b16 %v1680
          %v1732 = vunpack.c.l.b16 %v1681
          %v1733 = vunpack.c.l.b16 %v1682
          %v1734 = vunpack.c.l.b16 %v1683
          %v1735 = vunpack.c.l.b16 %v1684
          %v1736 = vunpack.c.l.b16 %v1685
          %v1737 = vpack.c.b16 %v1722, %v1721
          %v1738 = vpack.c.b16 %v1724, %v1723
          %v1739 = vpack.c.b16 %v1726, %v1725
          %v1740 = vpack.c.b16 %v1728, %v1727
          %v1741 = vpack.c.b16 %v1730, %v1729
          %v1742 = vpack.c.b16 %v1732, %v1731
          %v1743 = vpack.c.b16 %v1734, %v1733
          %v1744 = vpack.c.b16 %v1736, %v1735
          %v1761 = vunpack.c.l.b16 %v1689
          %v1762 = vunpack.c.l.b16 %v1690
          %v1763 = vunpack.c.l.b16 %v1691
          %v1764 = vunpack.c.l.b16 %v1692
          %v1765 = vunpack.c.l.b16 %v1693
          %v1766 = vunpack.c.l.b16 %v1694
          %v1767 = vunpack.c.l.b16 %v1695
          %v1768 = vunpack.c.l.b16 %v1696
          %v1769 = vunpack.c.l.b16 %v1697
          %v1770 = vunpack.c.l.b16 %v1698
          %v1771 = vunpack.c.l.b16 %v1699
          %v1772 = vunpack.c.l.b16 %v1700
          %v1773 = vunpack.c.l.b16 %v1701
          %v1774 = vunpack.c.l.b16 %v1702
          %v1775 = vunpack.c.l.b16 %v1703
          %v1776 = vunpack.c.l.b16 %v1704
          %v1777 = vpack.c.b16 %v1762, %v1761
          %v1778 = vpack.c.b16 %v1764, %v1763
          %v1779 = vpack.c.b16 %v1766, %v1765
          %v1780 = vpack.c.b16 %v1768, %v1767
          %v1781 = vpack.c.b16 %v1770, %v1769
          %v1782 = vpack.c.b16 %v1772, %v1771
          %v1783 = vpack.c.b16 %v1774, %v1773
          %v1784 = vpack.c.b16 %v1776, %v1775
          %vm1785 = vcmask 261120
          %v1787 = vsel %vm1785, %v1737, 0
          %v1790 = vsel %vm1785, %v1738, 0
          %v1793 = vsel %vm1785, %v1739, 0
          %v1796 = vsel %vm1785, %v1740, 0
          %v1799 = vsel %vm1785, %v1741, 0
          %v1802 = vsel %vm1785, %v1742, 0
          %v1805 = vsel %vm1785, %v1743, 0
          %v1808 = vsel %vm1785, %v1744, 0
          %v1811 = vsel %vm1785, %v1777, 0
          %v1814 = vsel %vm1785, %v1778, 0
          %v1817 = vsel %vm1785, %v1779, 0
          %v1820 = vsel %vm1785, %v1780, 0
          %v1823 = vsel %vm1785, %v1781, 0
          %v1826 = vsel %vm1785, %v1782, 0
          %v1829 = vsel %vm1785, %v1783, 0
          %v1832 = vsel %vm1785, %v1784, 0
          %1834 = vmatprep.subr.bf16.mxu0 0
          %1835 = vmatpush1.bf16.xpose.msra.mxu0 %v1832
          %1836 = vmatprep.subr.bf16.mxu0 0
          %1837 = vmatpush1.bf16.xpose.msra.mxu0 %v1829
          %1838 = vmatprep.subr.bf16.mxu0 0
          %1839 = vmatpush1.bf16.xpose.msra.mxu0 %v1826
          %1840 = vmatprep.subr.bf16.mxu0 0
          %1841 = vmatpush1.bf16.xpose.msra.mxu0 %v1823
          %1842 = vmatprep.subr.bf16.mxu0 0
          %1843 = vmatpush1.bf16.xpose.msra.mxu0 %v1820
          %1844 = vmatprep.subr.bf16.mxu0 0
          %1845 = vmatpush1.bf16.xpose.msra.mxu0 %v1817
          %1846 = vmatprep.subr.bf16.mxu0 0
          %1847 = vmatpush1.bf16.xpose.msra.mxu0 %v1814
          %1848 = vmatprep.subr.bf16.mxu0 0
          %1849 = vmatpush1.bf16.xpose.msra.mxu0 %v1811
          %1850 = vmatprep.subr.bf16.mxu0 0
          %1851 = vmatpush2.bf16.xpose.msra.mxu0 0
          %1852 = vmatprep.subr.bf16.mxu0 0
          %1853 = vmatpush2.bf16.xpose.msra.mxu0 0
          %1854 = vmatprep.subr.bf16.mxu0 0
          %1855 = vmatpush2.bf16.xpose.msra.mxu0 0
          %1856 = vmatprep.subr.bf16.mxu0 0
          %1857 = vmatpush2.bf16.xpose.msra.mxu0 0
          %1858 = vmatprep.subr.bf16.mxu0 0
          %1859 = vmatpush2.bf16.xpose.msra.mxu0 0
          %1860 = vmatprep.subr.bf16.mxu0 0
          %1861 = vmatpush2.bf16.xpose.msra.mxu0 0
          %1862 = vmatprep.subr.bf16.mxu0 0
          %1863 = vmatpush2.bf16.xpose.msra.mxu0 0
          %1864 = vmatprep.subr.bf16.mxu0 0
          %1865 = vmatpush2.bf16.xpose.msra.mxu0 0
          %1866 = vmatprep.mubr.bf16.mxu0 0
          %1867 = vmatmul.mubr.bf16.gmra.mxu0 %v1787
          %v1868 = vpop.f32.mrf.mxu0
          %v1869 = vadd.f32 %v504, %v1868
          %v1870 = vpop.f32.mrf.mxu0
          %v1871 = vpop.f32.mrf.mxu0
          %v1872 = vadd.f32 %v505, %v1871
          %v1873 = vpop.f32.mrf.mxu0
          %1874 = vmatprep.mubr.bf16.mxu0 0
          %1875 = vmatmul.mubr.bf16.gmra.mxu0 %v1790
          %v1876 = vpop.f32.mrf.mxu0
          %v1877 = vadd.f32 %v506, %v1876
          %v1878 = vpop.f32.mrf.mxu0
          %v1879 = vpop.f32.mrf.mxu0
          %v1880 = vadd.f32 %v507, %v1879
          %v1881 = vpop.f32.mrf.mxu0
          %1882 = vmatprep.mubr.bf16.mxu0 0
          %1883 = vmatmul.mubr.bf16.gmra.mxu0 %v1793
          %v1884 = vpop.f32.mrf.mxu0
          %v1885 = vadd.f32 %v508, %v1884
          %v1886 = vpop.f32.mrf.mxu0
          %v1887 = vpop.f32.mrf.mxu0
          %v1888 = vadd.f32 %v509, %v1887
          %v1889 = vpop.f32.mrf.mxu0
          %1890 = vmatprep.mubr.bf16.mxu0 0
          %1891 = vmatmul.mubr.bf16.gmra.mxu0 %v1796
          %v1892 = vpop.f32.mrf.mxu0
          %v1893 = vadd.f32 %v510, %v1892
          %v1894 = vpop.f32.mrf.mxu0
          %v1895 = vpop.f32.mrf.mxu0
          %v1896 = vadd.f32 %v511, %v1895
          %v1897 = vpop.f32.mrf.mxu0
          %1898 = vmatprep.mubr.bf16.mxu0 0
          %1899 = vmatmul.mubr.bf16.gmra.mxu0 %v1799
          %v1900 = vpop.f32.mrf.mxu0
          %v1901 = vadd.f32 %v512, %v1900
          %v1902 = vpop.f32.mrf.mxu0
          %v1903 = vpop.f32.mrf.mxu0
          %v1904 = vadd.f32 %v513, %v1903
          %v1905 = vpop.f32.mrf.mxu0
          %1906 = vmatprep.mubr.bf16.mxu0 0
          %1907 = vmatmul.mubr.bf16.gmra.mxu0 %v1802
          %v1908 = vpop.f32.mrf.mxu0
          %v1909 = vadd.f32 %v514, %v1908
          %v1910 = vpop.f32.mrf.mxu0
          %v1911 = vpop.f32.mrf.mxu0
          %v1912 = vadd.f32 %v515, %v1911
          %v1913 = vpop.f32.mrf.mxu0
          %1914 = vmatprep.mubr.bf16.mxu0 0
          %1915 = vmatmul.mubr.bf16.gmra.mxu0 %v1805
          %v1916 = vpop.f32.mrf.mxu0
          %v1917 = vadd.f32 %v516, %v1916
          %v1918 = vpop.f32.mrf.mxu0
          %v1919 = vpop.f32.mrf.mxu0
          %v1920 = vadd.f32 %v517, %v1919
          %v1921 = vpop.f32.mrf.mxu0
          %1922 = vmatprep.mubr.bf16.mxu0 0
          %1923 = vmatmul.mubr.bf16.gmra.mxu0 %v1808
          %v1924 = vpop.f32.mrf.mxu0
          %v1925 = vadd.f32 %v518, %v1924
          %v1926 = vpop.f32.mrf.mxu0
          %v1927 = vpop.f32.mrf.mxu0
          %v1928 = vadd.f32 %v519, %v1927
          %v1929 = vpop.f32.mrf.mxu0
          %1930 = vdwg.mxu0
          %1931 = vmax.xlane.f32.xlu0 %v1869
          %v1932 = vpop.xlane.xlu0 %1931
          %1933 = vmax.xlane.f32.xlu0 %v1872
          %v1934 = vpop.xlane.xlu0 %1933
          %1935 = vmax.xlane.f32.xlu0 %v1877
          %v1936 = vpop.xlane.xlu0 %1935
          %1937 = vmax.xlane.f32.xlu0 %v1880
          %v1938 = vpop.xlane.xlu0 %1937
          %1939 = vmax.xlane.f32.xlu0 %v1885
          %v1940 = vpop.xlane.xlu0 %1939
          %1941 = vmax.xlane.f32.xlu0 %v1888
          %v1942 = vpop.xlane.xlu0 %1941
          %1943 = vmax.xlane.f32.xlu0 %v1893
          %v1944 = vpop.xlane.xlu0 %1943
          %1945 = vmax.xlane.f32.xlu0 %v1896
          %v1946 = vpop.xlane.xlu0 %1945
          %1947 = vmax.xlane.f32.xlu0 %v1901
          %v1948 = vpop.xlane.xlu0 %1947
          %1949 = vmax.xlane.f32.xlu0 %v1904
          %v1950 = vpop.xlane.xlu0 %1949
          %1951 = vmax.xlane.f32.xlu0 %v1909
          %v1952 = vpop.xlane.xlu0 %1951
          %1953 = vmax.xlane.f32.xlu0 %v1912
          %v1954 = vpop.xlane.xlu0 %1953
          %1955 = vmax.xlane.f32.xlu0 %v1917
          %v1956 = vpop.xlane.xlu0 %1955
          %1957 = vmax.xlane.f32.xlu0 %v1920
          %v1958 = vpop.xlane.xlu0 %1957
          %1959 = vmax.xlane.f32.xlu0 %v1925
          %v1960 = vpop.xlane.xlu0 %1959
          %1961 = vmax.xlane.f32.xlu0 %v1928
          %v1962 = vpop.xlane.xlu0 %1961
          %v1963 = vsub.f32 %v1869, %v1932
          %v1964 = vsub.f32 %v1872, %v1934
          %v1965 = vsub.f32 %v1877, %v1936
          %v1966 = vsub.f32 %v1880, %v1938
          %v1967 = vsub.f32 %v1885, %v1940
          %v1968 = vsub.f32 %v1888, %v1942
          %v1969 = vsub.f32 %v1893, %v1944
          %v1970 = vsub.f32 %v1896, %v1946
          %v1971 = vsub.f32 %v1901, %v1948
          %v1972 = vsub.f32 %v1904, %v1950
          %v1973 = vsub.f32 %v1909, %v1952
          %v1974 = vsub.f32 %v1912, %v1954
          %v1975 = vsub.f32 %v1917, %v1956
          %v1976 = vsub.f32 %v1920, %v1958
          %v1977 = vsub.f32 %v1925, %v1960
          %v1978 = vsub.f32 %v1928, %v1962
          %v1979 = vmul.f32 %v1963, 1.442695
          %v1980 = vpow.pop %v1979
          %v1981 = vmul.f32 %v1964, 1.442695
          %v1982 = vpow.pop %v1981
          %v1983 = vmul.f32 %v1965, 1.442695
          %v1984 = vpow.pop %v1983
          %v1985 = vmul.f32 %v1966, 1.442695
          %v1986 = vpow.pop %v1985
          %v1987 = vmul.f32 %v1967, 1.442695
          %v1988 = vpow.pop %v1987
          %v1989 = vmul.f32 %v1968, 1.442695
          %v1990 = vpow.pop %v1989
          %v1991 = vmul.f32 %v1969, 1.442695
          %v1992 = vpow.pop %v1991
          %v1993 = vmul.f32 %v1970, 1.442695
          %v1994 = vpow.pop %v1993
          %v1995 = vmul.f32 %v1971, 1.442695
          %v1996 = vpow.pop %v1995
          %v1997 = vmul.f32 %v1972, 1.442695
          %v1998 = vpow.pop %v1997
          %v1999 = vmul.f32 %v1973, 1.442695
          %v2000 = vpow.pop %v1999
          %v2001 = vmul.f32 %v1974, 1.442695
          %v2002 = vpow.pop %v2001
          %v2003 = vmul.f32 %v1975, 1.442695
          %v2004 = vpow.pop %v2003
          %v2005 = vmul.f32 %v1976, 1.442695
          %v2006 = vpow.pop %v2005
          %v2007 = vmul.f32 %v1977, 1.442695
          %v2008 = vpow.pop %v2007
          %v2009 = vmul.f32 %v1978, 1.442695
          %v2010 = vpow.pop %v2009
          %2011 = vadd.xlane.f32.xlu0 %v1980
          %v2012 = vpop.xlane.xlu0 %2011
          %2013 = vadd.xlane.f32.xlu0 %v1982
          %v2014 = vpop.xlane.xlu0 %2013
          %2015 = vadd.xlane.f32.xlu0 %v1984
          %v2016 = vpop.xlane.xlu0 %2015
          %2017 = vadd.xlane.f32.xlu0 %v1986
          %v2018 = vpop.xlane.xlu0 %2017
          %2019 = vadd.xlane.f32.xlu0 %v1988
          %v2020 = vpop.xlane.xlu0 %2019
          %2021 = vadd.xlane.f32.xlu0 %v1990
          %v2022 = vpop.xlane.xlu0 %2021
          %2023 = vadd.xlane.f32.xlu0 %v1992
          %v2024 = vpop.xlane.xlu0 %2023
          %2025 = vadd.xlane.f32.xlu0 %v1994
          %v2026 = vpop.xlane.xlu0 %2025
          %2027 = vadd.xlane.f32.xlu0 %v1996
          %v2028 = vpop.xlane.xlu0 %2027
          %2029 = vadd.xlane.f32.xlu0 %v1998
          %v2030 = vpop.xlane.xlu0 %2029
          %2031 = vadd.xlane.f32.xlu0 %v2000
          %v2032 = vpop.xlane.xlu0 %2031
          %2033 = vadd.xlane.f32.xlu0 %v2002
          %v2034 = vpop.xlane.xlu0 %2033
          %2035 = vadd.xlane.f32.xlu0 %v2004
          %v2036 = vpop.xlane.xlu0 %2035
          %2037 = vadd.xlane.f32.xlu0 %v2006
          %v2038 = vpop.xlane.xlu0 %2037
          %2039 = vadd.xlane.f32.xlu0 %v2008
          %v2040 = vpop.xlane.xlu0 %2039
          %2041 = vadd.xlane.f32.xlu0 %v2010
          %v2042 = vpop.xlane.xlu0 %2041
          %v2043 = vrcp.pop %v2012
          %v2044 = vrcp.pop %v2014
          %v2045 = vrcp.pop %v2016
          %v2046 = vrcp.pop %v2018
          %v2047 = vrcp.pop %v2020
          %v2048 = vrcp.pop %v2022
          %v2049 = vrcp.pop %v2024
          %v2050 = vrcp.pop %v2026
          %v2051 = vrcp.pop %v2028
          %v2052 = vrcp.pop %v2030
          %v2053 = vrcp.pop %v2032
          %v2054 = vrcp.pop %v2034
          %v2055 = vrcp.pop %v2036
          %v2056 = vrcp.pop %v2038
          %v2057 = vrcp.pop %v2040
          %v2058 = vrcp.pop %v2042
          %v2059 = vmul.f32 %v1980, %v2043
          %v2060 = vmul.f32 %v1982, %v2044
          %v2061 = vmul.f32 %v1984, %v2045
          %v2062 = vmul.f32 %v1986, %v2046
          %v2063 = vmul.f32 %v1988, %v2047
          %v2064 = vmul.f32 %v1990, %v2048
          %v2065 = vmul.f32 %v1992, %v2049
          %v2066 = vmul.f32 %v1994, %v2050
          %v2067 = vmul.f32 %v1996, %v2051
          %v2068 = vmul.f32 %v1998, %v2052
          %v2069 = vmul.f32 %v2000, %v2053
          %v2070 = vmul.f32 %v2002, %v2054
          %v2071 = vmul.f32 %v2004, %v2055
          %v2072 = vmul.f32 %v2006, %v2056
          %v2073 = vmul.f32 %v2008, %v2057
          %v2074 = vmul.f32 %v2010, %v2058
          %v2075 = vpack.c.bf16 %v2060, %v2059
          %v2076 = vpack.c.bf16 %v2062, %v2061
          %v2077 = vpack.c.bf16 %v2064, %v2063
          %v2078 = vpack.c.bf16 %v2066, %v2065
          %v2079 = vpack.c.bf16 %v2068, %v2067
          %v2080 = vpack.c.bf16 %v2070, %v2069
          %v2081 = vpack.c.bf16 %v2072, %v2071
          %v2082 = vpack.c.bf16 %v2074, %v2073
          %v2083 = vunpack.c.h.b16 %v1689
          %v2084 = vunpack.c.h.b16 %v1690
          %v2085 = vunpack.c.h.b16 %v1691
          %v2086 = vunpack.c.h.b16 %v1692
          %v2087 = vunpack.c.h.b16 %v1693
          %v2088 = vunpack.c.h.b16 %v1694
          %v2089 = vunpack.c.h.b16 %v1695
          %v2090 = vunpack.c.h.b16 %v1696
          %v2091 = vunpack.c.h.b16 %v1697
          %v2092 = vunpack.c.h.b16 %v1698
          %v2093 = vunpack.c.h.b16 %v1699
          %v2094 = vunpack.c.h.b16 %v1700
          %v2095 = vunpack.c.h.b16 %v1701
          %v2096 = vunpack.c.h.b16 %v1702
          %v2097 = vunpack.c.h.b16 %v1703
          %v2098 = vunpack.c.h.b16 %v1704
          %v2099 = vpack.c.b16 %v2084, %v2083
          %v2100 = vpack.c.b16 %v2086, %v2085
          %v2101 = vpack.c.b16 %v2088, %v2087
          %v2102 = vpack.c.b16 %v2090, %v2089
          %v2103 = vpack.c.b16 %v2092, %v2091
          %v2104 = vpack.c.b16 %v2094, %v2093
          %v2105 = vpack.c.b16 %v2096, %v2095
          %v2106 = vpack.c.b16 %v2098, %v2097
          %2115 = vmatprep.subr.bf16.mxu0 0
          %2116 = vmatpush1.bf16.msra.mxu0 %v2106
          %2117 = vmatprep.subr.bf16.mxu0 0
          %2118 = vmatpush1.bf16.msra.mxu0 %v2105
          %2119 = vmatprep.subr.bf16.mxu0 0
          %2120 = vmatpush1.bf16.msra.mxu0 %v2104
          %2121 = vmatprep.subr.bf16.mxu0 0
          %2122 = vmatpush1.bf16.msra.mxu0 %v2103
          %2123 = vmatprep.subr.bf16.mxu0 0
          %2124 = vmatpush1.bf16.msra.mxu0 %v2102
          %2125 = vmatprep.subr.bf16.mxu0 0
          %2126 = vmatpush1.bf16.msra.mxu0 %v2101
          %2127 = vmatprep.subr.bf16.mxu0 0
          %2128 = vmatpush1.bf16.msra.mxu0 %v2100
          %2129 = vmatprep.subr.bf16.mxu0 0
          %2130 = vmatpush1.bf16.msra.mxu0 %v2099
          %2131 = vmatprep.subr.bf16.mxu0 0
          %2132 = vmatpush2.bf16.msra.mxu0 0
          %2133 = vmatprep.subr.bf16.mxu0 0
          %2134 = vmatpush2.bf16.msra.mxu0 0
          %2135 = vmatprep.subr.bf16.mxu0 0
          %2136 = vmatpush2.bf16.msra.mxu0 0
          %2137 = vmatprep.subr.bf16.mxu0 0
          %2138 = vmatpush2.bf16.msra.mxu0 0
          %2139 = vmatprep.subr.bf16.mxu0 0
          %2140 = vmatpush2.bf16.msra.mxu0 0
          %2141 = vmatprep.subr.bf16.mxu0 0
          %2142 = vmatpush2.bf16.msra.mxu0 0
          %2143 = vmatprep.subr.bf16.mxu0 0
          %2144 = vmatpush2.bf16.msra.mxu0 0
          %2145 = vmatprep.subr.bf16.mxu0 0
          %2146 = vmatpush2.bf16.msra.mxu0 0
          %2147 = vmatprep.mubr.bf16.mxu0 0
          %2148 = vmatmul.mubr.bf16.gmra.mxu0 %v2075
          %v2149 = vpop.f32.mrf.mxu0
          %v2150 = vadd.f32 0.0, %v2149
          %v2151 = vpop.f32.mrf.mxu0
          %v2152 = vpop.f32.mrf.mxu0
          %v2153 = vadd.f32 0.0, %v2152
          %v2154 = vpop.f32.mrf.mxu0
          %2155 = vmatprep.mubr.bf16.mxu0 0
          %2156 = vmatmul.mubr.bf16.gmra.mxu0 %v2076
          %v2157 = vpop.f32.mrf.mxu0
          %v2158 = vadd.f32 0.0, %v2157
          %v2159 = vpop.f32.mrf.mxu0
          %v2160 = vpop.f32.mrf.mxu0
          %v2161 = vadd.f32 0.0, %v2160
          %v2162 = vpop.f32.mrf.mxu0
          %2163 = vmatprep.mubr.bf16.mxu0 0
          %2164 = vmatmul.mubr.bf16.gmra.mxu0 %v2077
          %v2165 = vpop.f32.mrf.mxu0
          %v2166 = vadd.f32 0.0, %v2165
          %v2167 = vpop.f32.mrf.mxu0
          %v2168 = vpop.f32.mrf.mxu0
          %v2169 = vadd.f32 0.0, %v2168
          %v2170 = vpop.f32.mrf.mxu0
          %2171 = vmatprep.mubr.bf16.mxu0 0
          %2172 = vmatmul.mubr.bf16.gmra.mxu0 %v2078
          %v2173 = vpop.f32.mrf.mxu0
          %v2174 = vadd.f32 0.0, %v2173
          %v2175 = vpop.f32.mrf.mxu0
          %v2176 = vpop.f32.mrf.mxu0
          %v2177 = vadd.f32 0.0, %v2176
          %v2178 = vpop.f32.mrf.mxu0
          %2179 = vmatprep.mubr.bf16.mxu0 0
          %2180 = vmatmul.mubr.bf16.gmra.mxu0 %v2079
          %v2181 = vpop.f32.mrf.mxu0
          %v2182 = vadd.f32 0.0, %v2181
          %v2183 = vpop.f32.mrf.mxu0
          %v2184 = vpop.f32.mrf.mxu0
          %v2185 = vadd.f32 0.0, %v2184
          %v2186 = vpop.f32.mrf.mxu0
          %2187 = vmatprep.mubr.bf16.mxu0 0
          %2188 = vmatmul.mubr.bf16.gmra.mxu0 %v2080
          %v2189 = vpop.f32.mrf.mxu0
          %v2190 = vadd.f32 0.0, %v2189
          %v2191 = vpop.f32.mrf.mxu0
          %v2192 = vpop.f32.mrf.mxu0
          %v2193 = vadd.f32 0.0, %v2192
          %v2194 = vpop.f32.mrf.mxu0
          %2195 = vmatprep.mubr.bf16.mxu0 0
          %2196 = vmatmul.mubr.bf16.gmra.mxu0 %v2081
          %v2197 = vpop.f32.mrf.mxu0
          %v2198 = vadd.f32 0.0, %v2197
          %v2199 = vpop.f32.mrf.mxu0
          %v2200 = vpop.f32.mrf.mxu0
          %v2201 = vadd.f32 0.0, %v2200
          %v2202 = vpop.f32.mrf.mxu0
          %2203 = vmatprep.mubr.bf16.mxu0 0
          %2204 = vmatmul.mubr.bf16.gmra.mxu0 %v2082
          %v2205 = vpop.f32.mrf.mxu0
          %v2206 = vadd.f32 0.0, %v2205
          %v2207 = vpop.f32.mrf.mxu0
          %v2208 = vpop.f32.mrf.mxu0
          %v2209 = vadd.f32 0.0, %v2208
          %v2210 = vpop.f32.mrf.mxu0
          %2211 = vdwg.mxu0
          %v2212 = vpack.c.bf16 %v2153, %v2150
          %v2213 = vpack.c.bf16 %v2161, %v2158
          %v2214 = vpack.c.bf16 %v2169, %v2166
          %v2215 = vpack.c.bf16 %v2177, %v2174
          %v2216 = vpack.c.bf16 %v2185, %v2182
          %v2217 = vpack.c.bf16 %v2193, %v2190
          %v2218 = vpack.c.bf16 %v2201, %v2198
          %v2219 = vpack.c.bf16 %v2209, %v2206
          %v2228 = vunpack.c.l.b16 %v2212
          %v2229 = vunpack.c.h.b16 %v2212
          %v2230 = vunpack.c.l.b16 %v2213
          %v2231 = vunpack.c.h.b16 %v2213
          %v2232 = vunpack.c.l.b16 %v2214
          %v2233 = vunpack.c.h.b16 %v2214
          %v2234 = vunpack.c.l.b16 %v2215
          %v2235 = vunpack.c.h.b16 %v2215
          %v2236 = vunpack.c.l.b16 %v2216
          %v2237 = vunpack.c.h.b16 %v2216
          %v2238 = vunpack.c.l.b16 %v2217
          %v2239 = vunpack.c.h.b16 %v2217
          %v2240 = vunpack.c.l.b16 %v2218
          %v2241 = vunpack.c.h.b16 %v2218
          %v2242 = vunpack.c.l.b16 %v2219
          %v2243 = vunpack.c.h.b16 %v2219
          %v2244 = vpack.c.b16 %v2228, %v2228
          %v2245 = vpack.c.b16 %v2229, %v2229
          %v2246 = vpack.c.b16 %v2230, %v2230
          %v2247 = vpack.c.b16 %v2231, %v2231
          %v2248 = vpack.c.b16 %v2232, %v2232
          %v2249 = vpack.c.b16 %v2233, %v2233
          %v2250 = vpack.c.b16 %v2234, %v2234
          %v2251 = vpack.c.b16 %v2235, %v2235
          %v2252 = vpack.c.b16 %v2236, %v2236
          %v2253 = vpack.c.b16 %v2237, %v2237
          %v2254 = vpack.c.b16 %v2238, %v2238
          %v2255 = vpack.c.b16 %v2239, %v2239
          %v2256 = vpack.c.b16 %v2240, %v2240
          %v2257 = vpack.c.b16 %v2241, %v2241
          %v2258 = vpack.c.b16 %v2242, %v2242
          %v2259 = vpack.c.b16 %v2243, %v2243
          %s2276 = smul.addr %s1666, 4
          %s2277 = scalar_lea.vmem [#allocation4], %s2276
          %vm2278 = vcmask 257024
          %2279 = vst.msk [vmem:[%s2277] sm:$0xf] %vm2278, %v2244
          %2280 = vst.msk [vmem:[%s2277 + $0x4] sm:$0xf] %vm2278, %v2245
          %2281 = vst.msk [vmem:[%s2277 + $0x8] sm:$0xf] %vm2278, %v2246
          %2282 = vst.msk [vmem:[%s2277 + $0xc] sm:$0xf] %vm2278, %v2247
          %2283 = vst.msk [vmem:[%s2277 + $0x10] sm:$0xf] %vm2278, %v2248
          %2284 = vst.msk [vmem:[%s2277 + $0x14] sm:$0xf] %vm2278, %v2249
          %2285 = vst.msk [vmem:[%s2277 + $0x18] sm:$0xf] %vm2278, %v2250
          %2286 = vst.msk [vmem:[%s2277 + $0x1c] sm:$0xf] %vm2278, %v2251
          %2287 = vst.msk [vmem:[%s2277 + $0x20] sm:$0xf] %vm2278, %v2252
          %2288 = vst.msk [vmem:[%s2277 + $0x24] sm:$0xf] %vm2278, %v2253
          %2289 = vst.msk [vmem:[%s2277 + $0x28] sm:$0xf] %vm2278, %v2254
          %2290 = vst.msk [vmem:[%s2277 + $0x2c] sm:$0xf] %vm2278, %v2255
          %2291 = vst.msk [vmem:[%s2277 + $0x30] sm:$0xf] %vm2278, %v2256
          %2292 = vst.msk [vmem:[%s2277 + $0x34] sm:$0xf] %vm2278, %v2257
          %2293 = vst.msk [vmem:[%s2277 + $0x38] sm:$0xf] %vm2278, %v2258
          %2294 = vst.msk [vmem:[%s2277 + $0x3c] sm:$0xf] %vm2278, %v2259
          %2295 = vrot.lane.b32.xlu0 %v1737, 96
          %v2296 = vpop.permute.xlu0 %2295
          %2297 = vrot.lane.b32.xlu0 %v1738, 96
          %v2298 = vpop.permute.xlu0 %2297
          %2299 = vrot.lane.b32.xlu0 %v1739, 96
          %v2300 = vpop.permute.xlu0 %2299
          %2301 = vrot.lane.b32.xlu0 %v1740, 96
          %v2302 = vpop.permute.xlu0 %2301
          %2303 = vrot.lane.b32.xlu0 %v1741, 96
          %v2304 = vpop.permute.xlu0 %2303
          %2305 = vrot.lane.b32.xlu0 %v1742, 96
          %v2306 = vpop.permute.xlu0 %2305
          %2307 = vrot.lane.b32.xlu0 %v1743, 96
          %v2308 = vpop.permute.xlu0 %2307
          %2309 = vrot.lane.b32.xlu0 %v1744, 96
          %v2310 = vpop.permute.xlu0 %2309
          %2311 = vrot.lane.b32.xlu0 %v1777, 96
          %v2312 = vpop.permute.xlu0 %2311
          %2313 = vrot.lane.b32.xlu0 %v1778, 96
          %v2314 = vpop.permute.xlu0 %2313
          %2315 = vrot.lane.b32.xlu0 %v1779, 96
          %v2316 = vpop.permute.xlu0 %2315
          %2317 = vrot.lane.b32.xlu0 %v1780, 96
          %v2318 = vpop.permute.xlu0 %2317
          %2319 = vrot.lane.b32.xlu0 %v1781, 96
          %v2320 = vpop.permute.xlu0 %2319
          %2321 = vrot.lane.b32.xlu0 %v1782, 96
          %v2322 = vpop.permute.xlu0 %2321
          %2323 = vrot.lane.b32.xlu0 %v1783, 96
          %v2324 = vpop.permute.xlu0 %2323
          %2325 = vrot.lane.b32.xlu0 %v1784, 96
          %v2326 = vpop.permute.xlu0 %2325
          %v2328 = vsel %vm1785, %v2296, 0
          %v2331 = vsel %vm1785, %v2298, 0
          %v2334 = vsel %vm1785, %v2300, 0
          %v2337 = vsel %vm1785, %v2302, 0
          %v2340 = vsel %vm1785, %v2304, 0
          %v2343 = vsel %vm1785, %v2306, 0
          %v2346 = vsel %vm1785, %v2308, 0
          %v2349 = vsel %vm1785, %v2310, 0
          %v2352 = vsel %vm1785, %v2312, 0
          %v2355 = vsel %vm1785, %v2314, 0
          %v2358 = vsel %vm1785, %v2316, 0
          %v2361 = vsel %vm1785, %v2318, 0
          %v2364 = vsel %vm1785, %v2320, 0
          %v2367 = vsel %vm1785, %v2322, 0
          %v2370 = vsel %vm1785, %v2324, 0
          %v2373 = vsel %vm1785, %v2326, 0
          %2375 = vmatprep.subr.bf16.mxu0 0
          %2376 = vmatpush1.bf16.xpose.msra.mxu0 %v2373
          %2377 = vmatprep.subr.bf16.mxu0 0
          %2378 = vmatpush1.bf16.xpose.msra.mxu0 %v2370
          %2379 = vmatprep.subr.bf16.mxu0 0
          %2380 = vmatpush1.bf16.xpose.msra.mxu0 %v2367
          %2381 = vmatprep.subr.bf16.mxu0 0
          %2382 = vmatpush1.bf16.xpose.msra.mxu0 %v2364
          %2383 = vmatprep.subr.bf16.mxu0 0
          %2384 = vmatpush1.bf16.xpose.msra.mxu0 %v2361
          %2385 = vmatprep.subr.bf16.mxu0 0
          %2386 = vmatpush1.bf16.xpose.msra.mxu0 %v2358
          %2387 = vmatprep.subr.bf16.mxu0 0
          %2388 = vmatpush1.bf16.xpose.msra.mxu0 %v2355
          %2389 = vmatprep.subr.bf16.mxu0 0
          %2390 = vmatpush1.bf16.xpose.msra.mxu0 %v2352
          %2391 = vmatprep.subr.bf16.mxu0 0
          %2392 = vmatpush2.bf16.xpose.msra.mxu0 0
          %2393 = vmatprep.subr.bf16.mxu0 0
          %2394 = vmatpush2.bf16.xpose.msra.mxu0 0
          %2395 = vmatprep.subr.bf16.mxu0 0
          %2396 = vmatpush2.bf16.xpose.msra.mxu0 0
          %2397 = vmatprep.subr.bf16.mxu0 0
          %2398 = vmatpush2.bf16.xpose.msra.mxu0 0
          %2399 = vmatprep.subr.bf16.mxu0 0
          %2400 = vmatpush2.bf16.xpose.msra.mxu0 0
          %2401 = vmatprep.subr.bf16.mxu0 0
          %2402 = vmatpush2.bf16.xpose.msra.mxu0 0
          %2403 = vmatprep.subr.bf16.mxu0 0
          %2404 = vmatpush2.bf16.xpose.msra.mxu0 0
          %2405 = vmatprep.subr.bf16.mxu0 0
          %2406 = vmatpush2.bf16.xpose.msra.mxu0 0
          %2407 = vmatprep.mubr.bf16.mxu0 0
          %2408 = vmatmul.mubr.bf16.gmra.mxu0 %v2328
          %v2409 = vpop.f32.mrf.mxu0
          %v2410 = vadd.f32 %v504, %v2409
          %v2411 = vpop.f32.mrf.mxu0
          %v2412 = vpop.f32.mrf.mxu0
          %v2413 = vadd.f32 %v505, %v2412
          %v2414 = vpop.f32.mrf.mxu0
          %2415 = vmatprep.mubr.bf16.mxu0 0
          %2416 = vmatmul.mubr.bf16.gmra.mxu0 %v2331
          %v2417 = vpop.f32.mrf.mxu0
          %v2418 = vadd.f32 %v506, %v2417
          %v2419 = vpop.f32.mrf.mxu0
          %v2420 = vpop.f32.mrf.mxu0
          %v2421 = vadd.f32 %v507, %v2420
          %v2422 = vpop.f32.mrf.mxu0
          %2423 = vmatprep.mubr.bf16.mxu0 0
          %2424 = vmatmul.mubr.bf16.gmra.mxu0 %v2334
          %v2425 = vpop.f32.mrf.mxu0
          %v2426 = vadd.f32 %v508, %v2425
          %v2427 = vpop.f32.mrf.mxu0
          %v2428 = vpop.f32.mrf.mxu0
          %v2429 = vadd.f32 %v509, %v2428
          %v2430 = vpop.f32.mrf.mxu0
          %2431 = vmatprep.mubr.bf16.mxu0 0
          %2432 = vmatmul.mubr.bf16.gmra.mxu0 %v2337
          %v2433 = vpop.f32.mrf.mxu0
          %v2434 = vadd.f32 %v510, %v2433
          %v2435 = vpop.f32.mrf.mxu0
          %v2436 = vpop.f32.mrf.mxu0
          %v2437 = vadd.f32 %v511, %v2436
          %v2438 = vpop.f32.mrf.mxu0
          %2439 = vmatprep.mubr.bf16.mxu0 0
          %2440 = vmatmul.mubr.bf16.gmra.mxu0 %v2340
          %v2441 = vpop.f32.mrf.mxu0
          %v2442 = vadd.f32 %v512, %v2441
          %v2443 = vpop.f32.mrf.mxu0
          %v2444 = vpop.f32.mrf.mxu0
          %v2445 = vadd.f32 %v513, %v2444
          %v2446 = vpop.f32.mrf.mxu0
          %2447 = vmatprep.mubr.bf16.mxu0 0
          %2448 = vmatmul.mubr.bf16.gmra.mxu0 %v2343
          %v2449 = vpop.f32.mrf.mxu0
          %v2450 = vadd.f32 %v514, %v2449
          %v2451 = vpop.f32.mrf.mxu0
          %v2452 = vpop.f32.mrf.mxu0
          %v2453 = vadd.f32 %v515, %v2452
          %v2454 = vpop.f32.mrf.mxu0
          %2455 = vmatprep.mubr.bf16.mxu0 0
          %2456 = vmatmul.mubr.bf16.gmra.mxu0 %v2346
          %v2457 = vpop.f32.mrf.mxu0
          %v2458 = vadd.f32 %v516, %v2457
          %v2459 = vpop.f32.mrf.mxu0
          %v2460 = vpop.f32.mrf.mxu0
          %v2461 = vadd.f32 %v517, %v2460
          %v2462 = vpop.f32.mrf.mxu0
          %2463 = vmatprep.mubr.bf16.mxu0 0
          %2464 = vmatmul.mubr.bf16.gmra.mxu0 %v2349
          %v2465 = vpop.f32.mrf.mxu0
          %v2466 = vadd.f32 %v518, %v2465
          %v2467 = vpop.f32.mrf.mxu0
          %v2468 = vpop.f32.mrf.mxu0
          %v2469 = vadd.f32 %v519, %v2468
          %v2470 = vpop.f32.mrf.mxu0
          %2471 = vdwg.mxu0
          %2472 = vmax.xlane.f32.xlu0 %v2410
          %v2473 = vpop.xlane.xlu0 %2472
          %2474 = vmax.xlane.f32.xlu0 %v2413
          %v2475 = vpop.xlane.xlu0 %2474
          %2476 = vmax.xlane.f32.xlu0 %v2418
          %v2477 = vpop.xlane.xlu0 %2476
          %2478 = vmax.xlane.f32.xlu0 %v2421
          %v2479 = vpop.xlane.xlu0 %2478
          %2480 = vmax.xlane.f32.xlu0 %v2426
          %v2481 = vpop.xlane.xlu0 %2480
          %2482 = vmax.xlane.f32.xlu0 %v2429
          %v2483 = vpop.xlane.xlu0 %2482
          %2484 = vmax.xlane.f32.xlu0 %v2434
          %v2485 = vpop.xlane.xlu0 %2484
          %2486 = vmax.xlane.f32.xlu0 %v2437
          %v2487 = vpop.xlane.xlu0 %2486
          %2488 = vmax.xlane.f32.xlu0 %v2442
          %v2489 = vpop.xlane.xlu0 %2488
          %2490 = vmax.xlane.f32.xlu0 %v2445
          %v2491 = vpop.xlane.xlu0 %2490
          %2492 = vmax.xlane.f32.xlu0 %v2450
          %v2493 = vpop.xlane.xlu0 %2492
          %2494 = vmax.xlane.f32.xlu0 %v2453
          %v2495 = vpop.xlane.xlu0 %2494
          %2496 = vmax.xlane.f32.xlu0 %v2458
          %v2497 = vpop.xlane.xlu0 %2496
          %2498 = vmax.xlane.f32.xlu0 %v2461
          %v2499 = vpop.xlane.xlu0 %2498
          %2500 = vmax.xlane.f32.xlu0 %v2466
          %v2501 = vpop.xlane.xlu0 %2500
          %2502 = vmax.xlane.f32.xlu0 %v2469
          %v2503 = vpop.xlane.xlu0 %2502
          %v2504 = vsub.f32 %v2410, %v2473
          %v2505 = vsub.f32 %v2413, %v2475
          %v2506 = vsub.f32 %v2418, %v2477
          %v2507 = vsub.f32 %v2421, %v2479
          %v2508 = vsub.f32 %v2426, %v2481
          %v2509 = vsub.f32 %v2429, %v2483
          %v2510 = vsub.f32 %v2434, %v2485
          %v2511 = vsub.f32 %v2437, %v2487
          %v2512 = vsub.f32 %v2442, %v2489
          %v2513 = vsub.f32 %v2445, %v2491
          %v2514 = vsub.f32 %v2450, %v2493
          %v2515 = vsub.f32 %v2453, %v2495
          %v2516 = vsub.f32 %v2458, %v2497
          %v2517 = vsub.f32 %v2461, %v2499
          %v2518 = vsub.f32 %v2466, %v2501
          %v2519 = vsub.f32 %v2469, %v2503
          %v2520 = vmul.f32 %v2504, 1.442695
          %v2521 = vpow.pop %v2520
          %v2522 = vmul.f32 %v2505, 1.442695
          %v2523 = vpow.pop %v2522
          %v2524 = vmul.f32 %v2506, 1.442695
          %v2525 = vpow.pop %v2524
          %v2526 = vmul.f32 %v2507, 1.442695
          %v2527 = vpow.pop %v2526
          %v2528 = vmul.f32 %v2508, 1.442695
          %v2529 = vpow.pop %v2528
          %v2530 = vmul.f32 %v2509, 1.442695
          %v2531 = vpow.pop %v2530
          %v2532 = vmul.f32 %v2510, 1.442695
          %v2533 = vpow.pop %v2532
          %v2534 = vmul.f32 %v2511, 1.442695
          %v2535 = vpow.pop %v2534
          %v2536 = vmul.f32 %v2512, 1.442695
          %v2537 = vpow.pop %v2536
          %v2538 = vmul.f32 %v2513, 1.442695
          %v2539 = vpow.pop %v2538
          %v2540 = vmul.f32 %v2514, 1.442695
          %v2541 = vpow.pop %v2540
          %v2542 = vmul.f32 %v2515, 1.442695
          %v2543 = vpow.pop %v2542
          %v2544 = vmul.f32 %v2516, 1.442695
          %v2545 = vpow.pop %v2544
          %v2546 = vmul.f32 %v2517, 1.442695
          %v2547 = vpow.pop %v2546
          %v2548 = vmul.f32 %v2518, 1.442695
          %v2549 = vpow.pop %v2548
          %v2550 = vmul.f32 %v2519, 1.442695
          %v2551 = vpow.pop %v2550
          %2552 = vadd.xlane.f32.xlu0 %v2521
          %v2553 = vpop.xlane.xlu0 %2552
          %2554 = vadd.xlane.f32.xlu0 %v2523
          %v2555 = vpop.xlane.xlu0 %2554
          %2556 = vadd.xlane.f32.xlu0 %v2525
          %v2557 = vpop.xlane.xlu0 %2556
          %2558 = vadd.xlane.f32.xlu0 %v2527
          %v2559 = vpop.xlane.xlu0 %2558
          %2560 = vadd.xlane.f32.xlu0 %v2529
          %v2561 = vpop.xlane.xlu0 %2560
          %2562 = vadd.xlane.f32.xlu0 %v2531
          %v2563 = vpop.xlane.xlu0 %2562
          %2564 = vadd.xlane.f32.xlu0 %v2533
          %v2565 = vpop.xlane.xlu0 %2564
          %2566 = vadd.xlane.f32.xlu0 %v2535
          %v2567 = vpop.xlane.xlu0 %2566
          %2568 = vadd.xlane.f32.xlu0 %v2537
          %v2569 = vpop.xlane.xlu0 %2568
          %2570 = vadd.xlane.f32.xlu0 %v2539
          %v2571 = vpop.xlane.xlu0 %2570
          %2572 = vadd.xlane.f32.xlu0 %v2541
          %v2573 = vpop.xlane.xlu0 %2572
          %2574 = vadd.xlane.f32.xlu0 %v2543
          %v2575 = vpop.xlane.xlu0 %2574
          %2576 = vadd.xlane.f32.xlu0 %v2545
          %v2577 = vpop.xlane.xlu0 %2576
          %2578 = vadd.xlane.f32.xlu0 %v2547
          %v2579 = vpop.xlane.xlu0 %2578
          %2580 = vadd.xlane.f32.xlu0 %v2549
          %v2581 = vpop.xlane.xlu0 %2580
          %2582 = vadd.xlane.f32.xlu0 %v2551
          %v2583 = vpop.xlane.xlu0 %2582
          %v2584 = vrcp.pop %v2553
          %v2585 = vrcp.pop %v2555
          %v2586 = vrcp.pop %v2557
          %v2587 = vrcp.pop %v2559
          %v2588 = vrcp.pop %v2561
          %v2589 = vrcp.pop %v2563
          %v2590 = vrcp.pop %v2565
          %v2591 = vrcp.pop %v2567
          %v2592 = vrcp.pop %v2569
          %v2593 = vrcp.pop %v2571
          %v2594 = vrcp.pop %v2573
          %v2595 = vrcp.pop %v2575
          %v2596 = vrcp.pop %v2577
          %v2597 = vrcp.pop %v2579
          %v2598 = vrcp.pop %v2581
          %v2599 = vrcp.pop %v2583
          %v2600 = vmul.f32 %v2521, %v2584
          %v2601 = vmul.f32 %v2523, %v2585
          %v2602 = vmul.f32 %v2525, %v2586
          %v2603 = vmul.f32 %v2527, %v2587
          %v2604 = vmul.f32 %v2529, %v2588
          %v2605 = vmul.f32 %v2531, %v2589
          %v2606 = vmul.f32 %v2533, %v2590
          %v2607 = vmul.f32 %v2535, %v2591
          %v2608 = vmul.f32 %v2537, %v2592
          %v2609 = vmul.f32 %v2539, %v2593
          %v2610 = vmul.f32 %v2541, %v2594
          %v2611 = vmul.f32 %v2543, %v2595
          %v2612 = vmul.f32 %v2545, %v2596
          %v2613 = vmul.f32 %v2547, %v2597
          %v2614 = vmul.f32 %v2549, %v2598
          %v2615 = vmul.f32 %v2551, %v2599
          %v2616 = vpack.c.bf16 %v2601, %v2600
          %v2617 = vpack.c.bf16 %v2603, %v2602
          %v2618 = vpack.c.bf16 %v2605, %v2604
          %v2619 = vpack.c.bf16 %v2607, %v2606
          %v2620 = vpack.c.bf16 %v2609, %v2608
          %v2621 = vpack.c.bf16 %v2611, %v2610
          %v2622 = vpack.c.bf16 %v2613, %v2612
          %v2623 = vpack.c.bf16 %v2615, %v2614
          %2624 = vrot.lane.b32.xlu0 %v2099, 96
          %v2625 = vpop.permute.xlu0 %2624
          %2626 = vrot.lane.b32.xlu0 %v2100, 96
          %v2627 = vpop.permute.xlu0 %2626
          %2628 = vrot.lane.b32.xlu0 %v2101, 96
          %v2629 = vpop.permute.xlu0 %2628
          %2630 = vrot.lane.b32.xlu0 %v2102, 96
          %v2631 = vpop.permute.xlu0 %2630
          %2632 = vrot.lane.b32.xlu0 %v2103, 96
          %v2633 = vpop.permute.xlu0 %2632
          %2634 = vrot.lane.b32.xlu0 %v2104, 96
          %v2635 = vpop.permute.xlu0 %2634
          %2636 = vrot.lane.b32.xlu0 %v2105, 96
          %v2637 = vpop.permute.xlu0 %2636
          %2638 = vrot.lane.b32.xlu0 %v2106, 96
          %v2639 = vpop.permute.xlu0 %2638
          %2648 = vmatprep.subr.bf16.mxu0 0
          %2649 = vmatpush1.bf16.msra.mxu0 %v2639
          %2650 = vmatprep.subr.bf16.mxu0 0
          %2651 = vmatpush1.bf16.msra.mxu0 %v2637
          %2652 = vmatprep.subr.bf16.mxu0 0
          %2653 = vmatpush1.bf16.msra.mxu0 %v2635
          %2654 = vmatprep.subr.bf16.mxu0 0
          %2655 = vmatpush1.bf16.msra.mxu0 %v2633
          %2656 = vmatprep.subr.bf16.mxu0 0
          %2657 = vmatpush1.bf16.msra.mxu0 %v2631
          %2658 = vmatprep.subr.bf16.mxu0 0
          %2659 = vmatpush1.bf16.msra.mxu0 %v2629
          %2660 = vmatprep.subr.bf16.mxu0 0
          %2661 = vmatpush1.bf16.msra.mxu0 %v2627
          %2662 = vmatprep.subr.bf16.mxu0 0
          %2663 = vmatpush1.bf16.msra.mxu0 %v2625
          %2664 = vmatprep.subr.bf16.mxu0 0
          %2665 = vmatpush2.bf16.msra.mxu0 0
          %2666 = vmatprep.subr.bf16.mxu0 0
          %2667 = vmatpush2.bf16.msra.mxu0 0
          %2668 = vmatprep.subr.bf16.mxu0 0
          %2669 = vmatpush2.bf16.msra.mxu0 0
          %2670 = vmatprep.subr.bf16.mxu0 0
          %2671 = vmatpush2.bf16.msra.mxu0 0
          %2672 = vmatprep.subr.bf16.mxu0 0
          %2673 = vmatpush2.bf16.msra.mxu0 0
          %2674 = vmatprep.subr.bf16.mxu0 0
          %2675 = vmatpush2.bf16.msra.mxu0 0
          %2676 = vmatprep.subr.bf16.mxu0 0
          %2677 = vmatpush2.bf16.msra.mxu0 0
          %2678 = vmatprep.subr.bf16.mxu0 0
          %2679 = vmatpush2.bf16.msra.mxu0 0
          %2680 = vmatprep.mubr.bf16.mxu0 0
          %2681 = vmatmul.mubr.bf16.gmra.mxu0 %v2616
          %v2682 = vpop.f32.mrf.mxu0
          %v2683 = vadd.f32 0.0, %v2682
          %v2684 = vpop.f32.mrf.mxu0
          %v2685 = vpop.f32.mrf.mxu0
          %v2686 = vadd.f32 0.0, %v2685
          %v2687 = vpop.f32.mrf.mxu0
          %2688 = vmatprep.mubr.bf16.mxu0 0
          %2689 = vmatmul.mubr.bf16.gmra.mxu0 %v2617
          %v2690 = vpop.f32.mrf.mxu0
          %v2691 = vadd.f32 0.0, %v2690
          %v2692 = vpop.f32.mrf.mxu0
          %v2693 = vpop.f32.mrf.mxu0
          %v2694 = vadd.f32 0.0, %v2693
          %v2695 = vpop.f32.mrf.mxu0
          %2696 = vmatprep.mubr.bf16.mxu0 0
          %2697 = vmatmul.mubr.bf16.gmra.mxu0 %v2618
          %v2698 = vpop.f32.mrf.mxu0
          %v2699 = vadd.f32 0.0, %v2698
          %v2700 = vpop.f32.mrf.mxu0
          %v2701 = vpop.f32.mrf.mxu0
          %v2702 = vadd.f32 0.0, %v2701
          %v2703 = vpop.f32.mrf.mxu0
          %2704 = vmatprep.mubr.bf16.mxu0 0
          %2705 = vmatmul.mubr.bf16.gmra.mxu0 %v2619
          %v2706 = vpop.f32.mrf.mxu0
          %v2707 = vadd.f32 0.0, %v2706
          %v2708 = vpop.f32.mrf.mxu0
          %v2709 = vpop.f32.mrf.mxu0
          %v2710 = vadd.f32 0.0, %v2709
          %v2711 = vpop.f32.mrf.mxu0
          %2712 = vmatprep.mubr.bf16.mxu0 0
          %2713 = vmatmul.mubr.bf16.gmra.mxu0 %v2620
          %v2714 = vpop.f32.mrf.mxu0
          %v2715 = vadd.f32 0.0, %v2714
          %v2716 = vpop.f32.mrf.mxu0
          %v2717 = vpop.f32.mrf.mxu0
          %v2718 = vadd.f32 0.0, %v2717
          %v2719 = vpop.f32.mrf.mxu0
          %2720 = vmatprep.mubr.bf16.mxu0 0
          %2721 = vmatmul.mubr.bf16.gmra.mxu0 %v2621
          %v2722 = vpop.f32.mrf.mxu0
          %v2723 = vadd.f32 0.0, %v2722
          %v2724 = vpop.f32.mrf.mxu0
          %v2725 = vpop.f32.mrf.mxu0
          %v2726 = vadd.f32 0.0, %v2725
          %v2727 = vpop.f32.mrf.mxu0
          %2728 = vmatprep.mubr.bf16.mxu0 0
          %2729 = vmatmul.mubr.bf16.gmra.mxu0 %v2622
          %v2730 = vpop.f32.mrf.mxu0
          %v2731 = vadd.f32 0.0, %v2730
          %v2732 = vpop.f32.mrf.mxu0
          %v2733 = vpop.f32.mrf.mxu0
          %v2734 = vadd.f32 0.0, %v2733
          %v2735 = vpop.f32.mrf.mxu0
          %2736 = vmatprep.mubr.bf16.mxu0 0
          %2737 = vmatmul.mubr.bf16.gmra.mxu0 %v2623
          %v2738 = vpop.f32.mrf.mxu0
          %v2739 = vadd.f32 0.0, %v2738
          %v2740 = vpop.f32.mrf.mxu0
          %v2741 = vpop.f32.mrf.mxu0
          %v2742 = vadd.f32 0.0, %v2741
          %v2743 = vpop.f32.mrf.mxu0
          %2744 = vdwg.mxu0
          %v2745 = vpack.c.bf16 %v2686, %v2683
          %v2746 = vpack.c.bf16 %v2694, %v2691
          %v2747 = vpack.c.bf16 %v2702, %v2699
          %v2748 = vpack.c.bf16 %v2710, %v2707
          %v2749 = vpack.c.bf16 %v2718, %v2715
          %v2750 = vpack.c.bf16 %v2726, %v2723
          %v2751 = vpack.c.bf16 %v2734, %v2731
          %v2752 = vpack.c.bf16 %v2742, %v2739
          %v2761 = vunpack.c.l.b16 %v2745
          %v2762 = vunpack.c.h.b16 %v2745
          %v2763 = vunpack.c.l.b16 %v2746
          %v2764 = vunpack.c.h.b16 %v2746
          %v2765 = vunpack.c.l.b16 %v2747
          %v2766 = vunpack.c.h.b16 %v2747
          %v2767 = vunpack.c.l.b16 %v2748
          %v2768 = vunpack.c.h.b16 %v2748
          %v2769 = vunpack.c.l.b16 %v2749
          %v2770 = vunpack.c.h.b16 %v2749
          %v2771 = vunpack.c.l.b16 %v2750
          %v2772 = vunpack.c.h.b16 %v2750
          %v2773 = vunpack.c.l.b16 %v2751
          %v2774 = vunpack.c.h.b16 %v2751
          %v2775 = vunpack.c.l.b16 %v2752
          %v2776 = vunpack.c.h.b16 %v2752
          %v2777 = vpack.c.b16 %v2761, %v2761
          %v2778 = vpack.c.b16 %v2762, %v2762
          %v2779 = vpack.c.b16 %v2763, %v2763
          %v2780 = vpack.c.b16 %v2764, %v2764
          %v2781 = vpack.c.b16 %v2765, %v2765
          %v2782 = vpack.c.b16 %v2766, %v2766
          %v2783 = vpack.c.b16 %v2767, %v2767
          %v2784 = vpack.c.b16 %v2768, %v2768
          %v2785 = vpack.c.b16 %v2769, %v2769
          %v2786 = vpack.c.b16 %v2770, %v2770
          %v2787 = vpack.c.b16 %v2771, %v2771
          %v2788 = vpack.c.b16 %v2772, %v2772
          %v2789 = vpack.c.b16 %v2773, %v2773
          %v2790 = vpack.c.b16 %v2774, %v2774
          %v2791 = vpack.c.b16 %v2775, %v2775
          %v2792 = vpack.c.b16 %v2776, %v2776
          %2793 = vrot.lane.b32.xlu0 %v2777, 32
          %v2794 = vpop.permute.xlu0 %2793
          %2795 = vrot.lane.b32.xlu0 %v2778, 32
          %v2796 = vpop.permute.xlu0 %2795
          %2797 = vrot.lane.b32.xlu0 %v2779, 32
          %v2798 = vpop.permute.xlu0 %2797
          %2799 = vrot.lane.b32.xlu0 %v2780, 32
          %v2800 = vpop.permute.xlu0 %2799
          %2801 = vrot.lane.b32.xlu0 %v2781, 32
          %v2802 = vpop.permute.xlu0 %2801
          %2803 = vrot.lane.b32.xlu0 %v2782, 32
          %v2804 = vpop.permute.xlu0 %2803
          %2805 = vrot.lane.b32.xlu0 %v2783, 32
          %v2806 = vpop.permute.xlu0 %2805
          %2807 = vrot.lane.b32.xlu0 %v2784, 32
          %v2808 = vpop.permute.xlu0 %2807
          %2809 = vrot.lane.b32.xlu0 %v2785, 32
          %v2810 = vpop.permute.xlu0 %2809
          %2811 = vrot.lane.b32.xlu0 %v2786, 32
          %v2812 = vpop.permute.xlu0 %2811
          %2813 = vrot.lane.b32.xlu0 %v2787, 32
          %v2814 = vpop.permute.xlu0 %2813
          %2815 = vrot.lane.b32.xlu0 %v2788, 32
          %v2816 = vpop.permute.xlu0 %2815
          %2817 = vrot.lane.b32.xlu0 %v2789, 32
          %v2818 = vpop.permute.xlu0 %2817
          %2819 = vrot.lane.b32.xlu0 %v2790, 32
          %v2820 = vpop.permute.xlu0 %2819
          %2821 = vrot.lane.b32.xlu0 %v2791, 32
          %v2822 = vpop.permute.xlu0 %2821
          %2823 = vrot.lane.b32.xlu0 %v2792, 32
          %v2824 = vpop.permute.xlu0 %2823
          %vm2841 = vcmask 519424
          %2842 = vst.msk [vmem:[%s2277] sm:$0xf] %vm2841, %v2794
          %2843 = vst.msk [vmem:[%s2277 + $0x4] sm:$0xf] %vm2841, %v2796
          %2844 = vst.msk [vmem:[%s2277 + $0x8] sm:$0xf] %vm2841, %v2798
          %2845 = vst.msk [vmem:[%s2277 + $0xc] sm:$0xf] %vm2841, %v2800
          %2846 = vst.msk [vmem:[%s2277 + $0x10] sm:$0xf] %vm2841, %v2802
          %2847 = vst.msk [vmem:[%s2277 + $0x14] sm:$0xf] %vm2841, %v2804
          %2848 = vst.msk [vmem:[%s2277 + $0x18] sm:$0xf] %vm2841, %v2806
          %2849 = vst.msk [vmem:[%s2277 + $0x1c] sm:$0xf] %vm2841, %v2808
          %2850 = vst.msk [vmem:[%s2277 + $0x20] sm:$0xf] %vm2841, %v2810
          %2851 = vst.msk [vmem:[%s2277 + $0x24] sm:$0xf] %vm2841, %v2812
          %2852 = vst.msk [vmem:[%s2277 + $0x28] sm:$0xf] %vm2841, %v2814
          %2853 = vst.msk [vmem:[%s2277 + $0x2c] sm:$0xf] %vm2841, %v2816
          %2854 = vst.msk [vmem:[%s2277 + $0x30] sm:$0xf] %vm2841, %v2818
          %2855 = vst.msk [vmem:[%s2277 + $0x34] sm:$0xf] %vm2841, %v2820
          %2856 = vst.msk [vmem:[%s2277 + $0x38] sm:$0xf] %vm2841, %v2822
          %2857 = vst.msk [vmem:[%s2277 + $0x3c] sm:$0xf] %vm2841, %v2824
          %2858 = vrot.lane.b32.xlu0 %v1737, 64
          %v2859 = vpop.permute.xlu0 %2858
          %2860 = vrot.lane.b32.xlu0 %v1738, 64
          %v2861 = vpop.permute.xlu0 %2860
          %2862 = vrot.lane.b32.xlu0 %v1739, 64
          %v2863 = vpop.permute.xlu0 %2862
          %2864 = vrot.lane.b32.xlu0 %v1740, 64
          %v2865 = vpop.permute.xlu0 %2864
          %2866 = vrot.lane.b32.xlu0 %v1741, 64
          %v2867 = vpop.permute.xlu0 %2866
          %2868 = vrot.lane.b32.xlu0 %v1742, 64
          %v2869 = vpop.permute.xlu0 %2868
          %2870 = vrot.lane.b32.xlu0 %v1743, 64
          %v2871 = vpop.permute.xlu0 %2870
          %2872 = vrot.lane.b32.xlu0 %v1744, 64
          %v2873 = vpop.permute.xlu0 %2872
          %2874 = vrot.lane.b32.xlu0 %v1777, 64
          %v2875 = vpop.permute.xlu0 %2874
          %2876 = vrot.lane.b32.xlu0 %v1778, 64
          %v2877 = vpop.permute.xlu0 %2876
          %2878 = vrot.lane.b32.xlu0 %v1779, 64
          %v2879 = vpop.permute.xlu0 %2878
          %2880 = vrot.lane.b32.xlu0 %v1780, 64
          %v2881 = vpop.permute.xlu0 %2880
          %2882 = vrot.lane.b32.xlu0 %v1781, 64
          %v2883 = vpop.permute.xlu0 %2882
          %2884 = vrot.lane.b32.xlu0 %v1782, 64
          %v2885 = vpop.permute.xlu0 %2884
          %2886 = vrot.lane.b32.xlu0 %v1783, 64
          %v2887 = vpop.permute.xlu0 %2886
          %2888 = vrot.lane.b32.xlu0 %v1784, 64
          %v2889 = vpop.permute.xlu0 %2888
          %v2891 = vsel %vm1785, %v2859, 0
          %v2894 = vsel %vm1785, %v2861, 0
          %v2897 = vsel %vm1785, %v2863, 0
          %v2900 = vsel %vm1785, %v2865, 0
          %v2903 = vsel %vm1785, %v2867, 0
          %v2906 = vsel %vm1785, %v2869, 0
          %v2909 = vsel %vm1785, %v2871, 0
          %v2912 = vsel %vm1785, %v2873, 0
          %v2915 = vsel %vm1785, %v2875, 0
          %v2918 = vsel %vm1785, %v2877, 0
          %v2921 = vsel %vm1785, %v2879, 0
          %v2924 = vsel %vm1785, %v2881, 0
          %v2927 = vsel %vm1785, %v2883, 0
          %v2930 = vsel %vm1785, %v2885, 0
          %v2933 = vsel %vm1785, %v2887, 0
          %v2936 = vsel %vm1785, %v2889, 0
          %2938 = vmatprep.subr.bf16.mxu0 0
          %2939 = vmatpush1.bf16.xpose.msra.mxu0 %v2936
          %2940 = vmatprep.subr.bf16.mxu0 0
          %2941 = vmatpush1.bf16.xpose.msra.mxu0 %v2933
          %2942 = vmatprep.subr.bf16.mxu0 0
          %2943 = vmatpush1.bf16.xpose.msra.mxu0 %v2930
          %2944 = vmatprep.subr.bf16.mxu0 0
          %2945 = vmatpush1.bf16.xpose.msra.mxu0 %v2927
          %2946 = vmatprep.subr.bf16.mxu0 0
          %2947 = vmatpush1.bf16.xpose.msra.mxu0 %v2924
          %2948 = vmatprep.subr.bf16.mxu0 0
          %2949 = vmatpush1.bf16.xpose.msra.mxu0 %v2921
          %2950 = vmatprep.subr.bf16.mxu0 0
          %2951 = vmatpush1.bf16.xpose.msra.mxu0 %v2918
          %2952 = vmatprep.subr.bf16.mxu0 0
          %2953 = vmatpush1.bf16.xpose.msra.mxu0 %v2915
          %2954 = vmatprep.subr.bf16.mxu0 0
          %2955 = vmatpush2.bf16.xpose.msra.mxu0 0
          %2956 = vmatprep.subr.bf16.mxu0 0
          %2957 = vmatpush2.bf16.xpose.msra.mxu0 0
          %2958 = vmatprep.subr.bf16.mxu0 0
          %2959 = vmatpush2.bf16.xpose.msra.mxu0 0
          %2960 = vmatprep.subr.bf16.mxu0 0
          %2961 = vmatpush2.bf16.xpose.msra.mxu0 0
          %2962 = vmatprep.subr.bf16.mxu0 0
          %2963 = vmatpush2.bf16.xpose.msra.mxu0 0
          %2964 = vmatprep.subr.bf16.mxu0 0
          %2965 = vmatpush2.bf16.xpose.msra.mxu0 0
          %2966 = vmatprep.subr.bf16.mxu0 0
          %2967 = vmatpush2.bf16.xpose.msra.mxu0 0
          %2968 = vmatprep.subr.bf16.mxu0 0
          %2969 = vmatpush2.bf16.xpose.msra.mxu0 0
          %2970 = vmatprep.mubr.bf16.mxu0 0
          %2971 = vmatmul.mubr.bf16.gmra.mxu0 %v2891
          %v2972 = vpop.f32.mrf.mxu0
          %v2973 = vadd.f32 %v504, %v2972
          %v2974 = vpop.f32.mrf.mxu0
          %v2975 = vpop.f32.mrf.mxu0
          %v2976 = vadd.f32 %v505, %v2975
          %v2977 = vpop.f32.mrf.mxu0
          %2978 = vmatprep.mubr.bf16.mxu0 0
          %2979 = vmatmul.mubr.bf16.gmra.mxu0 %v2894
          %v2980 = vpop.f32.mrf.mxu0
          %v2981 = vadd.f32 %v506, %v2980
          %v2982 = vpop.f32.mrf.mxu0
          %v2983 = vpop.f32.mrf.mxu0
          %v2984 = vadd.f32 %v507, %v2983
          %v2985 = vpop.f32.mrf.mxu0
          %2986 = vmatprep.mubr.bf16.mxu0 0
          %2987 = vmatmul.mubr.bf16.gmra.mxu0 %v2897
          %v2988 = vpop.f32.mrf.mxu0
          %v2989 = vadd.f32 %v508, %v2988
          %v2990 = vpop.f32.mrf.mxu0
          %v2991 = vpop.f32.mrf.mxu0
          %v2992 = vadd.f32 %v509, %v2991
          %v2993 = vpop.f32.mrf.mxu0
          %2994 = vmatprep.mubr.bf16.mxu0 0
          %2995 = vmatmul.mubr.bf16.gmra.mxu0 %v2900
          %v2996 = vpop.f32.mrf.mxu0
          %v2997 = vadd.f32 %v510, %v2996
          %v2998 = vpop.f32.mrf.mxu0
          %v2999 = vpop.f32.mrf.mxu0
          %v3000 = vadd.f32 %v511, %v2999
          %v3001 = vpop.f32.mrf.mxu0
          %3002 = vmatprep.mubr.bf16.mxu0 0
          %3003 = vmatmul.mubr.bf16.gmra.mxu0 %v2903
          %v3004 = vpop.f32.mrf.mxu0
          %v3005 = vadd.f32 %v512, %v3004
          %v3006 = vpop.f32.mrf.mxu0
          %v3007 = vpop.f32.mrf.mxu0
          %v3008 = vadd.f32 %v513, %v3007
          %v3009 = vpop.f32.mrf.mxu0
          %3010 = vmatprep.mubr.bf16.mxu0 0
          %3011 = vmatmul.mubr.bf16.gmra.mxu0 %v2906
          %v3012 = vpop.f32.mrf.mxu0
          %v3013 = vadd.f32 %v514, %v3012
          %v3014 = vpop.f32.mrf.mxu0
          %v3015 = vpop.f32.mrf.mxu0
          %v3016 = vadd.f32 %v515, %v3015
          %v3017 = vpop.f32.mrf.mxu0
          %3018 = vmatprep.mubr.bf16.mxu0 0
          %3019 = vmatmul.mubr.bf16.gmra.mxu0 %v2909
          %v3020 = vpop.f32.mrf.mxu0
          %v3021 = vadd.f32 %v516, %v3020
          %v3022 = vpop.f32.mrf.mxu0
          %v3023 = vpop.f32.mrf.mxu0
          %v3024 = vadd.f32 %v517, %v3023
          %v3025 = vpop.f32.mrf.mxu0
          %3026 = vmatprep.mubr.bf16.mxu0 0
          %3027 = vmatmul.mubr.bf16.gmra.mxu0 %v2912
          %v3028 = vpop.f32.mrf.mxu0
          %v3029 = vadd.f32 %v518, %v3028
          %v3030 = vpop.f32.mrf.mxu0
          %v3031 = vpop.f32.mrf.mxu0
          %v3032 = vadd.f32 %v519, %v3031
          %v3033 = vpop.f32.mrf.mxu0
          %3034 = vdwg.mxu0
          %3035 = vmax.xlane.f32.xlu0 %v2973
          %v3036 = vpop.xlane.xlu0 %3035
          %3037 = vmax.xlane.f32.xlu0 %v2976
          %v3038 = vpop.xlane.xlu0 %3037
          %3039 = vmax.xlane.f32.xlu0 %v2981
          %v3040 = vpop.xlane.xlu0 %3039
          %3041 = vmax.xlane.f32.xlu0 %v2984
          %v3042 = vpop.xlane.xlu0 %3041
          %3043 = vmax.xlane.f32.xlu0 %v2989
          %v3044 = vpop.xlane.xlu0 %3043
          %3045 = vmax.xlane.f32.xlu0 %v2992
          %v3046 = vpop.xlane.xlu0 %3045
          %3047 = vmax.xlane.f32.xlu0 %v2997
          %v3048 = vpop.xlane.xlu0 %3047
          %3049 = vmax.xlane.f32.xlu0 %v3000
          %v3050 = vpop.xlane.xlu0 %3049
          %3051 = vmax.xlane.f32.xlu0 %v3005
          %v3052 = vpop.xlane.xlu0 %3051
          %3053 = vmax.xlane.f32.xlu0 %v3008
          %v3054 = vpop.xlane.xlu0 %3053
          %3055 = vmax.xlane.f32.xlu0 %v3013
          %v3056 = vpop.xlane.xlu0 %3055
          %3057 = vmax.xlane.f32.xlu0 %v3016
          %v3058 = vpop.xlane.xlu0 %3057
          %3059 = vmax.xlane.f32.xlu0 %v3021
          %v3060 = vpop.xlane.xlu0 %3059
          %3061 = vmax.xlane.f32.xlu0 %v3024
          %v3062 = vpop.xlane.xlu0 %3061
          %3063 = vmax.xlane.f32.xlu0 %v3029
          %v3064 = vpop.xlane.xlu0 %3063
          %3065 = vmax.xlane.f32.xlu0 %v3032
          %v3066 = vpop.xlane.xlu0 %3065
          %v3067 = vsub.f32 %v2973, %v3036
          %v3068 = vsub.f32 %v2976, %v3038
          %v3069 = vsub.f32 %v2981, %v3040
          %v3070 = vsub.f32 %v2984, %v3042
          %v3071 = vsub.f32 %v2989, %v3044
          %v3072 = vsub.f32 %v2992, %v3046
          %v3073 = vsub.f32 %v2997, %v3048
          %v3074 = vsub.f32 %v3000, %v3050
          %v3075 = vsub.f32 %v3005, %v3052
          %v3076 = vsub.f32 %v3008, %v3054
          %v3077 = vsub.f32 %v3013, %v3056
          %v3078 = vsub.f32 %v3016, %v3058
          %v3079 = vsub.f32 %v3021, %v3060
          %v3080 = vsub.f32 %v3024, %v3062
          %v3081 = vsub.f32 %v3029, %v3064
          %v3082 = vsub.f32 %v3032, %v3066
          %v3083 = vmul.f32 %v3067, 1.442695
          %v3084 = vpow.pop %v3083
          %v3085 = vmul.f32 %v3068, 1.442695
          %v3086 = vpow.pop %v3085
          %v3087 = vmul.f32 %v3069, 1.442695
          %v3088 = vpow.pop %v3087
          %v3089 = vmul.f32 %v3070, 1.442695
          %v3090 = vpow.pop %v3089
          %v3091 = vmul.f32 %v3071, 1.442695
          %v3092 = vpow.pop %v3091
          %v3093 = vmul.f32 %v3072, 1.442695
          %v3094 = vpow.pop %v3093
          %v3095 = vmul.f32 %v3073, 1.442695
          %v3096 = vpow.pop %v3095
          %v3097 = vmul.f32 %v3074, 1.442695
          %v3098 = vpow.pop %v3097
          %v3099 = vmul.f32 %v3075, 1.442695
          %v3100 = vpow.pop %v3099
          %v3101 = vmul.f32 %v3076, 1.442695
          %v3102 = vpow.pop %v3101
          %v3103 = vmul.f32 %v3077, 1.442695
          %v3104 = vpow.pop %v3103
          %v3105 = vmul.f32 %v3078, 1.442695
          %v3106 = vpow.pop %v3105
          %v3107 = vmul.f32 %v3079, 1.442695
          %v3108 = vpow.pop %v3107
          %v3109 = vmul.f32 %v3080, 1.442695
          %v3110 = vpow.pop %v3109
          %v3111 = vmul.f32 %v3081, 1.442695
          %v3112 = vpow.pop %v3111
          %v3113 = vmul.f32 %v3082, 1.442695
          %v3114 = vpow.pop %v3113
          %3115 = vadd.xlane.f32.xlu0 %v3084
          %v3116 = vpop.xlane.xlu0 %3115
          %3117 = vadd.xlane.f32.xlu0 %v3086
          %v3118 = vpop.xlane.xlu0 %3117
          %3119 = vadd.xlane.f32.xlu0 %v3088
          %v3120 = vpop.xlane.xlu0 %3119
          %3121 = vadd.xlane.f32.xlu0 %v3090
          %v3122 = vpop.xlane.xlu0 %3121
          %3123 = vadd.xlane.f32.xlu0 %v3092
          %v3124 = vpop.xlane.xlu0 %3123
          %3125 = vadd.xlane.f32.xlu0 %v3094
          %v3126 = vpop.xlane.xlu0 %3125
          %3127 = vadd.xlane.f32.xlu0 %v3096
          %v3128 = vpop.xlane.xlu0 %3127
          %3129 = vadd.xlane.f32.xlu0 %v3098
          %v3130 = vpop.xlane.xlu0 %3129
          %3131 = vadd.xlane.f32.xlu0 %v3100
          %v3132 = vpop.xlane.xlu0 %3131
          %3133 = vadd.xlane.f32.xlu0 %v3102
          %v3134 = vpop.xlane.xlu0 %3133
          %3135 = vadd.xlane.f32.xlu0 %v3104
          %v3136 = vpop.xlane.xlu0 %3135
          %3137 = vadd.xlane.f32.xlu0 %v3106
          %v3138 = vpop.xlane.xlu0 %3137
          %3139 = vadd.xlane.f32.xlu0 %v3108
          %v3140 = vpop.xlane.xlu0 %3139
          %3141 = vadd.xlane.f32.xlu0 %v3110
          %v3142 = vpop.xlane.xlu0 %3141
          %3143 = vadd.xlane.f32.xlu0 %v3112
          %v3144 = vpop.xlane.xlu0 %3143
          %3145 = vadd.xlane.f32.xlu0 %v3114
          %v3146 = vpop.xlane.xlu0 %3145
          %v3147 = vrcp.pop %v3116
          %v3148 = vrcp.pop %v3118
          %v3149 = vrcp.pop %v3120
          %v3150 = vrcp.pop %v3122
          %v3151 = vrcp.pop %v3124
          %v3152 = vrcp.pop %v3126
          %v3153 = vrcp.pop %v3128
          %v3154 = vrcp.pop %v3130
          %v3155 = vrcp.pop %v3132
          %v3156 = vrcp.pop %v3134
          %v3157 = vrcp.pop %v3136
          %v3158 = vrcp.pop %v3138
          %v3159 = vrcp.pop %v3140
          %v3160 = vrcp.pop %v3142
          %v3161 = vrcp.pop %v3144
          %v3162 = vrcp.pop %v3146
          %v3163 = vmul.f32 %v3084, %v3147
          %v3164 = vmul.f32 %v3086, %v3148
          %v3165 = vmul.f32 %v3088, %v3149
          %v3166 = vmul.f32 %v3090, %v3150
          %v3167 = vmul.f32 %v3092, %v3151
          %v3168 = vmul.f32 %v3094, %v3152
          %v3169 = vmul.f32 %v3096, %v3153
          %v3170 = vmul.f32 %v3098, %v3154
          %v3171 = vmul.f32 %v3100, %v3155
          %v3172 = vmul.f32 %v3102, %v3156
          %v3173 = vmul.f32 %v3104, %v3157
          %v3174 = vmul.f32 %v3106, %v3158
          %v3175 = vmul.f32 %v3108, %v3159
          %v3176 = vmul.f32 %v3110, %v3160
          %v3177 = vmul.f32 %v3112, %v3161
          %v3178 = vmul.f32 %v3114, %v3162
          %v3179 = vpack.c.bf16 %v3164, %v3163
          %v3180 = vpack.c.bf16 %v3166, %v3165
          %v3181 = vpack.c.bf16 %v3168, %v3167
          %v3182 = vpack.c.bf16 %v3170, %v3169
          %v3183 = vpack.c.bf16 %v3172, %v3171
          %v3184 = vpack.c.bf16 %v3174, %v3173
          %v3185 = vpack.c.bf16 %v3176, %v3175
          %v3186 = vpack.c.bf16 %v3178, %v3177
          %3187 = vrot.lane.b32.xlu0 %v2099, 64
          %v3188 = vpop.permute.xlu0 %3187
          %3189 = vrot.lane.b32.xlu0 %v2100, 64
          %v3190 = vpop.permute.xlu0 %3189
          %3191 = vrot.lane.b32.xlu0 %v2101, 64
          %v3192 = vpop.permute.xlu0 %3191
          %3193 = vrot.lane.b32.xlu0 %v2102, 64
          %v3194 = vpop.permute.xlu0 %3193
          %3195 = vrot.lane.b32.xlu0 %v2103, 64
          %v3196 = vpop.permute.xlu0 %3195
          %3197 = vrot.lane.b32.xlu0 %v2104, 64
          %v3198 = vpop.permute.xlu0 %3197
          %3199 = vrot.lane.b32.xlu0 %v2105, 64
          %v3200 = vpop.permute.xlu0 %3199
          %3201 = vrot.lane.b32.xlu0 %v2106, 64
          %v3202 = vpop.permute.xlu0 %3201
          %3211 = vmatprep.subr.bf16.mxu0 0
          %3212 = vmatpush1.bf16.msra.mxu0 %v3202
          %3213 = vmatprep.subr.bf16.mxu0 0
          %3214 = vmatpush1.bf16.msra.mxu0 %v3200
          %3215 = vmatprep.subr.bf16.mxu0 0
          %3216 = vmatpush1.bf16.msra.mxu0 %v3198
          %3217 = vmatprep.subr.bf16.mxu0 0
          %3218 = vmatpush1.bf16.msra.mxu0 %v3196
          %3219 = vmatprep.subr.bf16.mxu0 0
          %3220 = vmatpush1.bf16.msra.mxu0 %v3194
          %3221 = vmatprep.subr.bf16.mxu0 0
          %3222 = vmatpush1.bf16.msra.mxu0 %v3192
          %3223 = vmatprep.subr.bf16.mxu0 0
          %3224 = vmatpush1.bf16.msra.mxu0 %v3190
          %3225 = vmatprep.subr.bf16.mxu0 0
          %3226 = vmatpush1.bf16.msra.mxu0 %v3188
          %3227 = vmatprep.subr.bf16.mxu0 0
          %3228 = vmatpush2.bf16.msra.mxu0 0
          %3229 = vmatprep.subr.bf16.mxu0 0
          %3230 = vmatpush2.bf16.msra.mxu0 0
          %3231 = vmatprep.subr.bf16.mxu0 0
          %3232 = vmatpush2.bf16.msra.mxu0 0
          %3233 = vmatprep.subr.bf16.mxu0 0
          %3234 = vmatpush2.bf16.msra.mxu0 0
          %3235 = vmatprep.subr.bf16.mxu0 0
          %3236 = vmatpush2.bf16.msra.mxu0 0
          %3237 = vmatprep.subr.bf16.mxu0 0
          %3238 = vmatpush2.bf16.msra.mxu0 0
          %3239 = vmatprep.subr.bf16.mxu0 0
          %3240 = vmatpush2.bf16.msra.mxu0 0
          %3241 = vmatprep.subr.bf16.mxu0 0
          %3242 = vmatpush2.bf16.msra.mxu0 0
          %3243 = vmatprep.mubr.bf16.mxu0 0
          %3244 = vmatmul.mubr.bf16.gmra.mxu0 %v3179
          %v3245 = vpop.f32.mrf.mxu0
          %v3246 = vadd.f32 0.0, %v3245
          %v3247 = vpop.f32.mrf.mxu0
          %v3248 = vpop.f32.mrf.mxu0
          %v3249 = vadd.f32 0.0, %v3248
          %v3250 = vpop.f32.mrf.mxu0
          %3251 = vmatprep.mubr.bf16.mxu0 0
          %3252 = vmatmul.mubr.bf16.gmra.mxu0 %v3180
          %v3253 = vpop.f32.mrf.mxu0
          %v3254 = vadd.f32 0.0, %v3253
          %v3255 = vpop.f32.mrf.mxu0
          %v3256 = vpop.f32.mrf.mxu0
          %v3257 = vadd.f32 0.0, %v3256
          %v3258 = vpop.f32.mrf.mxu0
          %3259 = vmatprep.mubr.bf16.mxu0 0
          %3260 = vmatmul.mubr.bf16.gmra.mxu0 %v3181
          %v3261 = vpop.f32.mrf.mxu0
          %v3262 = vadd.f32 0.0, %v3261
          %v3263 = vpop.f32.mrf.mxu0
          %v3264 = vpop.f32.mrf.mxu0
          %v3265 = vadd.f32 0.0, %v3264
          %v3266 = vpop.f32.mrf.mxu0
          %3267 = vmatprep.mubr.bf16.mxu0 0
          %3268 = vmatmul.mubr.bf16.gmra.mxu0 %v3182
          %v3269 = vpop.f32.mrf.mxu0
          %v3270 = vadd.f32 0.0, %v3269
          %v3271 = vpop.f32.mrf.mxu0
          %v3272 = vpop.f32.mrf.mxu0
          %v3273 = vadd.f32 0.0, %v3272
          %v3274 = vpop.f32.mrf.mxu0
          %3275 = vmatprep.mubr.bf16.mxu0 0
          %3276 = vmatmul.mubr.bf16.gmra.mxu0 %v3183
          %v3277 = vpop.f32.mrf.mxu0
          %v3278 = vadd.f32 0.0, %v3277
          %v3279 = vpop.f32.mrf.mxu0
          %v3280 = vpop.f32.mrf.mxu0
          %v3281 = vadd.f32 0.0, %v3280
          %v3282 = vpop.f32.mrf.mxu0
          %3283 = vmatprep.mubr.bf16.mxu0 0
          %3284 = vmatmul.mubr.bf16.gmra.mxu0 %v3184
          %v3285 = vpop.f32.mrf.mxu0
          %v3286 = vadd.f32 0.0, %v3285
          %v3287 = vpop.f32.mrf.mxu0
          %v3288 = vpop.f32.mrf.mxu0
          %v3289 = vadd.f32 0.0, %v3288
          %v3290 = vpop.f32.mrf.mxu0
          %3291 = vmatprep.mubr.bf16.mxu0 0
          %3292 = vmatmul.mubr.bf16.gmra.mxu0 %v3185
          %v3293 = vpop.f32.mrf.mxu0
          %v3294 = vadd.f32 0.0, %v3293
          %v3295 = vpop.f32.mrf.mxu0
          %v3296 = vpop.f32.mrf.mxu0
          %v3297 = vadd.f32 0.0, %v3296
          %v3298 = vpop.f32.mrf.mxu0
          %3299 = vmatprep.mubr.bf16.mxu0 0
          %3300 = vmatmul.mubr.bf16.gmra.mxu0 %v3186
          %v3301 = vpop.f32.mrf.mxu0
          %v3302 = vadd.f32 0.0, %v3301
          %v3303 = vpop.f32.mrf.mxu0
          %v3304 = vpop.f32.mrf.mxu0
          %v3305 = vadd.f32 0.0, %v3304
          %v3306 = vpop.f32.mrf.mxu0
          %3307 = vdwg.mxu0
          %v3308 = vpack.c.bf16 %v3249, %v3246
          %v3309 = vpack.c.bf16 %v3257, %v3254
          %v3310 = vpack.c.bf16 %v3265, %v3262
          %v3311 = vpack.c.bf16 %v3273, %v3270
          %v3312 = vpack.c.bf16 %v3281, %v3278
          %v3313 = vpack.c.bf16 %v3289, %v3286
          %v3314 = vpack.c.bf16 %v3297, %v3294
          %v3315 = vpack.c.bf16 %v3305, %v3302
          %v3324 = vunpack.c.l.b16 %v3308
          %v3325 = vunpack.c.h.b16 %v3308
          %v3326 = vunpack.c.l.b16 %v3309
          %v3327 = vunpack.c.h.b16 %v3309
          %v3328 = vunpack.c.l.b16 %v3310
          %v3329 = vunpack.c.h.b16 %v3310
          %v3330 = vunpack.c.l.b16 %v3311
          %v3331 = vunpack.c.h.b16 %v3311
          %v3332 = vunpack.c.l.b16 %v3312
          %v3333 = vunpack.c.h.b16 %v3312
          %v3334 = vunpack.c.l.b16 %v3313
          %v3335 = vunpack.c.h.b16 %v3313
          %v3336 = vunpack.c.l.b16 %v3314
          %v3337 = vunpack.c.h.b16 %v3314
          %v3338 = vunpack.c.l.b16 %v3315
          %v3339 = vunpack.c.h.b16 %v3315
          %v3340 = vpack.c.b16 %v3324, %v3324
          %v3341 = vpack.c.b16 %v3325, %v3325
          %v3342 = vpack.c.b16 %v3326, %v3326
          %v3343 = vpack.c.b16 %v3327, %v3327
          %v3344 = vpack.c.b16 %v3328, %v3328
          %v3345 = vpack.c.b16 %v3329, %v3329
          %v3346 = vpack.c.b16 %v3330, %v3330
          %v3347 = vpack.c.b16 %v3331, %v3331
          %v3348 = vpack.c.b16 %v3332, %v3332
          %v3349 = vpack.c.b16 %v3333, %v3333
          %v3350 = vpack.c.b16 %v3334, %v3334
          %v3351 = vpack.c.b16 %v3335, %v3335
          %v3352 = vpack.c.b16 %v3336, %v3336
          %v3353 = vpack.c.b16 %v3337, %v3337
          %v3354 = vpack.c.b16 %v3338, %v3338
          %v3355 = vpack.c.b16 %v3339, %v3339
          %3356 = vrot.lane.b32.xlu0 %v3340, 64
          %v3357 = vpop.permute.xlu0 %3356
          %3358 = vrot.lane.b32.xlu0 %v3341, 64
          %v3359 = vpop.permute.xlu0 %3358
          %3360 = vrot.lane.b32.xlu0 %v3342, 64
          %v3361 = vpop.permute.xlu0 %3360
          %3362 = vrot.lane.b32.xlu0 %v3343, 64
          %v3363 = vpop.permute.xlu0 %3362
          %3364 = vrot.lane.b32.xlu0 %v3344, 64
          %v3365 = vpop.permute.xlu0 %3364
          %3366 = vrot.lane.b32.xlu0 %v3345, 64
          %v3367 = vpop.permute.xlu0 %3366
          %3368 = vrot.lane.b32.xlu0 %v3346, 64
          %v3369 = vpop.permute.xlu0 %3368
          %3370 = vrot.lane.b32.xlu0 %v3347, 64
          %v3371 = vpop.permute.xlu0 %3370
          %3372 = vrot.lane.b32.xlu0 %v3348, 64
          %v3373 = vpop.permute.xlu0 %3372
          %3374 = vrot.lane.b32.xlu0 %v3349, 64
          %v3375 = vpop.permute.xlu0 %3374
          %3376 = vrot.lane.b32.xlu0 %v3350, 64
          %v3377 = vpop.permute.xlu0 %3376
          %3378 = vrot.lane.b32.xlu0 %v3351, 64
          %v3379 = vpop.permute.xlu0 %3378
          %3380 = vrot.lane.b32.xlu0 %v3352, 64
          %v3381 = vpop.permute.xlu0 %3380
          %3382 = vrot.lane.b32.xlu0 %v3353, 64
          %v3383 = vpop.permute.xlu0 %3382
          %3384 = vrot.lane.b32.xlu0 %v3354, 64
          %v3385 = vpop.permute.xlu0 %3384
          %3386 = vrot.lane.b32.xlu0 %v3355, 64
          %v3387 = vpop.permute.xlu0 %3386
          %vm3404 = vcmask 781824
          %3405 = vst.msk [vmem:[%s2277] sm:$0xf] %vm3404, %v3357
          %3406 = vst.msk [vmem:[%s2277 + $0x4] sm:$0xf] %vm3404, %v3359
          %3407 = vst.msk [vmem:[%s2277 + $0x8] sm:$0xf] %vm3404, %v3361
          %3408 = vst.msk [vmem:[%s2277 + $0xc] sm:$0xf] %vm3404, %v3363
          %3409 = vst.msk [vmem:[%s2277 + $0x10] sm:$0xf] %vm3404, %v3365
          %3410 = vst.msk [vmem:[%s2277 + $0x14] sm:$0xf] %vm3404, %v3367
          %3411 = vst.msk [vmem:[%s2277 + $0x18] sm:$0xf] %vm3404, %v3369
          %3412 = vst.msk [vmem:[%s2277 + $0x1c] sm:$0xf] %vm3404, %v3371
          %3413 = vst.msk [vmem:[%s2277 + $0x20] sm:$0xf] %vm3404, %v3373
          %3414 = vst.msk [vmem:[%s2277 + $0x24] sm:$0xf] %vm3404, %v3375
          %3415 = vst.msk [vmem:[%s2277 + $0x28] sm:$0xf] %vm3404, %v3377
          %3416 = vst.msk [vmem:[%s2277 + $0x2c] sm:$0xf] %vm3404, %v3379
          %3417 = vst.msk [vmem:[%s2277 + $0x30] sm:$0xf] %vm3404, %v3381
          %3418 = vst.msk [vmem:[%s2277 + $0x34] sm:$0xf] %vm3404, %v3383
          %3419 = vst.msk [vmem:[%s2277 + $0x38] sm:$0xf] %vm3404, %v3385
          %3420 = vst.msk [vmem:[%s2277 + $0x3c] sm:$0xf] %vm3404, %v3387
          %3421 = vrot.lane.b32.xlu0 %v1737, 32
          %v3422 = vpop.permute.xlu0 %3421
          %3423 = vrot.lane.b32.xlu0 %v1738, 32
          %v3424 = vpop.permute.xlu0 %3423
          %3425 = vrot.lane.b32.xlu0 %v1739, 32
          %v3426 = vpop.permute.xlu0 %3425
          %3427 = vrot.lane.b32.xlu0 %v1740, 32
          %v3428 = vpop.permute.xlu0 %3427
          %3429 = vrot.lane.b32.xlu0 %v1741, 32
          %v3430 = vpop.permute.xlu0 %3429
          %3431 = vrot.lane.b32.xlu0 %v1742, 32
          %v3432 = vpop.permute.xlu0 %3431
          %3433 = vrot.lane.b32.xlu0 %v1743, 32
          %v3434 = vpop.permute.xlu0 %3433
          %3435 = vrot.lane.b32.xlu0 %v1744, 32
          %v3436 = vpop.permute.xlu0 %3435
          %3437 = vrot.lane.b32.xlu0 %v1777, 32
          %v3438 = vpop.permute.xlu0 %3437
          %3439 = vrot.lane.b32.xlu0 %v1778, 32
          %v3440 = vpop.permute.xlu0 %3439
          %3441 = vrot.lane.b32.xlu0 %v1779, 32
          %v3442 = vpop.permute.xlu0 %3441
          %3443 = vrot.lane.b32.xlu0 %v1780, 32
          %v3444 = vpop.permute.xlu0 %3443
          %3445 = vrot.lane.b32.xlu0 %v1781, 32
          %v3446 = vpop.permute.xlu0 %3445
          %3447 = vrot.lane.b32.xlu0 %v1782, 32
          %v3448 = vpop.permute.xlu0 %3447
          %3449 = vrot.lane.b32.xlu0 %v1783, 32
          %v3450 = vpop.permute.xlu0 %3449
          %3451 = vrot.lane.b32.xlu0 %v1784, 32
          %v3452 = vpop.permute.xlu0 %3451
          %v3454 = vsel %vm1785, %v3422, 0
          %v3457 = vsel %vm1785, %v3424, 0
          %v3460 = vsel %vm1785, %v3426, 0
          %v3463 = vsel %vm1785, %v3428, 0
          %v3466 = vsel %vm1785, %v3430, 0
          %v3469 = vsel %vm1785, %v3432, 0
          %v3472 = vsel %vm1785, %v3434, 0
          %v3475 = vsel %vm1785, %v3436, 0
          %v3478 = vsel %vm1785, %v3438, 0
          %v3481 = vsel %vm1785, %v3440, 0
          %v3484 = vsel %vm1785, %v3442, 0
          %v3487 = vsel %vm1785, %v3444, 0
          %v3490 = vsel %vm1785, %v3446, 0
          %v3493 = vsel %vm1785, %v3448, 0
          %v3496 = vsel %vm1785, %v3450, 0
          %v3499 = vsel %vm1785, %v3452, 0
          %3501 = vmatprep.subr.bf16.mxu0 0
          %3502 = vmatpush1.bf16.xpose.msra.mxu0 %v3499
          %3503 = vmatprep.subr.bf16.mxu0 0
          %3504 = vmatpush1.bf16.xpose.msra.mxu0 %v3496
          %3505 = vmatprep.subr.bf16.mxu0 0
          %3506 = vmatpush1.bf16.xpose.msra.mxu0 %v3493
          %3507 = vmatprep.subr.bf16.mxu0 0
          %3508 = vmatpush1.bf16.xpose.msra.mxu0 %v3490
          %3509 = vmatprep.subr.bf16.mxu0 0
          %3510 = vmatpush1.bf16.xpose.msra.mxu0 %v3487
          %3511 = vmatprep.subr.bf16.mxu0 0
          %3512 = vmatpush1.bf16.xpose.msra.mxu0 %v3484
          %3513 = vmatprep.subr.bf16.mxu0 0
          %3514 = vmatpush1.bf16.xpose.msra.mxu0 %v3481
          %3515 = vmatprep.subr.bf16.mxu0 0
          %3516 = vmatpush1.bf16.xpose.msra.mxu0 %v3478
          %3517 = vmatprep.subr.bf16.mxu0 0
          %3518 = vmatpush2.bf16.xpose.msra.mxu0 0
          %3519 = vmatprep.subr.bf16.mxu0 0
          %3520 = vmatpush2.bf16.xpose.msra.mxu0 0
          %3521 = vmatprep.subr.bf16.mxu0 0
          %3522 = vmatpush2.bf16.xpose.msra.mxu0 0
          %3523 = vmatprep.subr.bf16.mxu0 0
          %3524 = vmatpush2.bf16.xpose.msra.mxu0 0
          %3525 = vmatprep.subr.bf16.mxu0 0
          %3526 = vmatpush2.bf16.xpose.msra.mxu0 0
          %3527 = vmatprep.subr.bf16.mxu0 0
          %3528 = vmatpush2.bf16.xpose.msra.mxu0 0
          %3529 = vmatprep.subr.bf16.mxu0 0
          %3530 = vmatpush2.bf16.xpose.msra.mxu0 0
          %3531 = vmatprep.subr.bf16.mxu0 0
          %3532 = vmatpush2.bf16.xpose.msra.mxu0 0
          %3533 = vmatprep.mubr.bf16.mxu0 0
          %3534 = vmatmul.mubr.bf16.gmra.mxu0 %v3454
          %v3535 = vpop.f32.mrf.mxu0
          %v3536 = vadd.f32 %v504, %v3535
          %v3537 = vpop.f32.mrf.mxu0
          %v3538 = vpop.f32.mrf.mxu0
          %v3539 = vadd.f32 %v505, %v3538
          %v3540 = vpop.f32.mrf.mxu0
          %3541 = vmatprep.mubr.bf16.mxu0 0
          %3542 = vmatmul.mubr.bf16.gmra.mxu0 %v3457
          %v3543 = vpop.f32.mrf.mxu0
          %v3544 = vadd.f32 %v506, %v3543
          %v3545 = vpop.f32.mrf.mxu0
          %v3546 = vpop.f32.mrf.mxu0
          %v3547 = vadd.f32 %v507, %v3546
          %v3548 = vpop.f32.mrf.mxu0
          %3549 = vmatprep.mubr.bf16.mxu0 0
          %3550 = vmatmul.mubr.bf16.gmra.mxu0 %v3460
          %v3551 = vpop.f32.mrf.mxu0
          %v3552 = vadd.f32 %v508, %v3551
          %v3553 = vpop.f32.mrf.mxu0
          %v3554 = vpop.f32.mrf.mxu0
          %v3555 = vadd.f32 %v509, %v3554
          %v3556 = vpop.f32.mrf.mxu0
          %3557 = vmatprep.mubr.bf16.mxu0 0
          %3558 = vmatmul.mubr.bf16.gmra.mxu0 %v3463
          %v3559 = vpop.f32.mrf.mxu0
          %v3560 = vadd.f32 %v510, %v3559
          %v3561 = vpop.f32.mrf.mxu0
          %v3562 = vpop.f32.mrf.mxu0
          %v3563 = vadd.f32 %v511, %v3562
          %v3564 = vpop.f32.mrf.mxu0
          %3565 = vmatprep.mubr.bf16.mxu0 0
          %3566 = vmatmul.mubr.bf16.gmra.mxu0 %v3466
          %v3567 = vpop.f32.mrf.mxu0
          %v3568 = vadd.f32 %v512, %v3567
          %v3569 = vpop.f32.mrf.mxu0
          %v3570 = vpop.f32.mrf.mxu0
          %v3571 = vadd.f32 %v513, %v3570
          %v3572 = vpop.f32.mrf.mxu0
          %3573 = vmatprep.mubr.bf16.mxu0 0
          %3574 = vmatmul.mubr.bf16.gmra.mxu0 %v3469
          %v3575 = vpop.f32.mrf.mxu0
          %v3576 = vadd.f32 %v514, %v3575
          %v3577 = vpop.f32.mrf.mxu0
          %v3578 = vpop.f32.mrf.mxu0
          %v3579 = vadd.f32 %v515, %v3578
          %v3580 = vpop.f32.mrf.mxu0
          %3581 = vmatprep.mubr.bf16.mxu0 0
          %3582 = vmatmul.mubr.bf16.gmra.mxu0 %v3472
          %v3583 = vpop.f32.mrf.mxu0
          %v3584 = vadd.f32 %v516, %v3583
          %v3585 = vpop.f32.mrf.mxu0
          %v3586 = vpop.f32.mrf.mxu0
          %v3587 = vadd.f32 %v517, %v3586
          %v3588 = vpop.f32.mrf.mxu0
          %3589 = vmatprep.mubr.bf16.mxu0 0
          %3590 = vmatmul.mubr.bf16.gmra.mxu0 %v3475
          %v3591 = vpop.f32.mrf.mxu0
          %v3592 = vadd.f32 %v518, %v3591
          %v3593 = vpop.f32.mrf.mxu0
          %v3594 = vpop.f32.mrf.mxu0
          %v3595 = vadd.f32 %v519, %v3594
          %v3596 = vpop.f32.mrf.mxu0
          %3597 = vdwg.mxu0
          %3598 = vmax.xlane.f32.xlu0 %v3536
          %v3599 = vpop.xlane.xlu0 %3598
          %3600 = vmax.xlane.f32.xlu0 %v3539
          %v3601 = vpop.xlane.xlu0 %3600
          %3602 = vmax.xlane.f32.xlu0 %v3544
          %v3603 = vpop.xlane.xlu0 %3602
          %3604 = vmax.xlane.f32.xlu0 %v3547
          %v3605 = vpop.xlane.xlu0 %3604
          %3606 = vmax.xlane.f32.xlu0 %v3552
          %v3607 = vpop.xlane.xlu0 %3606
          %3608 = vmax.xlane.f32.xlu0 %v3555
          %v3609 = vpop.xlane.xlu0 %3608
          %3610 = vmax.xlane.f32.xlu0 %v3560
          %v3611 = vpop.xlane.xlu0 %3610
          %3612 = vmax.xlane.f32.xlu0 %v3563
          %v3613 = vpop.xlane.xlu0 %3612
          %3614 = vmax.xlane.f32.xlu0 %v3568
          %v3615 = vpop.xlane.xlu0 %3614
          %3616 = vmax.xlane.f32.xlu0 %v3571
          %v3617 = vpop.xlane.xlu0 %3616
          %3618 = vmax.xlane.f32.xlu0 %v3576
          %v3619 = vpop.xlane.xlu0 %3618
          %3620 = vmax.xlane.f32.xlu0 %v3579
          %v3621 = vpop.xlane.xlu0 %3620
          %3622 = vmax.xlane.f32.xlu0 %v3584
          %v3623 = vpop.xlane.xlu0 %3622
          %3624 = vmax.xlane.f32.xlu0 %v3587
          %v3625 = vpop.xlane.xlu0 %3624
          %3626 = vmax.xlane.f32.xlu0 %v3592
          %v3627 = vpop.xlane.xlu0 %3626
          %3628 = vmax.xlane.f32.xlu0 %v3595
          %v3629 = vpop.xlane.xlu0 %3628
          %v3630 = vsub.f32 %v3536, %v3599
          %v3631 = vsub.f32 %v3539, %v3601
          %v3632 = vsub.f32 %v3544, %v3603
          %v3633 = vsub.f32 %v3547, %v3605
          %v3634 = vsub.f32 %v3552, %v3607
          %v3635 = vsub.f32 %v3555, %v3609
          %v3636 = vsub.f32 %v3560, %v3611
          %v3637 = vsub.f32 %v3563, %v3613
          %v3638 = vsub.f32 %v3568, %v3615
          %v3639 = vsub.f32 %v3571, %v3617
          %v3640 = vsub.f32 %v3576, %v3619
          %v3641 = vsub.f32 %v3579, %v3621
          %v3642 = vsub.f32 %v3584, %v3623
          %v3643 = vsub.f32 %v3587, %v3625
          %v3644 = vsub.f32 %v3592, %v3627
          %v3645 = vsub.f32 %v3595, %v3629
          %v3646 = vmul.f32 %v3630, 1.442695
          %v3647 = vpow.pop %v3646
          %v3648 = vmul.f32 %v3631, 1.442695
          %v3649 = vpow.pop %v3648
          %v3650 = vmul.f32 %v3632, 1.442695
          %v3651 = vpow.pop %v3650
          %v3652 = vmul.f32 %v3633, 1.442695
          %v3653 = vpow.pop %v3652
          %v3654 = vmul.f32 %v3634, 1.442695
          %v3655 = vpow.pop %v3654
          %v3656 = vmul.f32 %v3635, 1.442695
          %v3657 = vpow.pop %v3656
          %v3658 = vmul.f32 %v3636, 1.442695
          %v3659 = vpow.pop %v3658
          %v3660 = vmul.f32 %v3637, 1.442695
          %v3661 = vpow.pop %v3660
          %v3662 = vmul.f32 %v3638, 1.442695
          %v3663 = vpow.pop %v3662
          %v3664 = vmul.f32 %v3639, 1.442695
          %v3665 = vpow.pop %v3664
          %v3666 = vmul.f32 %v3640, 1.442695
          %v3667 = vpow.pop %v3666
          %v3668 = vmul.f32 %v3641, 1.442695
          %v3669 = vpow.pop %v3668
          %v3670 = vmul.f32 %v3642, 1.442695
          %v3671 = vpow.pop %v3670
          %v3672 = vmul.f32 %v3643, 1.442695
          %v3673 = vpow.pop %v3672
          %v3674 = vmul.f32 %v3644, 1.442695
          %v3675 = vpow.pop %v3674
          %v3676 = vmul.f32 %v3645, 1.442695
          %v3677 = vpow.pop %v3676
          %3678 = vadd.xlane.f32.xlu0 %v3647
          %v3679 = vpop.xlane.xlu0 %3678
          %3680 = vadd.xlane.f32.xlu0 %v3649
          %v3681 = vpop.xlane.xlu0 %3680
          %3682 = vadd.xlane.f32.xlu0 %v3651
          %v3683 = vpop.xlane.xlu0 %3682
          %3684 = vadd.xlane.f32.xlu0 %v3653
          %v3685 = vpop.xlane.xlu0 %3684
          %3686 = vadd.xlane.f32.xlu0 %v3655
          %v3687 = vpop.xlane.xlu0 %3686
          %3688 = vadd.xlane.f32.xlu0 %v3657
          %v3689 = vpop.xlane.xlu0 %3688
          %3690 = vadd.xlane.f32.xlu0 %v3659
          %v3691 = vpop.xlane.xlu0 %3690
          %3692 = vadd.xlane.f32.xlu0 %v3661
          %v3693 = vpop.xlane.xlu0 %3692
          %3694 = vadd.xlane.f32.xlu0 %v3663
          %v3695 = vpop.xlane.xlu0 %3694
          %3696 = vadd.xlane.f32.xlu0 %v3665
          %v3697 = vpop.xlane.xlu0 %3696
          %3698 = vadd.xlane.f32.xlu0 %v3667
          %v3699 = vpop.xlane.xlu0 %3698
          %3700 = vadd.xlane.f32.xlu0 %v3669
          %v3701 = vpop.xlane.xlu0 %3700
          %3702 = vadd.xlane.f32.xlu0 %v3671
          %v3703 = vpop.xlane.xlu0 %3702
          %3704 = vadd.xlane.f32.xlu0 %v3673
          %v3705 = vpop.xlane.xlu0 %3704
          %3706 = vadd.xlane.f32.xlu0 %v3675
          %v3707 = vpop.xlane.xlu0 %3706
          %3708 = vadd.xlane.f32.xlu0 %v3677
          %v3709 = vpop.xlane.xlu0 %3708
          %v3710 = vrcp.pop %v3679
          %v3711 = vrcp.pop %v3681
          %v3712 = vrcp.pop %v3683
          %v3713 = vrcp.pop %v3685
          %v3714 = vrcp.pop %v3687
          %v3715 = vrcp.pop %v3689
          %v3716 = vrcp.pop %v3691
          %v3717 = vrcp.pop %v3693
          %v3718 = vrcp.pop %v3695
          %v3719 = vrcp.pop %v3697
          %v3720 = vrcp.pop %v3699
          %v3721 = vrcp.pop %v3701
          %v3722 = vrcp.pop %v3703
          %v3723 = vrcp.pop %v3705
          %v3724 = vrcp.pop %v3707
          %v3725 = vrcp.pop %v3709
          %v3726 = vmul.f32 %v3647, %v3710
          %v3727 = vmul.f32 %v3649, %v3711
          %v3728 = vmul.f32 %v3651, %v3712
          %v3729 = vmul.f32 %v3653, %v3713
          %v3730 = vmul.f32 %v3655, %v3714
          %v3731 = vmul.f32 %v3657, %v3715
          %v3732 = vmul.f32 %v3659, %v3716
          %v3733 = vmul.f32 %v3661, %v3717
          %v3734 = vmul.f32 %v3663, %v3718
          %v3735 = vmul.f32 %v3665, %v3719
          %v3736 = vmul.f32 %v3667, %v3720
          %v3737 = vmul.f32 %v3669, %v3721
          %v3738 = vmul.f32 %v3671, %v3722
          %v3739 = vmul.f32 %v3673, %v3723
          %v3740 = vmul.f32 %v3675, %v3724
          %v3741 = vmul.f32 %v3677, %v3725
          %v3742 = vpack.c.bf16 %v3727, %v3726
          %v3743 = vpack.c.bf16 %v3729, %v3728
          %v3744 = vpack.c.bf16 %v3731, %v3730
          %v3745 = vpack.c.bf16 %v3733, %v3732
          %v3746 = vpack.c.bf16 %v3735, %v3734
          %v3747 = vpack.c.bf16 %v3737, %v3736
          %v3748 = vpack.c.bf16 %v3739, %v3738
          %v3749 = vpack.c.bf16 %v3741, %v3740
          %3750 = vrot.lane.b32.xlu0 %v2099, 32
          %v3751 = vpop.permute.xlu0 %3750
          %3752 = vrot.lane.b32.xlu0 %v2100, 32
          %v3753 = vpop.permute.xlu0 %3752
          %3754 = vrot.lane.b32.xlu0 %v2101, 32
          %v3755 = vpop.permute.xlu0 %3754
          %3756 = vrot.lane.b32.xlu0 %v2102, 32
          %v3757 = vpop.permute.xlu0 %3756
          %3758 = vrot.lane.b32.xlu0 %v2103, 32
          %v3759 = vpop.permute.xlu0 %3758
          %3760 = vrot.lane.b32.xlu0 %v2104, 32
          %v3761 = vpop.permute.xlu0 %3760
          %3762 = vrot.lane.b32.xlu0 %v2105, 32
          %v3763 = vpop.permute.xlu0 %3762
          %3764 = vrot.lane.b32.xlu0 %v2106, 32
          %v3765 = vpop.permute.xlu0 %3764
          %3774 = vmatprep.subr.bf16.mxu0 0
          %3775 = vmatpush1.bf16.msra.mxu0 %v3765
          %3776 = vmatprep.subr.bf16.mxu0 0
          %3777 = vmatpush1.bf16.msra.mxu0 %v3763
          %3778 = vmatprep.subr.bf16.mxu0 0
          %3779 = vmatpush1.bf16.msra.mxu0 %v3761
          %3780 = vmatprep.subr.bf16.mxu0 0
          %3781 = vmatpush1.bf16.msra.mxu0 %v3759
          %3782 = vmatprep.subr.bf16.mxu0 0
          %3783 = vmatpush1.bf16.msra.mxu0 %v3757
          %3784 = vmatprep.subr.bf16.mxu0 0
          %3785 = vmatpush1.bf16.msra.mxu0 %v3755
          %3786 = vmatprep.subr.bf16.mxu0 0
          %3787 = vmatpush1.bf16.msra.mxu0 %v3753
          %3788 = vmatprep.subr.bf16.mxu0 0
          %3789 = vmatpush1.bf16.msra.mxu0 %v3751
          %3790 = vmatprep.subr.bf16.mxu0 0
          %3791 = vmatpush2.bf16.msra.mxu0 0
          %3792 = vmatprep.subr.bf16.mxu0 0
          %3793 = vmatpush2.bf16.msra.mxu0 0
          %3794 = vmatprep.subr.bf16.mxu0 0
          %3795 = vmatpush2.bf16.msra.mxu0 0
          %3796 = vmatprep.subr.bf16.mxu0 0
          %3797 = vmatpush2.bf16.msra.mxu0 0
          %3798 = vmatprep.subr.bf16.mxu0 0
          %3799 = vmatpush2.bf16.msra.mxu0 0
          %3800 = vmatprep.subr.bf16.mxu0 0
          %3801 = vmatpush2.bf16.msra.mxu0 0
          %3802 = vmatprep.subr.bf16.mxu0 0
          %3803 = vmatpush2.bf16.msra.mxu0 0
          %3804 = vmatprep.subr.bf16.mxu0 0
          %3805 = vmatpush2.bf16.msra.mxu0 0
          %3806 = vmatprep.mubr.bf16.mxu0 0
          %3807 = vmatmul.mubr.bf16.gmra.mxu0 %v3742
          %v3808 = vpop.f32.mrf.mxu0
          %v3809 = vadd.f32 0.0, %v3808
          %v3810 = vpop.f32.mrf.mxu0
          %v3811 = vpop.f32.mrf.mxu0
          %v3812 = vadd.f32 0.0, %v3811
          %v3813 = vpop.f32.mrf.mxu0
          %3814 = vmatprep.mubr.bf16.mxu0 0
          %3815 = vmatmul.mubr.bf16.gmra.mxu0 %v3743
          %v3816 = vpop.f32.mrf.mxu0
          %v3817 = vadd.f32 0.0, %v3816
          %v3818 = vpop.f32.mrf.mxu0
          %v3819 = vpop.f32.mrf.mxu0
          %v3820 = vadd.f32 0.0, %v3819
          %v3821 = vpop.f32.mrf.mxu0
          %3822 = vmatprep.mubr.bf16.mxu0 0
          %3823 = vmatmul.mubr.bf16.gmra.mxu0 %v3744
          %v3824 = vpop.f32.mrf.mxu0
          %v3825 = vadd.f32 0.0, %v3824
          %v3826 = vpop.f32.mrf.mxu0
          %v3827 = vpop.f32.mrf.mxu0
          %v3828 = vadd.f32 0.0, %v3827
          %v3829 = vpop.f32.mrf.mxu0
          %3830 = vmatprep.mubr.bf16.mxu0 0
          %3831 = vmatmul.mubr.bf16.gmra.mxu0 %v3745
          %v3832 = vpop.f32.mrf.mxu0
          %v3833 = vadd.f32 0.0, %v3832
          %v3834 = vpop.f32.mrf.mxu0
          %v3835 = vpop.f32.mrf.mxu0
          %v3836 = vadd.f32 0.0, %v3835
          %v3837 = vpop.f32.mrf.mxu0
          %3838 = vmatprep.mubr.bf16.mxu0 0
          %3839 = vmatmul.mubr.bf16.gmra.mxu0 %v3746
          %v3840 = vpop.f32.mrf.mxu0
          %v3841 = vadd.f32 0.0, %v3840
          %v3842 = vpop.f32.mrf.mxu0
          %v3843 = vpop.f32.mrf.mxu0
          %v3844 = vadd.f32 0.0, %v3843
          %v3845 = vpop.f32.mrf.mxu0
          %3846 = vmatprep.mubr.bf16.mxu0 0
          %3847 = vmatmul.mubr.bf16.gmra.mxu0 %v3747
          %v3848 = vpop.f32.mrf.mxu0
          %v3849 = vadd.f32 0.0, %v3848
          %v3850 = vpop.f32.mrf.mxu0
          %v3851 = vpop.f32.mrf.mxu0
          %v3852 = vadd.f32 0.0, %v3851
          %v3853 = vpop.f32.mrf.mxu0
          %3854 = vmatprep.mubr.bf16.mxu0 0
          %3855 = vmatmul.mubr.bf16.gmra.mxu0 %v3748
          %v3856 = vpop.f32.mrf.mxu0
          %v3857 = vadd.f32 0.0, %v3856
          %v3858 = vpop.f32.mrf.mxu0
          %v3859 = vpop.f32.mrf.mxu0
          %v3860 = vadd.f32 0.0, %v3859
          %v3861 = vpop.f32.mrf.mxu0
          %3862 = vmatprep.mubr.bf16.mxu0 0
          %3863 = vmatmul.mubr.bf16.gmra.mxu0 %v3749
          %v3864 = vpop.f32.mrf.mxu0
          %v3865 = vadd.f32 0.0, %v3864
          %v3866 = vpop.f32.mrf.mxu0
          %v3867 = vpop.f32.mrf.mxu0
          %v3868 = vadd.f32 0.0, %v3867
          %v3869 = vpop.f32.mrf.mxu0
          %3870 = vdwg.mxu0
          %v3871 = vpack.c.bf16 %v3812, %v3809
          %v3872 = vpack.c.bf16 %v3820, %v3817
          %v3873 = vpack.c.bf16 %v3828, %v3825
          %v3874 = vpack.c.bf16 %v3836, %v3833
          %v3875 = vpack.c.bf16 %v3844, %v3841
          %v3876 = vpack.c.bf16 %v3852, %v3849
          %v3877 = vpack.c.bf16 %v3860, %v3857
          %v3878 = vpack.c.bf16 %v3868, %v3865
          %v3887 = vunpack.c.l.b16 %v3871
          %v3888 = vunpack.c.h.b16 %v3871
          %v3889 = vunpack.c.l.b16 %v3872
          %v3890 = vunpack.c.h.b16 %v3872
          %v3891 = vunpack.c.l.b16 %v3873
          %v3892 = vunpack.c.h.b16 %v3873
          %v3893 = vunpack.c.l.b16 %v3874
          %v3894 = vunpack.c.h.b16 %v3874
          %v3895 = vunpack.c.l.b16 %v3875
          %v3896 = vunpack.c.h.b16 %v3875
          %v3897 = vunpack.c.l.b16 %v3876
          %v3898 = vunpack.c.h.b16 %v3876
          %v3899 = vunpack.c.l.b16 %v3877
          %v3900 = vunpack.c.h.b16 %v3877
          %v3901 = vunpack.c.l.b16 %v3878
          %v3902 = vunpack.c.h.b16 %v3878
          %v3903 = vpack.c.b16 %v3887, %v3887
          %v3904 = vpack.c.b16 %v3888, %v3888
          %v3905 = vpack.c.b16 %v3889, %v3889
          %v3906 = vpack.c.b16 %v3890, %v3890
          %v3907 = vpack.c.b16 %v3891, %v3891
          %v3908 = vpack.c.b16 %v3892, %v3892
          %v3909 = vpack.c.b16 %v3893, %v3893
          %v3910 = vpack.c.b16 %v3894, %v3894
          %v3911 = vpack.c.b16 %v3895, %v3895
          %v3912 = vpack.c.b16 %v3896, %v3896
          %v3913 = vpack.c.b16 %v3897, %v3897
          %v3914 = vpack.c.b16 %v3898, %v3898
          %v3915 = vpack.c.b16 %v3899, %v3899
          %v3916 = vpack.c.b16 %v3900, %v3900
          %v3917 = vpack.c.b16 %v3901, %v3901
          %v3918 = vpack.c.b16 %v3902, %v3902
          %3919 = vrot.lane.b32.xlu0 %v3903, 96
          %v3920 = vpop.permute.xlu0 %3919
          %3921 = vrot.lane.b32.xlu0 %v3904, 96
          %v3922 = vpop.permute.xlu0 %3921
          %3923 = vrot.lane.b32.xlu0 %v3905, 96
          %v3924 = vpop.permute.xlu0 %3923
          %3925 = vrot.lane.b32.xlu0 %v3906, 96
          %v3926 = vpop.permute.xlu0 %3925
          %3927 = vrot.lane.b32.xlu0 %v3907, 96
          %v3928 = vpop.permute.xlu0 %3927
          %3929 = vrot.lane.b32.xlu0 %v3908, 96
          %v3930 = vpop.permute.xlu0 %3929
          %3931 = vrot.lane.b32.xlu0 %v3909, 96
          %v3932 = vpop.permute.xlu0 %3931
          %3933 = vrot.lane.b32.xlu0 %v3910, 96
          %v3934 = vpop.permute.xlu0 %3933
          %3935 = vrot.lane.b32.xlu0 %v3911, 96
          %v3936 = vpop.permute.xlu0 %3935
          %3937 = vrot.lane.b32.xlu0 %v3912, 96
          %v3938 = vpop.permute.xlu0 %3937
          %3939 = vrot.lane.b32.xlu0 %v3913, 96
          %v3940 = vpop.permute.xlu0 %3939
          %3941 = vrot.lane.b32.xlu0 %v3914, 96
          %v3942 = vpop.permute.xlu0 %3941
          %3943 = vrot.lane.b32.xlu0 %v3915, 96
          %v3944 = vpop.permute.xlu0 %3943
          %3945 = vrot.lane.b32.xlu0 %v3916, 96
          %v3946 = vpop.permute.xlu0 %3945
          %3947 = vrot.lane.b32.xlu0 %v3917, 96
          %v3948 = vpop.permute.xlu0 %3947
          %3949 = vrot.lane.b32.xlu0 %v3918, 96
          %v3950 = vpop.permute.xlu0 %3949
          %vm3967 = vcmask 1044224
          %3968 = vst.msk [vmem:[%s2277] sm:$0xf] %vm3967, %v3920
          %3969 = vst.msk [vmem:[%s2277 + $0x4] sm:$0xf] %vm3967, %v3922
          %3970 = vst.msk [vmem:[%s2277 + $0x8] sm:$0xf] %vm3967, %v3924
          %3971 = vst.msk [vmem:[%s2277 + $0xc] sm:$0xf] %vm3967, %v3926
          %3972 = vst.msk [vmem:[%s2277 + $0x10] sm:$0xf] %vm3967, %v3928
          %3973 = vst.msk [vmem:[%s2277 + $0x14] sm:$0xf] %vm3967, %v3930
          %3974 = vst.msk [vmem:[%s2277 + $0x18] sm:$0xf] %vm3967, %v3932
          %3975 = vst.msk [vmem:[%s2277 + $0x1c] sm:$0xf] %vm3967, %v3934
          %3976 = vst.msk [vmem:[%s2277 + $0x20] sm:$0xf] %vm3967, %v3936
          %3977 = vst.msk [vmem:[%s2277 + $0x24] sm:$0xf] %vm3967, %v3938
          %3978 = vst.msk [vmem:[%s2277 + $0x28] sm:$0xf] %vm3967, %v3940
          %3979 = vst.msk [vmem:[%s2277 + $0x2c] sm:$0xf] %vm3967, %v3942
          %3980 = vst.msk [vmem:[%s2277 + $0x30] sm:$0xf] %vm3967, %v3944
          %3981 = vst.msk [vmem:[%s2277 + $0x34] sm:$0xf] %vm3967, %v3946
          %3982 = vst.msk [vmem:[%s2277 + $0x38] sm:$0xf] %vm3967, %v3948
          %3983 = vst.msk [vmem:[%s2277 + $0x3c] sm:$0xf] %vm3967, %v3950
        $region85: #{tpu_custom_call.1} parent=55 // loop_footer
          %s1664 = sadd.s32 1, %s1660
        $region86: #{tpu_custom_call.1} parent=55 // loop_footer_branch
          %1659 = sbr.rel target = $region82
        $region87: #{tpu_custom_call.1} parent=55 // loop_exit
          _
        %v3984 = vld [vmem:[#allocation4] sm:$0xf]
        %v3985 = vld [vmem:[#allocation4 + $0x4] sm:$0xf]
        %v3986 = vld [vmem:[#allocation4 + $0x8] sm:$0xf]
        %v3987 = vld [vmem:[#allocation4 + $0xc] sm:$0xf]
        %v3988 = vld [vmem:[#allocation4 + $0x10] sm:$0xf]
        %v3989 = vld [vmem:[#allocation4 + $0x14] sm:$0xf]
        %v3990 = vld [vmem:[#allocation4 + $0x18] sm:$0xf]
        %v3991 = vld [vmem:[#allocation4 + $0x1c] sm:$0xf]
        %v3992 = vld [vmem:[#allocation4 + $0x20] sm:$0xf]
        %v3993 = vld [vmem:[#allocation4 + $0x24] sm:$0xf]
        %v3994 = vld [vmem:[#allocation4 + $0x28] sm:$0xf]
        %v3995 = vld [vmem:[#allocation4 + $0x2c] sm:$0xf]
        %v3996 = vld [vmem:[#allocation4 + $0x30] sm:$0xf]
        %v3997 = vld [vmem:[#allocation4 + $0x34] sm:$0xf]
        %v3998 = vld [vmem:[#allocation4 + $0x38] sm:$0xf]
        %v3999 = vld [vmem:[#allocation4 + $0x3c] sm:$0xf]
        %v4000 = vld [vmem:[#allocation4 + $0x40] sm:$0xf]
        %v4001 = vld [vmem:[#allocation4 + $0x44] sm:$0xf]
        %v4002 = vld [vmem:[#allocation4 + $0x48] sm:$0xf]
        %v4003 = vld [vmem:[#allocation4 + $0x4c] sm:$0xf]
        %v4004 = vld [vmem:[#allocation4 + $0x50] sm:$0xf]
        %v4005 = vld [vmem:[#allocation4 + $0x54] sm:$0xf]
        %v4006 = vld [vmem:[#allocation4 + $0x58] sm:$0xf]
        %v4007 = vld [vmem:[#allocation4 + $0x5c] sm:$0xf]
        %v4008 = vld [vmem:[#allocation4 + $0x60] sm:$0xf]
        %v4009 = vld [vmem:[#allocation4 + $0x64] sm:$0xf]
        %v4010 = vld [vmem:[#allocation4 + $0x68] sm:$0xf]
        %v4011 = vld [vmem:[#allocation4 + $0x6c] sm:$0xf]
        %v4012 = vld [vmem:[#allocation4 + $0x70] sm:$0xf]
        %v4013 = vld [vmem:[#allocation4 + $0x74] sm:$0xf]
        %v4014 = vld [vmem:[#allocation4 + $0x78] sm:$0xf]
        %v4015 = vld [vmem:[#allocation4 + $0x7c] sm:$0xf]
        %v4017 = vlaneseq
        %v4018 = vshrl.u32 %v4017, 7
        %v4019 = vsub.s32 0, %v4018
        %v4020 = vrot.slane %v503, %v4019
        %v4054 = vunpack.c.l.b16 %v3984
        %v4055 = vunpack.c.l.b16 %v3985
        %v4056 = vunpack.c.l.b16 %v3986
        %v4057 = vunpack.c.l.b16 %v3987
        %v4058 = vunpack.c.l.b16 %v3988
        %v4059 = vunpack.c.l.b16 %v3989
        %v4060 = vunpack.c.l.b16 %v3990
        %v4061 = vunpack.c.l.b16 %v3991
        %v4062 = vunpack.c.l.b16 %v3992
        %v4063 = vunpack.c.l.b16 %v3993
        %v4064 = vunpack.c.l.b16 %v3994
        %v4065 = vunpack.c.l.b16 %v3995
        %v4066 = vunpack.c.l.b16 %v3996
        %v4067 = vunpack.c.l.b16 %v3997
        %v4068 = vunpack.c.l.b16 %v3998
        %v4069 = vunpack.c.l.b16 %v3999
        %v4070 = vunpack.c.l.b16 %v4000
        %v4071 = vunpack.c.l.b16 %v4001
        %v4072 = vunpack.c.l.b16 %v4002
        %v4073 = vunpack.c.l.b16 %v4003
        %v4074 = vunpack.c.l.b16 %v4004
        %v4075 = vunpack.c.l.b16 %v4005
        %v4076 = vunpack.c.l.b16 %v4006
        %v4077 = vunpack.c.l.b16 %v4007
        %v4078 = vunpack.c.l.b16 %v4008
        %v4079 = vunpack.c.l.b16 %v4009
        %v4080 = vunpack.c.l.b16 %v4010
        %v4081 = vunpack.c.l.b16 %v4011
        %v4082 = vunpack.c.l.b16 %v4012
        %v4083 = vunpack.c.l.b16 %v4013
        %v4084 = vunpack.c.l.b16 %v4014
        %v4085 = vunpack.c.l.b16 %v4015
        %v4086 = vpack.c.b16 %v4055, %v4054
        %v4087 = vpack.c.b16 %v4057, %v4056
        %v4088 = vpack.c.b16 %v4059, %v4058
        %v4089 = vpack.c.b16 %v4061, %v4060
        %v4090 = vpack.c.b16 %v4063, %v4062
        %v4091 = vpack.c.b16 %v4065, %v4064
        %v4092 = vpack.c.b16 %v4067, %v4066
        %v4093 = vpack.c.b16 %v4069, %v4068
        %v4094 = vpack.c.b16 %v4071, %v4070
        %v4095 = vpack.c.b16 %v4073, %v4072
        %v4096 = vpack.c.b16 %v4075, %v4074
        %v4097 = vpack.c.b16 %v4077, %v4076
        %v4098 = vpack.c.b16 %v4079, %v4078
        %v4099 = vpack.c.b16 %v4081, %v4080
        %v4100 = vpack.c.b16 %v4083, %v4082
        %v4101 = vpack.c.b16 %v4085, %v4084
        %v4134 = vunpack.c.l.b16 %v485
        %v4135 = vunpack.c.l.b16 %v486
        %v4136 = vunpack.c.l.b16 %v487
        %v4137 = vunpack.c.l.b16 %v488
        %v4138 = vunpack.c.l.b16 %v489
        %v4139 = vunpack.c.l.b16 %v490
        %v4140 = vunpack.c.l.b16 %v491
        %v4141 = vunpack.c.l.b16 %v492
        %v4142 = vunpack.c.l.b16 %v493
        %v4143 = vunpack.c.l.b16 %v494
        %v4144 = vunpack.c.l.b16 %v495
        %v4145 = vunpack.c.l.b16 %v496
        %v4146 = vunpack.c.l.b16 %v497
        %v4147 = vunpack.c.l.b16 %v498
        %v4148 = vunpack.c.l.b16 %v499
        %v4149 = vunpack.c.l.b16 %v500
        %v4150 = vpack.c.b16 %v4135, %v4134
        %v4151 = vpack.c.b16 %v4137, %v4136
        %v4152 = vpack.c.b16 %v4139, %v4138
        %v4153 = vpack.c.b16 %v4141, %v4140
        %v4154 = vpack.c.b16 %v4143, %v4142
        %v4155 = vpack.c.b16 %v4145, %v4144
        %v4156 = vpack.c.b16 %v4147, %v4146
        %v4157 = vpack.c.b16 %v4149, %v4148
        %4166 = vmatprep.subr.bf16.mxu0 0
        %4167 = vmatpush1.bf16.msra.mxu0 %v4157
        %4168 = vmatprep.subr.bf16.mxu0 0
        %4169 = vmatpush1.bf16.msra.mxu0 %v4156
        %4170 = vmatprep.subr.bf16.mxu0 0
        %4171 = vmatpush1.bf16.msra.mxu0 %v4155
        %4172 = vmatprep.subr.bf16.mxu0 0
        %4173 = vmatpush1.bf16.msra.mxu0 %v4154
        %4174 = vmatprep.subr.bf16.mxu0 0
        %4175 = vmatpush1.bf16.msra.mxu0 %v4153
        %4176 = vmatprep.subr.bf16.mxu0 0
        %4177 = vmatpush1.bf16.msra.mxu0 %v4152
        %4178 = vmatprep.subr.bf16.mxu0 0
        %4179 = vmatpush1.bf16.msra.mxu0 %v4151
        %4180 = vmatprep.subr.bf16.mxu0 0
        %4181 = vmatpush1.bf16.msra.mxu0 %v4150
        %4182 = vmatprep.subr.bf16.mxu0 0
        %4183 = vmatpush2.bf16.msra.mxu0 0
        %4184 = vmatprep.subr.bf16.mxu0 0
        %4185 = vmatpush2.bf16.msra.mxu0 0
        %4186 = vmatprep.subr.bf16.mxu0 0
        %4187 = vmatpush2.bf16.msra.mxu0 0
        %4188 = vmatprep.subr.bf16.mxu0 0
        %4189 = vmatpush2.bf16.msra.mxu0 0
        %4190 = vmatprep.subr.bf16.mxu0 0
        %4191 = vmatpush2.bf16.msra.mxu0 0
        %4192 = vmatprep.subr.bf16.mxu0 0
        %4193 = vmatpush2.bf16.msra.mxu0 0
        %4194 = vmatprep.subr.bf16.mxu0 0
        %4195 = vmatpush2.bf16.msra.mxu0 0
        %4196 = vmatprep.subr.bf16.mxu0 0
        %4197 = vmatpush2.bf16.msra.mxu0 0
        %4198 = vmatprep.mubr.bf16.mxu0 0
        %4199 = vmatmul.mubr.bf16.gmra.mxu0 %v4086
        %v4200 = vpop.f32.mrf.mxu0
        %v4201 = vadd.f32 %v4020, %v4200
        %v4202 = vpop.f32.mrf.mxu0
        %v4203 = vpop.f32.mrf.mxu0
        %v4204 = vadd.f32 %v4020, %v4203
        %v4205 = vpop.f32.mrf.mxu0
        %4206 = vmatprep.mubr.bf16.mxu0 0
        %4207 = vmatmul.mubr.bf16.gmra.mxu0 %v4087
        %v4208 = vpop.f32.mrf.mxu0
        %v4209 = vadd.f32 %v4020, %v4208
        %v4210 = vpop.f32.mrf.mxu0
        %v4211 = vpop.f32.mrf.mxu0
        %v4212 = vadd.f32 %v4020, %v4211
        %v4213 = vpop.f32.mrf.mxu0
        %4214 = vmatprep.mubr.bf16.mxu0 0
        %4215 = vmatmul.mubr.bf16.gmra.mxu0 %v4088
        %v4216 = vpop.f32.mrf.mxu0
        %v4217 = vadd.f32 %v4020, %v4216
        %v4218 = vpop.f32.mrf.mxu0
        %v4219 = vpop.f32.mrf.mxu0
        %v4220 = vadd.f32 %v4020, %v4219
        %v4221 = vpop.f32.mrf.mxu0
        %4222 = vmatprep.mubr.bf16.mxu0 0
        %4223 = vmatmul.mubr.bf16.gmra.mxu0 %v4089
        %v4224 = vpop.f32.mrf.mxu0
        %v4225 = vadd.f32 %v4020, %v4224
        %v4226 = vpop.f32.mrf.mxu0
        %v4227 = vpop.f32.mrf.mxu0
        %v4228 = vadd.f32 %v4020, %v4227
        %v4229 = vpop.f32.mrf.mxu0
        %4230 = vmatprep.mubr.bf16.mxu0 0
        %4231 = vmatmul.mubr.bf16.gmra.mxu0 %v4090
        %v4232 = vpop.f32.mrf.mxu0
        %v4233 = vadd.f32 %v4020, %v4232
        %v4234 = vpop.f32.mrf.mxu0
        %v4235 = vpop.f32.mrf.mxu0
        %v4236 = vadd.f32 %v4020, %v4235
        %v4237 = vpop.f32.mrf.mxu0
        %4238 = vmatprep.mubr.bf16.mxu0 0
        %4239 = vmatmul.mubr.bf16.gmra.mxu0 %v4091
        %v4240 = vpop.f32.mrf.mxu0
        %v4241 = vadd.f32 %v4020, %v4240
        %v4242 = vpop.f32.mrf.mxu0
        %v4243 = vpop.f32.mrf.mxu0
        %v4244 = vadd.f32 %v4020, %v4243
        %v4245 = vpop.f32.mrf.mxu0
        %4246 = vmatprep.mubr.bf16.mxu0 0
        %4247 = vmatmul.mubr.bf16.gmra.mxu0 %v4092
        %v4248 = vpop.f32.mrf.mxu0
        %v4249 = vadd.f32 %v4020, %v4248
        %v4250 = vpop.f32.mrf.mxu0
        %v4251 = vpop.f32.mrf.mxu0
        %v4252 = vpop.f32.mrf.mxu0
        %4253 = vmatprep.mubr.bf16.mxu0 0
        %4254 = vmatmul.mubr.bf16.gmra.mxu0 %v4093
        %v4255 = vpop.f32.mrf.mxu0
        %v4256 = vpop.f32.mrf.mxu0
        %v4257 = vpop.f32.mrf.mxu0
        %v4258 = vpop.f32.mrf.mxu0
        %4259 = vmatprep.mubr.bf16.mxu0 0
        %4260 = vmatmul.mubr.bf16.gmra.mxu0 %v4094
        %v4261 = vpop.f32.mrf.mxu0
        %v4262 = vadd.f32 %v4020, %v4261
        %v4263 = vpop.f32.mrf.mxu0
        %v4264 = vpop.f32.mrf.mxu0
        %v4265 = vadd.f32 %v4020, %v4264
        %v4266 = vpop.f32.mrf.mxu0
        %4267 = vmatprep.mubr.bf16.mxu0 0
        %4268 = vmatmul.mubr.bf16.gmra.mxu0 %v4095
        %v4269 = vpop.f32.mrf.mxu0
        %v4270 = vadd.f32 %v4020, %v4269
        %v4271 = vpop.f32.mrf.mxu0
        %v4272 = vpop.f32.mrf.mxu0
        %v4273 = vadd.f32 %v4020, %v4272
        %v4274 = vpop.f32.mrf.mxu0
        %4275 = vmatprep.mubr.bf16.mxu0 0
        %4276 = vmatmul.mubr.bf16.gmra.mxu0 %v4096
        %v4277 = vpop.f32.mrf.mxu0
        %v4278 = vadd.f32 %v4020, %v4277
        %v4279 = vpop.f32.mrf.mxu0
        %v4280 = vpop.f32.mrf.mxu0
        %v4281 = vadd.f32 %v4020, %v4280
        %v4282 = vpop.f32.mrf.mxu0
        %4283 = vmatprep.mubr.bf16.mxu0 0
        %4284 = vmatmul.mubr.bf16.gmra.mxu0 %v4097
        %v4285 = vpop.f32.mrf.mxu0
        %v4286 = vadd.f32 %v4020, %v4285
        %v4287 = vpop.f32.mrf.mxu0
        %v4288 = vpop.f32.mrf.mxu0
        %v4289 = vadd.f32 %v4020, %v4288
        %v4290 = vpop.f32.mrf.mxu0
        %4291 = vmatprep.mubr.bf16.mxu0 0
        %4292 = vmatmul.mubr.bf16.gmra.mxu0 %v4098
        %v4293 = vpop.f32.mrf.mxu0
        %v4294 = vadd.f32 %v4020, %v4293
        %v4295 = vpop.f32.mrf.mxu0
        %v4296 = vpop.f32.mrf.mxu0
        %v4297 = vadd.f32 %v4020, %v4296
        %v4298 = vpop.f32.mrf.mxu0
        %4299 = vmatprep.mubr.bf16.mxu0 0
        %4300 = vmatmul.mubr.bf16.gmra.mxu0 %v4099
        %v4301 = vpop.f32.mrf.mxu0
        %v4302 = vadd.f32 %v4020, %v4301
        %v4303 = vpop.f32.mrf.mxu0
        %v4304 = vpop.f32.mrf.mxu0
        %v4305 = vadd.f32 %v4020, %v4304
        %v4306 = vpop.f32.mrf.mxu0
        %4307 = vmatprep.mubr.bf16.mxu0 0
        %4308 = vmatmul.mubr.bf16.gmra.mxu0 %v4100
        %v4309 = vpop.f32.mrf.mxu0
        %v4310 = vadd.f32 %v4020, %v4309
        %v4311 = vpop.f32.mrf.mxu0
        %v4312 = vpop.f32.mrf.mxu0
        %v4313 = vpop.f32.mrf.mxu0
        %4314 = vmatprep.mubr.bf16.mxu0 0
        %4315 = vmatmul.mubr.bf16.gmra.mxu0 %v4101
        %v4316 = vpop.f32.mrf.mxu0
        %v4317 = vpop.f32.mrf.mxu0
        %v4318 = vpop.f32.mrf.mxu0
        %v4319 = vpop.f32.mrf.mxu0
        %4320 = vdwg.mxu0
        %4321 = vst [vmem:[%s448] sm:$0xff] %v4201
        %4322 = vst [vmem:[%s448 + $0x8] sm:$0xff] %v4204
        %4323 = vst [vmem:[%s448 + $0x10] sm:$0xff] %v4209
        %4324 = vst [vmem:[%s448 + $0x18] sm:$0xff] %v4212
        %4325 = vst [vmem:[%s448 + $0x20] sm:$0xff] %v4217
        %4326 = vst [vmem:[%s448 + $0x28] sm:$0xff] %v4220
        %4327 = vst [vmem:[%s448 + $0x30] sm:$0xff] %v4225
        %4328 = vst [vmem:[%s448 + $0x38] sm:$0xff] %v4228
        %4329 = vst [vmem:[%s448 + $0x40] sm:$0xff] %v4233
        %4330 = vst [vmem:[%s448 + $0x48] sm:$0xff] %v4236
        %4331 = vst [vmem:[%s448 + $0x50] sm:$0xff] %v4241
        %4332 = vst [vmem:[%s448 + $0x58] sm:$0xff] %v4244
        %4333 = vst [vmem:[%s448 + $0x60] sm:$0xff] %v4249
        %4334 = vst [vmem:[%s448 + $0x68] sm:$0xff] %v4262
        %4335 = vst [vmem:[%s448 + $0x70] sm:$0xff] %v4265
        %4336 = vst [vmem:[%s448 + $0x78] sm:$0xff] %v4270
        %4337 = vst [vmem:[%s448 + $0x80] sm:$0xff] %v4273
        %4338 = vst [vmem:[%s448 + $0x88] sm:$0xff] %v4278
        %4339 = vst [vmem:[%s448 + $0x90] sm:$0xff] %v4281
        %4340 = vst [vmem:[%s448 + $0x98] sm:$0xff] %v4286
        %4341 = vst [vmem:[%s448 + $0xa0] sm:$0xff] %v4289
        %4342 = vst [vmem:[%s448 + $0xa8] sm:$0xff] %v4294
        %4343 = vst [vmem:[%s448 + $0xb0] sm:$0xff] %v4297
        %4344 = vst [vmem:[%s448 + $0xb8] sm:$0xff] %v4302
        %4345 = vst [vmem:[%s448 + $0xc0] sm:$0xff] %v4305
        %4346 = vst [vmem:[%s448 + $0xc8] sm:$0xff] %v4310
        %s4347 = sand.u32 %s236, 1
        %s4348 = scalar_lea.sflag [#allocation7], %s4347
        %s4349 = sand.u32 %s236, 1
        %s4350 = smul.addr %s4349, 208
        %s4351 = scalar_lea.vmem [#allocation16], %s4350
        // Predicated region
        $region88: #{tpu_custom_call.1} parent=55 // pred_check
          %p4352 = pneg %p246
        $region89: #{tpu_custom_call.1} parent=55 // pred_check_branch
          %4354 = sbr.rel (%p4352) target = $region91
        $region90: #{tpu_custom_call.1} parent=55 // pred_region
          %s4355 = smul.u32 2, %s29
          %s4357 = ssub.s32 3328, 3328
          %4358 = vsyncadd %s4348, %s4357
          %s4359 = smul.addr %s4355, 13
          %s4360 = smul.addr %s4359, 128
          %s4361 = scalar_lea.hbm %s9, %s4360
          %s4362 = sshll.u32 %s4351, 4
          %s4363 = int_to_ptr.vmem [resolvable:$true] %s4362
          %4368 = dma.vmem_to_hbm [thread:$0]  %s4363, 3328, %s4361, %s4348, 128, 128, 8
        $region91: #{tpu_custom_call.1} parent=55 // pred_fallthru
          _
      $region56: #{tpu_custom_call.1} parent=5 // pred_fallthru
        _
      %p4369 = scmp.le.s32.totalorder 2, %s24
      // Predicated region
      $region92: #{tpu_custom_call.1} parent=5 // pred_check
        %p4370 = pneg %p4369
      $region93: #{tpu_custom_call.1} parent=5 // pred_check_branch
        %4372 = sbr.rel (%p4370) target = $region95
      $region94: #{tpu_custom_call.1} parent=5 // pred_region
        %s4373 = ssub.s32 %s24, 2
        // Predicated region
        $region96: #{tpu_custom_call.1} parent=94 // pred_check
          %p4374 = pneg %p252
        $region97: #{tpu_custom_call.1} parent=94 // pred_check_branch
          %4376 = sbr.rel (%p4374) target = $region99
        $region98: #{tpu_custom_call.1} parent=94 // pred_region
          %s4377 = sand.u32 %s237, 1
          %s4378 = scalar_lea.sflag [#allocation7], %s4377
          %s4379 = sand.u32 %s237, 1
          %s4380 = smul.addr %s4379, 208
          %s4381 = scalar_lea.vmem [#allocation16], %s4380
          %4382 = dma.done %s4378, 3328
        $region99: #{tpu_custom_call.1} parent=94 // pred_fallthru
          _
      $region95: #{tpu_custom_call.1} parent=5 // pred_fallthru
        _
    $region6: #{tpu_custom_call.1} parent=1 // loop_footer
      %s28 = sadd.s32 1, %s24
    $region7: #{tpu_custom_call.1} parent=1 // loop_footer_branch
      %23 = sbr.rel target = $region3
    $region8: #{tpu_custom_call.1} parent=1 // loop_exit
      _
    %4383 = vsyncpa [#allocation6], 1
    %s4384 = scalar_lea.sflag [#allocation6], 1
    %4385 = vsyncpa %s4384, 1
    %4386 = vsyncpa [#allocation9], 1
    %s4387 = scalar_lea.sflag [#allocation9], 1
    %4388 = vsyncpa %s4387, 1
    %4389 = vsyncpa [#allocation12], 1
    %4390 = vsyncpa [#allocation15], 1
    %4391 = vsyncpa [#allocation7], 1
    %s4392 = scalar_lea.sflag [#allocation7], 1
    %4393 = vsyncpa %s4392, 1

</llo_original>
